<compile_context>
chip_gen: v7x
topology: tpu7x:2x2x1
jax: 0.10.0
libtpu: 0.0.40
codegen_flags: <defaults>
</compile_context>

<pallas_src>
import functools

import jax
import jax.numpy as jnp
import numpy as np
from jax.experimental import pallas as pl
from jax.experimental.pallas import tpu as pltpu

P = 6          # number of horizontal parts (PCB-style)
CIN_PAD = 8    # pad RGB (3) input channels to 8
K_PAD = 128    # 9 taps * CIN_PAD = 72, zero-padded to a full MXU contraction depth
BT = 4         # images per grid step (batch block)


# ----------------------------------------------------------------------------
# Fused kernel: conv3x3+ReLU stem (as one K=128 matmul over im2col'd taps)
#               ->  stripe average pooling  ->  Linear+ReLU recognition head.
# BT images per grid step; grid axis is "parallel".
# ----------------------------------------------------------------------------
def _fused_patching_kernel(cols_ref, wconv_ref, bconv_ref, wrec_ref, brec_ref,
                           o_ref, *, bt, p, stripe):
    """
    cols_ref  : (BT*H*W, 128)  bf16  im2col'd padded input (9 taps * 8 ch, zero-padded)
    wconv_ref : (128, Cout)    bf16  packed conv3x3 weights
    bconv_ref : (1, Cout)      f32
    wrec_ref  : (Cout, Cp)     bf16  recognition Linear weight
    brec_ref  : (1, Cp)        f32
    o_ref     : (BT*P, Cp)     f32
    """
    cout = wconv_ref.shape[-1]

    # ---- conv3x3 stem: ONE bf16 MXU matmul (K=128), f32 accumulation --------
    feat = jnp.dot(cols_ref[...], wconv_ref[...],
                   preferred_element_type=jnp.float32)        # (BT*H*W, Cout)
    feat = jnp.maximum(feat + bconv_ref[...], 0.0)            # bias + ReLU

    # ---- patching: P horizontal stripes per image, mean over (H/P, W) -------
    pooled = jnp.mean(feat.reshape(bt * p, stripe, cout), axis=1)   # (BT*P, Cout)

    # ---- recognition: shared Linear(Cout -> Cp) + ReLU per part -------------
    y = jnp.dot(pooled.astype(jnp.bfloat16), wrec_ref[...],
                preferred_element_type=jnp.float32) + brec_ref[...]
    o_ref[...] = jnp.maximum(y, 0.0)                          # (BT*P, Cp)


# ----------------------------------------------------------------------------
# Wrapper
# ----------------------------------------------------------------------------
def patching_model_forward(x_nchw, params, *, bt=BT):
    """x_nchw: (B, Cin, H, W) float32 (PyTorch layout) -> (B, P, c_prime)."""
    B, Cin, H, W = x_nchw.shape
    assert H % P == 0, "feature-map height must split into P parts"
    assert B % bt == 0, "batch must be a multiple of the batch block"
    conv_w, conv_b = params["conv_w"], params["conv_b"]       # (3,3,Cin,Cout), (Cout,)
    rec_w, rec_b = params["rec_w"], params["rec_b"]           # (Cout,Cp), (Cp,)
    Cout, Cp = rec_w.shape
    assert Cout % 128 == 0 and Cp % 128 == 0, "keep channel dims lane-dense"

    # NCHW -> NHWC; zero-pad spatial (3x3, pad=1) and channels (Cin->CIN_PAD);
    # cast to bf16 ONCE here (MXU input dtype).
    x_nhwc = jnp.transpose(x_nchw, (0, 2, 3, 1)).astype(jnp.float32)
    xp = jnp.pad(x_nhwc, ((0, 0), (1, 1), (1, 1), (0, CIN_PAD - Cin)))
    xp = xp.astype(jnp.bfloat16)                              # (B, H+2, W+2, 8)

    # Wrapper-side im2col: concat the 9 taps along the channel axis and pad the
    # contraction dim to 128 -> lane-dense (B*H*W, 128) bf16.
    taps = [xp[:, ki:ki + H, kj:kj + W, :] for ki in range(3) for kj in range(3)]
    cols = jnp.concatenate(taps, axis=-1).reshape(B, H * W, 9 * CIN_PAD)
    cols = jnp.pad(cols, ((0, 0), (0, 0), (0, K_PAD - 9 * CIN_PAD)))
    cols = cols.reshape(B * H * W, K_PAD)

    # Pack weights to match the tap order (ki, kj, cin) and pad K to 128.
    wconv = jnp.pad(conv_w, ((0, 0), (0, 0), (0, CIN_PAD - Cin), (0, 0)))
    wconv = wconv.reshape(9 * CIN_PAD, Cout)
    wconv = jnp.pad(wconv, ((0, K_PAD - 9 * CIN_PAD), (0, 0))).astype(jnp.bfloat16)
    bconv = conv_b.reshape(1, Cout).astype(jnp.float32)
    wrec = rec_w.astype(jnp.bfloat16)
    brec = rec_b.reshape(1, Cp).astype(jnp.float32)

    stripe = (H // P) * W
    kernel = functools.partial(_fused_patching_kernel, bt=bt, p=P, stripe=stripe)

    out_flat = pl.pallas_call(
        kernel,
        out_shape=jax.ShapeDtypeStruct((B * P, Cp), jnp.float32),
        grid=(B // bt,),
        in_specs=[
            pl.BlockSpec((bt * H * W, K_PAD), lambda b: (b, 0)),
            pl.BlockSpec((K_PAD, Cout), lambda b: (0, 0)),
            pl.BlockSpec((1, Cout), lambda b: (0, 0)),
            pl.BlockSpec((Cout, Cp), lambda b: (0, 0)),
            pl.BlockSpec((1, Cp), lambda b: (0, 0)),
        ],
        out_specs=pl.BlockSpec((bt * P, Cp), lambda b: (b, 0)),
        compiler_params=pltpu.CompilerParams(
            dimension_semantics=("parallel",),
            vmem_limit_bytes=32 * 1024 * 1024,
        ),
    )(cols, wconv, bconv, wrec, brec)

    return out_flat.reshape(B, P, Cp)


# ----------------------------------------------------------------------------
# Pure-JAX f32 reference (same semantics) for a correctness check
# ----------------------------------------------------------------------------
def reference_forward(x_nchw, params):
    x = jnp.transpose(x_nchw, (0, 2, 3, 1))
    feat = jax.lax.conv_general_dilated(
        x, params["conv_w"], window_strides=(1, 1), padding="SAME",
        dimension_numbers=("NHWC", "HWIO", "NHWC"))
    feat = jax.nn.relu(feat + params["conv_b"])
    B, H, W, C = feat.shape
    pooled = feat.reshape(B, P, H // P, W, C).mean(axis=(2, 3))   # (B, P, C)
    return jax.nn.relu(pooled @ params["rec_w"] + params["rec_b"])


def init_params(key, c_in, c_feat, c_prime):
    k1, k2, k3, k4 = jax.random.split(key, 4)
    return {
        # conv weight stored as (kh, kw, Cin, Cout); equals PyTorch
        # (Cout, Cin, kh, kw) transposed to (kh, kw, Cin, Cout).
        "conv_w": 0.05 * jax.random.normal(k1, (3, 3, c_in, c_feat), jnp.float32),
        "conv_b": 0.01 * jax.random.normal(k2, (c_feat,), jnp.float32),
        "rec_w": 0.05 * jax.random.normal(k3, (c_feat, c_prime), jnp.float32),
        "rec_b": 0.01 * jax.random.normal(k4, (c_prime,), jnp.float32),
    }


if __name__ == "__main__":
    # Small demo shapes consistent with the module: H=W=24 (divisible by P=6),
    # channel dims lane-dense (Cout=128, c_prime=256), batch 8 with BT=4 so the
    # post-blocking grid length (2) keeps both v7x TensorCores busy.
    B, C_IN, HW = 8, 3, 24
    C_FEAT, C_PRIME = 128, 256

    key = jax.random.PRNGKey(0)
    kx, kp = jax.random.split(key)
    x = jax.random.normal(kx, (B, C_IN, HW, HW), jnp.float32)   # NCHW like PyTorch
    params = init_params(kp, C_IN, C_FEAT, C_PRIME)

    out = jax.block_until_ready(patching_model_forward(x, params))
    assert out.shape == (B, P, C_PRIME), out.shape

    ref = jax.block_until_ready(reference_forward(x, params))
    np.testing.assert_allclose(np.asarray(out), np.asarray(ref),
                               rtol=2e-2, atol=2e-2)
    print("KERNEL_OK")
</pallas_src>

<mosaic_0001>
module attributes {stable_mosaic.version = 11 : i64} {
  func.func @_fused_patching_kernel(%arg0: i32, %arg1: memref<2304x128xbf16, #tpu.memory_space<vmem>>, %arg2: memref<128x128xbf16, #tpu.memory_space<vmem>>, %arg3: memref<1x128xf32, #tpu.memory_space<vmem>>, %arg4: memref<128x256xbf16, #tpu.memory_space<vmem>>, %arg5: memref<1x256xf32, #tpu.memory_space<vmem>>, %arg6: memref<24x256xf32, #tpu.memory_space<vmem>>) attributes {dimension_semantics = [#tpu.dimension_semantics<parallel>], iteration_bounds = array<i64: 2>, scalar_prefetch = 0 : i64, scratch_operands = 0 : i64, tpu.core_type = #tpu.core_type<tc>, window_params = [{transform_indices = @transform_0, window_bounds = array<i64: 2304, 128>}, {pipeline_mode = #tpu.pipeline_mode<synchronous>, transform_indices = @transform_1, window_bounds = array<i64: 128, 128>}, {pipeline_mode = #tpu.pipeline_mode<synchronous>, transform_indices = @transform_2, window_bounds = array<i64: 1, 128>}, {pipeline_mode = #tpu.pipeline_mode<synchronous>, transform_indices = @transform_3, window_bounds = array<i64: 128, 256>}, {pipeline_mode = #tpu.pipeline_mode<synchronous>, transform_indices = @transform_4, window_bounds = array<i64: 1, 256>}, {transform_indices = @transform_5, window_bounds = array<i64: 24, 256>}]} {
    %c0 = arith.constant 0 : index
    %c0_0 = arith.constant 0 : index
    %0 = vector.load %arg1[%c0, %c0_0] : memref<2304x128xbf16, #tpu.memory_space<vmem>>, vector<2304x128xbf16>
    %c0_1 = arith.constant 0 : index
    %c0_2 = arith.constant 0 : index
    %1 = vector.load %arg2[%c0_1, %c0_2] : memref<128x128xbf16, #tpu.memory_space<vmem>>, vector<128x128xbf16>
    %cst = arith.constant dense<0.000000e+00> : vector<2304x128xf32>
    %2 = tpu.matmul %0, %1, %cst {dimension_numbers = #tpu.dot_dimension_numbers<[1], [0], [0], [1], [0, 0, 1, 1], [], []>} : vector<2304x128xbf16>, vector<128x128xbf16>, vector<2304x128xf32> -> vector<2304x128xf32>
    %c0_3 = arith.constant 0 : index
    %c0_4 = arith.constant 0 : index
    %3 = vector.load %arg3[%c0_3, %c0_4] : memref<1x128xf32, #tpu.memory_space<vmem>>, vector<1x128xf32>
    %4 = vector.broadcast %3 : vector<1x128xf32> to vector<2304x128xf32>
    %5 = arith.addf %2, %4 : vector<2304x128xf32>
    %cst_5 = arith.constant 0.000000e+00 : f32
    %6 = vector.broadcast %cst_5 : f32 to vector<2304x128xf32>
    %7 = arith.maximumf %5, %6 : vector<2304x128xf32>
    %8 = vector.shape_cast %7 : vector<2304x128xf32> to vector<24x96x128xf32>
    %cst_6 = arith.constant dense<0.000000e+00> : vector<24x128xf32>
    %9 = vector.multi_reduction <add>, %8, %cst_6 [1] : vector<24x96x128xf32> to vector<24x128xf32>
    %cst_7 = arith.constant 9.600000e+01 : f32
    %10 = vector.broadcast %cst_7 : f32 to vector<24x128xf32>
    %11 = arith.divf %9, %10 : vector<24x128xf32>
    %12 = arith.truncf %11 : vector<24x128xf32> to vector<24x128xbf16>
    %c0_8 = arith.constant 0 : index
    %c0_9 = arith.constant 0 : index
    %13 = vector.load %arg4[%c0_8, %c0_9] : memref<128x256xbf16, #tpu.memory_space<vmem>>, vector<128x256xbf16>
    %cst_10 = arith.constant dense<0.000000e+00> : vector<24x256xf32>
    %14 = tpu.matmul %12, %13, %cst_10 {dimension_numbers = #tpu.dot_dimension_numbers<[1], [0], [0], [1], [0, 0, 1, 1], [], []>} : vector<24x128xbf16>, vector<128x256xbf16>, vector<24x256xf32> -> vector<24x256xf32>
    %c0_11 = arith.constant 0 : index
    %c0_12 = arith.constant 0 : index
    %15 = vector.load %arg5[%c0_11, %c0_12] : memref<1x256xf32, #tpu.memory_space<vmem>>, vector<1x256xf32>
    %16 = vector.broadcast %15 : vector<1x256xf32> to vector<24x256xf32>
    %17 = arith.addf %14, %16 : vector<24x256xf32>
    %cst_13 = arith.constant 0.000000e+00 : f32
    %18 = vector.broadcast %cst_13 : f32 to vector<24x256xf32>
    %19 = arith.maximumf %17, %18 : vector<24x256xf32>
    %c0_14 = arith.constant 0 : index
    %c0_15 = arith.constant 0 : index
    %20 = vector.load %arg6[%c0_14, %c0_15] : memref<24x256xf32, #tpu.memory_space<vmem>>, vector<24x256xf32>
    tpu.vector_store %arg6[%c0_14, %c0_15], %19 {strides = array<i32>} : memref<24x256xf32, #tpu.memory_space<vmem>>, vector<24x256xf32>,
    return
  }
  func.func @transform_0(%arg0: i32) -> (i32, i32) {
    %c0_i32 = arith.constant 0 : i32
    %c0_i32_0 = arith.constant 0 : i32
    return %arg0, %c0_i32 : i32, i32
  }
  func.func @transform_1(%arg0: i32) -> (i32, i32) {
    %c0_i32 = arith.constant 0 : i32
    %c0_i32_0 = arith.constant 0 : i32
    %c0_i32_1 = arith.constant 0 : i32
    return %c0_i32, %c0_i32_0 : i32, i32
  }
  func.func @transform_2(%arg0: i32) -> (i32, i32) {
    %c0_i32 = arith.constant 0 : i32
    %c0_i32_0 = arith.constant 0 : i32
    %c0_i32_1 = arith.constant 0 : i32
    return %c0_i32, %c0_i32_0 : i32, i32
  }
  func.func @transform_3(%arg0: i32) -> (i32, i32) {
    %c0_i32 = arith.constant 0 : i32
    %c0_i32_0 = arith.constant 0 : i32
    %c0_i32_1 = arith.constant 0 : i32
    return %c0_i32, %c0_i32_0 : i32, i32
  }
  func.func @transform_4(%arg0: i32) -> (i32, i32) {
    %c0_i32 = arith.constant 0 : i32
    %c0_i32_0 = arith.constant 0 : i32
    %c0_i32_1 = arith.constant 0 : i32
    return %c0_i32, %c0_i32_0 : i32, i32
  }
  func.func @transform_5(%arg0: i32) -> (i32, i32) {
    %c0_i32 = arith.constant 0 : i32
    %c0_i32_0 = arith.constant 0 : i32
    return %arg0, %c0_i32 : i32, i32
  }
}

</mosaic_0001>

<llo_original>
// kernel: tpu_custom_call.1
$region0: #{tpu_custom_call.1}
  #allocation0 [shape = 'u32[]', space=smem, size = 0x4, offset = 0x4, fixed_abs, tag = 'smem constant byte address 0x4 - core index']
  #allocation1 [shape = 'u32[144,128]{1,0:T(1,128)}', space=vmem, size = 0x12000, scoped, tag = 'internal scratch']
  %s0 = inlined_call_operand.hbm [shape: bf16[4608,128], index: 0, kind: input, shape index: {}]
  %s1 = inlined_call_operand.hbm [shape: bf16[128,128], index: 1, kind: input, shape index: {}]
  %s2 = inlined_call_operand.hbm [shape: f32[1,128], index: 2, kind: input, shape index: {}]
  %s3 = inlined_call_operand.hbm [shape: bf16[128,256], index: 3, kind: input, shape index: {}]
  %s4 = inlined_call_operand.hbm [shape: f32[1,256], index: 4, kind: input, shape index: {}]
  %s5 = inlined_call_operand.hbm [shape: f32[48,256], index: 5, kind: output, shape index: {}]
  %s6 = sld [smem:[#allocation0]]
  $region73: #{tpu_custom_call.1} parent=0
    _
  %s8 = ssub.s32 1, %s6
  %s9 = scalar_select 0, %s8, %s6
  $region1: #{tpu_custom_call.1} parent=0
    #allocation2 [shape = 'u8[1179648]{0}', space=vmem, size = 0x120000, scoped, tag = 'input window, operand 0']
    #allocation3 [shape = 's32[2]{0}', space=sflag, size = 0x8, scoped, tag = 'scoped memory for tpu_custom_call.1']
    #allocation4 [shape = 's32[2]{0}', space=sflag, size = 0x8, scoped, tag = 'scoped memory for tpu_custom_call.1']
    #allocation5 [shape = 'u8[32768]{0}', space=vmem, size = 0x8000, scoped, tag = 'input window, operand 1, single buffered']
    #allocation6 [shape = 's32[1]{0}', space=sflag, size = 0x4, scoped, tag = 'scoped memory for tpu_custom_call.1']
    #allocation7 [shape = 'u8[512]{0}', space=vmem, size = 0x400, scoped, tag = 'input window, operand 2, single buffered']
    #allocation8 [shape = 'u8[65536]{0}', space=vmem, size = 0x10000, scoped, tag = 'input window, operand 3, single buffered']
    #allocation9 [shape = 's32[1]{0}', space=sflag, size = 0x4, scoped, tag = 'scoped memory for tpu_custom_call.1']
    #allocation10 [shape = 'u8[1024]{0}', space=vmem, size = 0x400, scoped, tag = 'input window, operand 4, single buffered']
    #allocation11 [shape = 'u8[49152]{0}', space=vmem, size = 0xc000, scoped, tag = 'output window, operand 0']
    %10 = vsyncpa [#allocation3], 0
    %s11 = scalar_lea.sflag [#allocation3], 1
    %12 = vsyncpa %s11, 0
    %13 = vsyncpa [#allocation6], 0
    %14 = vsyncpa [#allocation9], 0
    %15 = vsyncpa [#allocation4], 0
    %s16 = scalar_lea.sflag [#allocation4], 1
    %17 = vsyncpa %s16, 0
    loop: start=0, step=1, limit=4
    $region2: #{tpu_custom_call.1} parent=1 // loop_pre_header
      _
    $region3: #{tpu_custom_call.1} parent=1 // loop_header
      %s19 = sphi 0, %s23
      %p20 = scmp.ge.s32.totalorder %s19, 4
      %s29 = sphi 0, %s31
      %s32 = sphi 0, %s29
      %s33 = sphi 0, %s32
      %s49 = sphi 0, %s33
      %s53 = sphi 0, %s53
      %s55 = sphi 0, %s53
      %s56 = sphi 0, %s55
      %s70 = sphi 0, %s56
      %s74 = sphi 0, %s74
      %s76 = sphi 0, %s74
      %s77 = sphi 0, %s76
      %s91 = sphi 0, %s77
      %s95 = sphi 0, %s95
      %s97 = sphi 0, %s95
      %s98 = sphi 0, %s97
      %s112 = sphi 0, %s98
      %s116 = sphi 0, %s116
      %s118 = sphi 0, %s116
      %s119 = sphi 0, %s118
      %s133 = sphi 0, %s119
      %s139 = sphi 0, %s141
      %s142 = sphi 0, %s139
      %s143 = sphi 0, %s142
      %s159 = sphi 0, %s143
    $region4: #{tpu_custom_call.1} parent=1 // loop_header_branch
      %22 = sbr.rel (%p20) target = $region8
    $region5: #{tpu_custom_call.1} parent=1 // loop_body
      %s24 = ssub.s32 %s19, 1
      %s25 = ssub.s32 %s19, 2
      %s26 = sadd.s32 %s19, 1
      %s27 = ssub.s32 %s19, %s26
      %p28 = scmp.eq.s32.totalorder %s27, 0
      %s30 = sadd.s32 %s29, 1
      %s31 = scalar_select %p28, %s29, %s30
      %p34 = pneg %p28
      %p35 = scmp.eq.s32.totalorder %s19, 1
      %p36 = por %p34, %p35
      %p37 = scmp.ne.s32.totalorder %s29, %s32
      %p38 = scmp.eq.s32.totalorder %s19, 0
      %p39 = por %p37, %p38
      %p40 = scmp.ne.s32.totalorder %s29, %s32
      %p41 = scmp.eq.s32.totalorder %s24, 1
      %p42 = por %p40, %p41
      %p43 = scmp.ne.s32.totalorder %s32, %s33
      %p44 = scmp.eq.s32.totalorder %s24, 0
      %p45 = por %p43, %p44
      %p46 = scmp.ne.s32.totalorder %s32, %s33
      %p47 = scmp.eq.s32.totalorder %s25, 1
      %p48 = por %p46, %p47
      %p50 = scmp.ne.s32.totalorder %s33, %s49
      %p51 = scmp.eq.s32.totalorder %s25, 0
      %p52 = por %p50, %p51
      %s54 = sadd.s32 %s53, 1
      %p57 = scmp.eq.s32.totalorder %s19, 1
      %p58 = scmp.ne.s32.totalorder %s53, %s55
      %p59 = scmp.eq.s32.totalorder %s19, 0
      %p60 = por %p58, %p59
      %p61 = scmp.ne.s32.totalorder %s53, %s55
      %p62 = scmp.eq.s32.totalorder %s24, 1
      %p63 = por %p61, %p62
      %p64 = scmp.ne.s32.totalorder %s55, %s56
      %p65 = scmp.eq.s32.totalorder %s24, 0
      %p66 = por %p64, %p65
      %p67 = scmp.ne.s32.totalorder %s55, %s56
      %p68 = scmp.eq.s32.totalorder %s25, 1
      %p69 = por %p67, %p68
      %p71 = scmp.ne.s32.totalorder %s56, %s70
      %p72 = scmp.eq.s32.totalorder %s25, 0
      %p73 = por %p71, %p72
      %s75 = sadd.s32 %s74, 1
      %p78 = scmp.eq.s32.totalorder %s19, 1
      %p79 = scmp.ne.s32.totalorder %s74, %s76
      %p80 = scmp.eq.s32.totalorder %s19, 0
      %p81 = por %p79, %p80
      %p82 = scmp.ne.s32.totalorder %s74, %s76
      %p83 = scmp.eq.s32.totalorder %s24, 1
      %p84 = por %p82, %p83
      %p85 = scmp.ne.s32.totalorder %s76, %s77
      %p86 = scmp.eq.s32.totalorder %s24, 0
      %p87 = por %p85, %p86
      %p88 = scmp.ne.s32.totalorder %s76, %s77
      %p89 = scmp.eq.s32.totalorder %s25, 1
      %p90 = por %p88, %p89
      %p92 = scmp.ne.s32.totalorder %s77, %s91
      %p93 = scmp.eq.s32.totalorder %s25, 0
      %p94 = por %p92, %p93
      %s96 = sadd.s32 %s95, 1
      %p99 = scmp.eq.s32.totalorder %s19, 1
      %p100 = scmp.ne.s32.totalorder %s95, %s97
      %p101 = scmp.eq.s32.totalorder %s19, 0
      %p102 = por %p100, %p101
      %p103 = scmp.ne.s32.totalorder %s95, %s97
      %p104 = scmp.eq.s32.totalorder %s24, 1
      %p105 = por %p103, %p104
      %p106 = scmp.ne.s32.totalorder %s97, %s98
      %p107 = scmp.eq.s32.totalorder %s24, 0
      %p108 = por %p106, %p107
      %p109 = scmp.ne.s32.totalorder %s97, %s98
      %p110 = scmp.eq.s32.totalorder %s25, 1
      %p111 = por %p109, %p110
      %p113 = scmp.ne.s32.totalorder %s98, %s112
      %p114 = scmp.eq.s32.totalorder %s25, 0
      %p115 = por %p113, %p114
      %s117 = sadd.s32 %s116, 1
      %p120 = scmp.eq.s32.totalorder %s19, 1
      %p121 = scmp.ne.s32.totalorder %s116, %s118
      %p122 = scmp.eq.s32.totalorder %s19, 0
      %p123 = por %p121, %p122
      %p124 = scmp.ne.s32.totalorder %s116, %s118
      %p125 = scmp.eq.s32.totalorder %s24, 1
      %p126 = por %p124, %p125
      %p127 = scmp.ne.s32.totalorder %s118, %s119
      %p128 = scmp.eq.s32.totalorder %s24, 0
      %p129 = por %p127, %p128
      %p130 = scmp.ne.s32.totalorder %s118, %s119
      %p131 = scmp.eq.s32.totalorder %s25, 1
      %p132 = por %p130, %p131
      %p134 = scmp.ne.s32.totalorder %s119, %s133
      %p135 = scmp.eq.s32.totalorder %s25, 0
      %p136 = por %p134, %p135
      %s137 = ssub.s32 %s19, %s26
      %p138 = scmp.eq.s32.totalorder %s137, 0
      %s140 = sadd.s32 %s139, 1
      %s141 = scalar_select %p138, %s139, %s140
      %p144 = pneg %p138
      %p145 = scmp.eq.s32.totalorder %s19, 1
      %p146 = por %p144, %p145
      %p147 = scmp.ne.s32.totalorder %s139, %s142
      %p148 = scmp.eq.s32.totalorder %s19, 0
      %p149 = por %p147, %p148
      %p150 = scmp.ne.s32.totalorder %s139, %s142
      %p151 = scmp.eq.s32.totalorder %s24, 1
      %p152 = por %p150, %p151
      %p153 = scmp.ne.s32.totalorder %s142, %s143
      %p154 = scmp.eq.s32.totalorder %s24, 0
      %p155 = por %p153, %p154
      %p156 = scmp.ne.s32.totalorder %s142, %s143
      %p157 = scmp.eq.s32.totalorder %s25, 1
      %p158 = por %p156, %p157
      %p160 = scmp.ne.s32.totalorder %s143, %s159
      %p161 = scmp.eq.s32.totalorder %s25, 0
      %p162 = por %p160, %p161
      %p163 = scmp.le.s32.totalorder 1, %s19
      %p164 = scmp.lt.s32.totalorder %s19, 3
      %p165 = pnand %p163, %p164
      %p166 = pneg %p165
      // Predicated region
      $region9: #{tpu_custom_call.1} parent=5 // pred_check
        _
      $region10: #{tpu_custom_call.1} parent=5 // pred_check_branch
        %168 = sbr.rel (%p165) target = $region12
      $region11: #{tpu_custom_call.1} parent=5 // pred_region
        %s169 = ssub.s32 %s19, 1
        // Predicated region
        $region13: #{tpu_custom_call.1} parent=11 // pred_check
          %p170 = pneg %p66
        $region14: #{tpu_custom_call.1} parent=11 // pred_check_branch
          %172 = sbr.rel (%p170) target = $region16
        $region15: #{tpu_custom_call.1} parent=11 // pred_region
          %s174 = ssub.s32 1024, 1024
          %175 = vsyncadd [#allocation6], %s174
          %s176 = sshll.u32 [#allocation5], 4
          %s177 = int_to_ptr.vmem [resolvable:$true] %s176
          %182 = dma.hbm_to_vmem [thread:$0]  %s1, 1024, %s177, [#allocation6], 64, 64, 4
        $region16: #{tpu_custom_call.1} parent=11 // pred_fallthru
          _
        // Predicated region
        $region17: #{tpu_custom_call.1} parent=11 // pred_check
          %p183 = pneg %p87
        $region18: #{tpu_custom_call.1} parent=11 // pred_check_branch
          %185 = sbr.rel (%p183) target = $region20
        $region19: #{tpu_custom_call.1} parent=11 // pred_region
          %s187 = ssub.s32 16, 16
          %188 = vsyncadd [#allocation6], %s187
          %s190 = sshll.u32 [#allocation7], 4
          %s191 = int_to_ptr.vmem [resolvable:$true] %s190
          %193 = dma.hbm_to_vmem [thread:$0]  %s2, 16, %s191, [#allocation6]
        $region20: #{tpu_custom_call.1} parent=11 // pred_fallthru
          _
        // Predicated region
        $region21: #{tpu_custom_call.1} parent=11 // pred_check
          %p194 = pneg %p108
        $region22: #{tpu_custom_call.1} parent=11 // pred_check_branch
          %196 = sbr.rel (%p194) target = $region24
        $region23: #{tpu_custom_call.1} parent=11 // pred_region
          %s198 = ssub.s32 2048, 2048
          %199 = vsyncadd [#allocation9], %s198
          %s200 = sshll.u32 [#allocation8], 4
          %s201 = int_to_ptr.vmem [resolvable:$true] %s200
          %206 = dma.hbm_to_vmem [thread:$0]  %s3, 2048, %s201, [#allocation9], 128, 128, 8
        $region24: #{tpu_custom_call.1} parent=11 // pred_fallthru
          _
        // Predicated region
        $region25: #{tpu_custom_call.1} parent=11 // pred_check
          %p207 = pneg %p129
        $region26: #{tpu_custom_call.1} parent=11 // pred_check_branch
          %209 = sbr.rel (%p207) target = $region28
        $region27: #{tpu_custom_call.1} parent=11 // pred_region
          %s211 = ssub.s32 32, 32
          %212 = vsyncadd [#allocation9], %s211
          %s214 = sshll.u32 [#allocation10], 4
          %s215 = int_to_ptr.vmem [resolvable:$true] %s214
          %217 = dma.hbm_to_vmem [thread:$0]  %s4, 32, %s215, [#allocation9]
        $region28: #{tpu_custom_call.1} parent=11 // pred_fallthru
          _
      $region12: #{tpu_custom_call.1} parent=5 // pred_fallthru
        _
      %p218 = scmp.lt.s32.totalorder %s19, 2
      // Predicated region
      $region29: #{tpu_custom_call.1} parent=5 // pred_check
        %p219 = pneg %p218
      $region30: #{tpu_custom_call.1} parent=5 // pred_check_branch
        %221 = sbr.rel (%p219) target = $region32
      $region31: #{tpu_custom_call.1} parent=5 // pred_region
        // Predicated region
        $region33: #{tpu_custom_call.1} parent=31 // pred_check
          %p222 = pneg %p39
        $region34: #{tpu_custom_call.1} parent=31 // pred_check_branch
          %224 = sbr.rel (%p222) target = $region36
        $region35: #{tpu_custom_call.1} parent=31 // pred_region
          %s225 = sand.u32 %s29, 1
          %s226 = scalar_lea.sflag [#allocation3], %s225
          %s227 = sand.u32 %s29, 1
          %s228 = smul.addr %s227, 1152
          %s229 = scalar_lea.vmem [#allocation2], %s228
          %s230 = smul.u32 288, %s19
          %s232 = ssub.s32 18432, 18432
          %233 = vsyncadd %s226, %s232
          %s234 = smul.addr %s230, 64
          %s235 = scalar_lea.hbm %s0, %s234
          %s236 = sshll.u32 %s229, 4
          %s237 = int_to_ptr.vmem [resolvable:$true] %s236
          %242 = dma.hbm_to_vmem [thread:$0]  %s235, 18432, %s237, %s226, 64, 64, 4
        $region36: #{tpu_custom_call.1} parent=31 // pred_fallthru
          _
      $region32: #{tpu_custom_call.1} parent=5 // pred_fallthru
        _
      %p243 = scmp.le.s32.totalorder 1, %s19
      %p244 = scmp.lt.s32.totalorder %s19, 3
      %p245 = pnand %p243, %p244
      %p246 = pneg %p245
      // Predicated region
      $region37: #{tpu_custom_call.1} parent=5 // pred_check
        _
      $region38: #{tpu_custom_call.1} parent=5 // pred_check_branch
        %248 = sbr.rel (%p245) target = $region40
      $region39: #{tpu_custom_call.1} parent=5 // pred_region
        %s249 = ssub.s32 %s19, 1
        %s250 = sand.u32 %s32, 1
        %s251 = scalar_lea.sflag [#allocation3], %s250
        %s252 = sand.u32 %s32, 1
        %s253 = smul.addr %s252, 1152
        %s254 = scalar_lea.vmem [#allocation2], %s253
        // Predicated region
        $region41: #{tpu_custom_call.1} parent=39 // pred_check
          %p255 = pneg %p45
        $region42: #{tpu_custom_call.1} parent=39 // pred_check_branch
          %257 = sbr.rel (%p255) target = $region44
        $region43: #{tpu_custom_call.1} parent=39 // pred_region
          %258 = dma.done %s251, 18432
        $region44: #{tpu_custom_call.1} parent=39 // pred_fallthru
          _
        // Predicated region
        $region45: #{tpu_custom_call.1} parent=39 // pred_check
          %p259 = pneg %p66
        $region46: #{tpu_custom_call.1} parent=39 // pred_check_branch
          %261 = sbr.rel (%p259) target = $region48
        $region47: #{tpu_custom_call.1} parent=39 // pred_region
          %262 = dma.done [#allocation6], 1024
        $region48: #{tpu_custom_call.1} parent=39 // pred_fallthru
          _
        // Predicated region
        $region49: #{tpu_custom_call.1} parent=39 // pred_check
          %p263 = pneg %p87
        $region50: #{tpu_custom_call.1} parent=39 // pred_check_branch
          %265 = sbr.rel (%p263) target = $region52
        $region51: #{tpu_custom_call.1} parent=39 // pred_region
          %266 = dma.done [#allocation6], 16
        $region52: #{tpu_custom_call.1} parent=39 // pred_fallthru
          _
        // Predicated region
        $region53: #{tpu_custom_call.1} parent=39 // pred_check
          %p267 = pneg %p108
        $region54: #{tpu_custom_call.1} parent=39 // pred_check_branch
          %269 = sbr.rel (%p267) target = $region56
        $region55: #{tpu_custom_call.1} parent=39 // pred_region
          %270 = dma.done [#allocation9], 2048
        $region56: #{tpu_custom_call.1} parent=39 // pred_fallthru
          _
        // Predicated region
        $region57: #{tpu_custom_call.1} parent=39 // pred_check
          %p271 = pneg %p129
        $region58: #{tpu_custom_call.1} parent=39 // pred_check_branch
          %273 = sbr.rel (%p271) target = $region60
        $region59: #{tpu_custom_call.1} parent=39 // pred_region
          %274 = dma.done [#allocation9], 32
        $region60: #{tpu_custom_call.1} parent=39 // pred_fallthru
          _
        %s275 = sand.u32 %s32, 1
        %s276 = scalar_lea.sflag [#allocation3], %s275
        %s277 = sand.u32 %s32, 1
        %s278 = smul.addr %s277, 1152
        %s279 = scalar_lea.vmem [#allocation2], %s278
        %p280 = pneg %p45
        %p281 = pneg %p42
        %p282 = pneg %p66
        %p283 = pneg %p63
        %p284 = pneg %p87
        %p285 = pneg %p84
        %p286 = pneg %p108
        %p287 = pneg %p105
        %p288 = pneg %p129
        %p289 = pneg %p126
        %p290 = pneg %p155
        %p291 = pneg %p152
        %s292 = sand.u32 %s142, 1
        %s293 = scalar_lea.sflag [#allocation4], %s292
        %s294 = sand.u32 %s142, 1
        %s295 = smul.addr %s294, 48
        %s296 = scalar_lea.vmem [#allocation11], %s295
        %s297 = smul.u32 288, %s24
        %s298 = smul.u32 3, %s24
        %v300 = vld [vmem:[%s254] sm:$0xf]
        %v301 = vld [vmem:[%s254 + $0x4] sm:$0xf]
        %v302 = vld [vmem:[%s254 + $0x8] sm:$0xf]
        %v303 = vld [vmem:[%s254 + $0xc] sm:$0xf]
        %v304 = vld [vmem:[%s254 + $0x10] sm:$0xf]
        %v305 = vld [vmem:[%s254 + $0x14] sm:$0xf]
        %v306 = vld [vmem:[%s254 + $0x18] sm:$0xf]
        %v307 = vld [vmem:[%s254 + $0x1c] sm:$0xf]
        %v308 = vld [vmem:[%s254 + $0x20] sm:$0xf]
        %v309 = vld [vmem:[%s254 + $0x24] sm:$0xf]
        %v310 = vld [vmem:[%s254 + $0x28] sm:$0xf]
        %v311 = vld [vmem:[%s254 + $0x2c] sm:$0xf]
        %v312 = vld [vmem:[%s254 + $0x30] sm:$0xf]
        %v313 = vld [vmem:[%s254 + $0x34] sm:$0xf]
        %v314 = vld [vmem:[%s254 + $0x38] sm:$0xf]
        %v315 = vld [vmem:[%s254 + $0x3c] sm:$0xf]
        %v316 = vld [vmem:[%s254 + $0x40] sm:$0xf]
        %v317 = vld [vmem:[%s254 + $0x44] sm:$0xf]
        %v318 = vld [vmem:[%s254 + $0x48] sm:$0xf]
        %v319 = vld [vmem:[%s254 + $0x4c] sm:$0xf]
        %v320 = vld [vmem:[%s254 + $0x50] sm:$0xf]
        %v321 = vld [vmem:[%s254 + $0x54] sm:$0xf]
        %v322 = vld [vmem:[%s254 + $0x58] sm:$0xf]
        %v323 = vld [vmem:[%s254 + $0x5c] sm:$0xf]
        %v324 = vld [vmem:[%s254 + $0x60] sm:$0xf]
        %v325 = vld [vmem:[%s254 + $0x64] sm:$0xf]
        %v326 = vld [vmem:[%s254 + $0x68] sm:$0xf]
        %v327 = vld [vmem:[%s254 + $0x6c] sm:$0xf]
        %v328 = vld [vmem:[%s254 + $0x70] sm:$0xf]
        %v329 = vld [vmem:[%s254 + $0x74] sm:$0xf]
        %v330 = vld [vmem:[%s254 + $0x78] sm:$0xf]
        %v331 = vld [vmem:[%s254 + $0x7c] sm:$0xf]
        %v332 = vld [vmem:[%s254 + $0x80] sm:$0xf]
        %v333 = vld [vmem:[%s254 + $0x84] sm:$0xf]
        %v334 = vld [vmem:[%s254 + $0x88] sm:$0xf]
        %v335 = vld [vmem:[%s254 + $0x8c] sm:$0xf]
        %v336 = vld [vmem:[%s254 + $0x90] sm:$0xf]
        %v337 = vld [vmem:[%s254 + $0x94] sm:$0xf]
        %v338 = vld [vmem:[%s254 + $0x98] sm:$0xf]
        %v339 = vld [vmem:[%s254 + $0x9c] sm:$0xf]
        %v340 = vld [vmem:[%s254 + $0xa0] sm:$0xf]
        %v341 = vld [vmem:[%s254 + $0xa4] sm:$0xf]
        %v342 = vld [vmem:[%s254 + $0xa8] sm:$0xf]
        %v343 = vld [vmem:[%s254 + $0xac] sm:$0xf]
        %v344 = vld [vmem:[%s254 + $0xb0] sm:$0xf]
        %v345 = vld [vmem:[%s254 + $0xb4] sm:$0xf]
        %v346 = vld [vmem:[%s254 + $0xb8] sm:$0xf]
        %v347 = vld [vmem:[%s254 + $0xbc] sm:$0xf]
        %v348 = vld [vmem:[%s254 + $0xc0] sm:$0xf]
        %v349 = vld [vmem:[%s254 + $0xc4] sm:$0xf]
        %v350 = vld [vmem:[%s254 + $0xc8] sm:$0xf]
        %v351 = vld [vmem:[%s254 + $0xcc] sm:$0xf]
        %v352 = vld [vmem:[%s254 + $0xd0] sm:$0xf]
        %v353 = vld [vmem:[%s254 + $0xd4] sm:$0xf]
        %v354 = vld [vmem:[%s254 + $0xd8] sm:$0xf]
        %v355 = vld [vmem:[%s254 + $0xdc] sm:$0xf]
        %v356 = vld [vmem:[%s254 + $0xe0] sm:$0xf]
        %v357 = vld [vmem:[%s254 + $0xe4] sm:$0xf]
        %v358 = vld [vmem:[%s254 + $0xe8] sm:$0xf]
        %v359 = vld [vmem:[%s254 + $0xec] sm:$0xf]
        %v360 = vld [vmem:[%s254 + $0xf0] sm:$0xf]
        %v361 = vld [vmem:[%s254 + $0xf4] sm:$0xf]
        %v362 = vld [vmem:[%s254 + $0xf8] sm:$0xf]
        %v363 = vld [vmem:[%s254 + $0xfc] sm:$0xf]
        %v364 = vld [vmem:[%s254 + $0x100] sm:$0xf]
        %v365 = vld [vmem:[%s254 + $0x104] sm:$0xf]
        %v366 = vld [vmem:[%s254 + $0x108] sm:$0xf]
        %v367 = vld [vmem:[%s254 + $0x10c] sm:$0xf]
        %v368 = vld [vmem:[%s254 + $0x110] sm:$0xf]
        %v369 = vld [vmem:[%s254 + $0x114] sm:$0xf]
        %v370 = vld [vmem:[%s254 + $0x118] sm:$0xf]
        %v371 = vld [vmem:[%s254 + $0x11c] sm:$0xf]
        %v372 = vld [vmem:[%s254 + $0x120] sm:$0xf]
        %v373 = vld [vmem:[%s254 + $0x124] sm:$0xf]
        %v374 = vld [vmem:[%s254 + $0x128] sm:$0xf]
        %v375 = vld [vmem:[%s254 + $0x12c] sm:$0xf]
        %v376 = vld [vmem:[%s254 + $0x130] sm:$0xf]
        %v377 = vld [vmem:[%s254 + $0x134] sm:$0xf]
        %v378 = vld [vmem:[%s254 + $0x138] sm:$0xf]
        %v379 = vld [vmem:[%s254 + $0x13c] sm:$0xf]
        %v380 = vld [vmem:[%s254 + $0x140] sm:$0xf]
        %v381 = vld [vmem:[%s254 + $0x144] sm:$0xf]
        %v382 = vld [vmem:[%s254 + $0x148] sm:$0xf]
        %v383 = vld [vmem:[%s254 + $0x14c] sm:$0xf]
        %v384 = vld [vmem:[%s254 + $0x150] sm:$0xf]
        %v385 = vld [vmem:[%s254 + $0x154] sm:$0xf]
        %v386 = vld [vmem:[%s254 + $0x158] sm:$0xf]
        %v387 = vld [vmem:[%s254 + $0x15c] sm:$0xf]
        %v388 = vld [vmem:[%s254 + $0x160] sm:$0xf]
        %v389 = vld [vmem:[%s254 + $0x164] sm:$0xf]
        %v390 = vld [vmem:[%s254 + $0x168] sm:$0xf]
        %v391 = vld [vmem:[%s254 + $0x16c] sm:$0xf]
        %v392 = vld [vmem:[%s254 + $0x170] sm:$0xf]
        %v393 = vld [vmem:[%s254 + $0x174] sm:$0xf]
        %v394 = vld [vmem:[%s254 + $0x178] sm:$0xf]
        %v395 = vld [vmem:[%s254 + $0x17c] sm:$0xf]
        %v396 = vld [vmem:[%s254 + $0x180] sm:$0xf]
        %v397 = vld [vmem:[%s254 + $0x184] sm:$0xf]
        %v398 = vld [vmem:[%s254 + $0x188] sm:$0xf]
        %v399 = vld [vmem:[%s254 + $0x18c] sm:$0xf]
        %v400 = vld [vmem:[%s254 + $0x190] sm:$0xf]
        %v401 = vld [vmem:[%s254 + $0x194] sm:$0xf]
        %v402 = vld [vmem:[%s254 + $0x198] sm:$0xf]
        %v403 = vld [vmem:[%s254 + $0x19c] sm:$0xf]
        %v404 = vld [vmem:[%s254 + $0x1a0] sm:$0xf]
        %v405 = vld [vmem:[%s254 + $0x1a4] sm:$0xf]
        %v406 = vld [vmem:[%s254 + $0x1a8] sm:$0xf]
        %v407 = vld [vmem:[%s254 + $0x1ac] sm:$0xf]
        %v408 = vld [vmem:[%s254 + $0x1b0] sm:$0xf]
        %v409 = vld [vmem:[%s254 + $0x1b4] sm:$0xf]
        %v410 = vld [vmem:[%s254 + $0x1b8] sm:$0xf]
        %v411 = vld [vmem:[%s254 + $0x1bc] sm:$0xf]
        %v412 = vld [vmem:[%s254 + $0x1c0] sm:$0xf]
        %v413 = vld [vmem:[%s254 + $0x1c4] sm:$0xf]
        %v414 = vld [vmem:[%s254 + $0x1c8] sm:$0xf]
        %v415 = vld [vmem:[%s254 + $0x1cc] sm:$0xf]
        %v416 = vld [vmem:[%s254 + $0x1d0] sm:$0xf]
        %v417 = vld [vmem:[%s254 + $0x1d4] sm:$0xf]
        %v418 = vld [vmem:[%s254 + $0x1d8] sm:$0xf]
        %v419 = vld [vmem:[%s254 + $0x1dc] sm:$0xf]
        %v420 = vld [vmem:[%s254 + $0x1e0] sm:$0xf]
        %v421 = vld [vmem:[%s254 + $0x1e4] sm:$0xf]
        %v422 = vld [vmem:[%s254 + $0x1e8] sm:$0xf]
        %v423 = vld [vmem:[%s254 + $0x1ec] sm:$0xf]
        %v424 = vld [vmem:[%s254 + $0x1f0] sm:$0xf]
        %v425 = vld [vmem:[%s254 + $0x1f4] sm:$0xf]
        %v426 = vld [vmem:[%s254 + $0x1f8] sm:$0xf]
        %v427 = vld [vmem:[%s254 + $0x1fc] sm:$0xf]
        %v428 = vld [vmem:[%s254 + $0x200] sm:$0xf]
        %v429 = vld [vmem:[%s254 + $0x204] sm:$0xf]
        %v430 = vld [vmem:[%s254 + $0x208] sm:$0xf]
        %v431 = vld [vmem:[%s254 + $0x20c] sm:$0xf]
        %v432 = vld [vmem:[%s254 + $0x210] sm:$0xf]
        %v433 = vld [vmem:[%s254 + $0x214] sm:$0xf]
        %v434 = vld [vmem:[%s254 + $0x218] sm:$0xf]
        %v435 = vld [vmem:[%s254 + $0x21c] sm:$0xf]
        %v436 = vld [vmem:[%s254 + $0x220] sm:$0xf]
        %v437 = vld [vmem:[%s254 + $0x224] sm:$0xf]
        %v438 = vld [vmem:[%s254 + $0x228] sm:$0xf]
        %v439 = vld [vmem:[%s254 + $0x22c] sm:$0xf]
        %v440 = vld [vmem:[%s254 + $0x230] sm:$0xf]
        %v441 = vld [vmem:[%s254 + $0x234] sm:$0xf]
        %v442 = vld [vmem:[%s254 + $0x238] sm:$0xf]
        %v443 = vld [vmem:[%s254 + $0x23c] sm:$0xf]
        %v444 = vld [vmem:[%s254 + $0x240] sm:$0xf]
        %v445 = vld [vmem:[%s254 + $0x244] sm:$0xf]
        %v446 = vld [vmem:[%s254 + $0x248] sm:$0xf]
        %v447 = vld [vmem:[%s254 + $0x24c] sm:$0xf]
        %v448 = vld [vmem:[%s254 + $0x250] sm:$0xf]
        %v449 = vld [vmem:[%s254 + $0x254] sm:$0xf]
        %v450 = vld [vmem:[%s254 + $0x258] sm:$0xf]
        %v451 = vld [vmem:[%s254 + $0x25c] sm:$0xf]
        %v452 = vld [vmem:[%s254 + $0x260] sm:$0xf]
        %v453 = vld [vmem:[%s254 + $0x264] sm:$0xf]
        %v454 = vld [vmem:[%s254 + $0x268] sm:$0xf]
        %v455 = vld [vmem:[%s254 + $0x26c] sm:$0xf]
        %v456 = vld [vmem:[%s254 + $0x270] sm:$0xf]
        %v457 = vld [vmem:[%s254 + $0x274] sm:$0xf]
        %v458 = vld [vmem:[%s254 + $0x278] sm:$0xf]
        %v459 = vld [vmem:[%s254 + $0x27c] sm:$0xf]
        %v460 = vld [vmem:[%s254 + $0x280] sm:$0xf]
        %v461 = vld [vmem:[%s254 + $0x284] sm:$0xf]
        %v462 = vld [vmem:[%s254 + $0x288] sm:$0xf]
        %v463 = vld [vmem:[%s254 + $0x28c] sm:$0xf]
        %v464 = vld [vmem:[%s254 + $0x290] sm:$0xf]
        %v465 = vld [vmem:[%s254 + $0x294] sm:$0xf]
        %v466 = vld [vmem:[%s254 + $0x298] sm:$0xf]
        %v467 = vld [vmem:[%s254 + $0x29c] sm:$0xf]
        %v468 = vld [vmem:[%s254 + $0x2a0] sm:$0xf]
        %v469 = vld [vmem:[%s254 + $0x2a4] sm:$0xf]
        %v470 = vld [vmem:[%s254 + $0x2a8] sm:$0xf]
        %v471 = vld [vmem:[%s254 + $0x2ac] sm:$0xf]
        %v472 = vld [vmem:[%s254 + $0x2b0] sm:$0xf]
        %v473 = vld [vmem:[%s254 + $0x2b4] sm:$0xf]
        %v474 = vld [vmem:[%s254 + $0x2b8] sm:$0xf]
        %v475 = vld [vmem:[%s254 + $0x2bc] sm:$0xf]
        %v476 = vld [vmem:[%s254 + $0x2c0] sm:$0xf]
        %v477 = vld [vmem:[%s254 + $0x2c4] sm:$0xf]
        %v478 = vld [vmem:[%s254 + $0x2c8] sm:$0xf]
        %v479 = vld [vmem:[%s254 + $0x2cc] sm:$0xf]
        %v480 = vld [vmem:[%s254 + $0x2d0] sm:$0xf]
        %v481 = vld [vmem:[%s254 + $0x2d4] sm:$0xf]
        %v482 = vld [vmem:[%s254 + $0x2d8] sm:$0xf]
        %v483 = vld [vmem:[%s254 + $0x2dc] sm:$0xf]
        %v484 = vld [vmem:[%s254 + $0x2e0] sm:$0xf]
        %v485 = vld [vmem:[%s254 + $0x2e4] sm:$0xf]
        %v486 = vld [vmem:[%s254 + $0x2e8] sm:$0xf]
        %v487 = vld [vmem:[%s254 + $0x2ec] sm:$0xf]
        %v488 = vld [vmem:[%s254 + $0x2f0] sm:$0xf]
        %v489 = vld [vmem:[%s254 + $0x2f4] sm:$0xf]
        %v490 = vld [vmem:[%s254 + $0x2f8] sm:$0xf]
        %v491 = vld [vmem:[%s254 + $0x2fc] sm:$0xf]
        %v492 = vld [vmem:[%s254 + $0x300] sm:$0xf]
        %v493 = vld [vmem:[%s254 + $0x304] sm:$0xf]
        %v494 = vld [vmem:[%s254 + $0x308] sm:$0xf]
        %v495 = vld [vmem:[%s254 + $0x30c] sm:$0xf]
        %v496 = vld [vmem:[%s254 + $0x310] sm:$0xf]
        %v497 = vld [vmem:[%s254 + $0x314] sm:$0xf]
        %v498 = vld [vmem:[%s254 + $0x318] sm:$0xf]
        %v499 = vld [vmem:[%s254 + $0x31c] sm:$0xf]
        %v500 = vld [vmem:[%s254 + $0x320] sm:$0xf]
        %v501 = vld [vmem:[%s254 + $0x324] sm:$0xf]
        %v502 = vld [vmem:[%s254 + $0x328] sm:$0xf]
        %v503 = vld [vmem:[%s254 + $0x32c] sm:$0xf]
        %v504 = vld [vmem:[%s254 + $0x330] sm:$0xf]
        %v505 = vld [vmem:[%s254 + $0x334] sm:$0xf]
        %v506 = vld [vmem:[%s254 + $0x338] sm:$0xf]
        %v507 = vld [vmem:[%s254 + $0x33c] sm:$0xf]
        %v508 = vld [vmem:[%s254 + $0x340] sm:$0xf]
        %v509 = vld [vmem:[%s254 + $0x344] sm:$0xf]
        %v510 = vld [vmem:[%s254 + $0x348] sm:$0xf]
        %v511 = vld [vmem:[%s254 + $0x34c] sm:$0xf]
        %v512 = vld [vmem:[%s254 + $0x350] sm:$0xf]
        %v513 = vld [vmem:[%s254 + $0x354] sm:$0xf]
        %v514 = vld [vmem:[%s254 + $0x358] sm:$0xf]
        %v515 = vld [vmem:[%s254 + $0x35c] sm:$0xf]
        %v516 = vld [vmem:[%s254 + $0x360] sm:$0xf]
        %v517 = vld [vmem:[%s254 + $0x364] sm:$0xf]
        %v518 = vld [vmem:[%s254 + $0x368] sm:$0xf]
        %v519 = vld [vmem:[%s254 + $0x36c] sm:$0xf]
        %v520 = vld [vmem:[%s254 + $0x370] sm:$0xf]
        %v521 = vld [vmem:[%s254 + $0x374] sm:$0xf]
        %v522 = vld [vmem:[%s254 + $0x378] sm:$0xf]
        %v523 = vld [vmem:[%s254 + $0x37c] sm:$0xf]
        %v524 = vld [vmem:[%s254 + $0x380] sm:$0xf]
        %v525 = vld [vmem:[%s254 + $0x384] sm:$0xf]
        %v526 = vld [vmem:[%s254 + $0x388] sm:$0xf]
        %v527 = vld [vmem:[%s254 + $0x38c] sm:$0xf]
        %v528 = vld [vmem:[%s254 + $0x390] sm:$0xf]
        %v529 = vld [vmem:[%s254 + $0x394] sm:$0xf]
        %v530 = vld [vmem:[%s254 + $0x398] sm:$0xf]
        %v531 = vld [vmem:[%s254 + $0x39c] sm:$0xf]
        %v532 = vld [vmem:[%s254 + $0x3a0] sm:$0xf]
        %v533 = vld [vmem:[%s254 + $0x3a4] sm:$0xf]
        %v534 = vld [vmem:[%s254 + $0x3a8] sm:$0xf]
        %v535 = vld [vmem:[%s254 + $0x3ac] sm:$0xf]
        %v536 = vld [vmem:[%s254 + $0x3b0] sm:$0xf]
        %v537 = vld [vmem:[%s254 + $0x3b4] sm:$0xf]
        %v538 = vld [vmem:[%s254 + $0x3b8] sm:$0xf]
        %v539 = vld [vmem:[%s254 + $0x3bc] sm:$0xf]
        %v540 = vld [vmem:[%s254 + $0x3c0] sm:$0xf]
        %v541 = vld [vmem:[%s254 + $0x3c4] sm:$0xf]
        %v542 = vld [vmem:[%s254 + $0x3c8] sm:$0xf]
        %v543 = vld [vmem:[%s254 + $0x3cc] sm:$0xf]
        %v544 = vld [vmem:[%s254 + $0x3d0] sm:$0xf]
        %v545 = vld [vmem:[%s254 + $0x3d4] sm:$0xf]
        %v546 = vld [vmem:[%s254 + $0x3d8] sm:$0xf]
        %v547 = vld [vmem:[%s254 + $0x3dc] sm:$0xf]
        %v548 = vld [vmem:[%s254 + $0x3e0] sm:$0xf]
        %v549 = vld [vmem:[%s254 + $0x3e4] sm:$0xf]
        %v550 = vld [vmem:[%s254 + $0x3e8] sm:$0xf]
        %v551 = vld [vmem:[%s254 + $0x3ec] sm:$0xf]
        %v552 = vld [vmem:[%s254 + $0x3f0] sm:$0xf]
        %v553 = vld [vmem:[%s254 + $0x3f4] sm:$0xf]
        %v554 = vld [vmem:[%s254 + $0x3f8] sm:$0xf]
        %v555 = vld [vmem:[%s254 + $0x3fc] sm:$0xf]
        %v556 = vld [vmem:[%s254 + $0x400] sm:$0xf]
        %v557 = vld [vmem:[%s254 + $0x404] sm:$0xf]
        %v558 = vld [vmem:[%s254 + $0x408] sm:$0xf]
        %v559 = vld [vmem:[%s254 + $0x40c] sm:$0xf]
        %v560 = vld [vmem:[%s254 + $0x410] sm:$0xf]
        %v561 = vld [vmem:[%s254 + $0x414] sm:$0xf]
        %v562 = vld [vmem:[%s254 + $0x418] sm:$0xf]
        %v563 = vld [vmem:[%s254 + $0x41c] sm:$0xf]
        %v564 = vld [vmem:[%s254 + $0x420] sm:$0xf]
        %v565 = vld [vmem:[%s254 + $0x424] sm:$0xf]
        %v566 = vld [vmem:[%s254 + $0x428] sm:$0xf]
        %v567 = vld [vmem:[%s254 + $0x42c] sm:$0xf]
        %v568 = vld [vmem:[%s254 + $0x430] sm:$0xf]
        %v569 = vld [vmem:[%s254 + $0x434] sm:$0xf]
        %v570 = vld [vmem:[%s254 + $0x438] sm:$0xf]
        %v571 = vld [vmem:[%s254 + $0x43c] sm:$0xf]
        %v572 = vld [vmem:[%s254 + $0x440] sm:$0xf]
        %v573 = vld [vmem:[%s254 + $0x444] sm:$0xf]
        %v574 = vld [vmem:[%s254 + $0x448] sm:$0xf]
        %v575 = vld [vmem:[%s254 + $0x44c] sm:$0xf]
        %v576 = vld [vmem:[%s254 + $0x450] sm:$0xf]
        %v577 = vld [vmem:[%s254 + $0x454] sm:$0xf]
        %v578 = vld [vmem:[%s254 + $0x458] sm:$0xf]
        %v579 = vld [vmem:[%s254 + $0x45c] sm:$0xf]
        %v580 = vld [vmem:[%s254 + $0x460] sm:$0xf]
        %v581 = vld [vmem:[%s254 + $0x464] sm:$0xf]
        %v582 = vld [vmem:[%s254 + $0x468] sm:$0xf]
        %v583 = vld [vmem:[%s254 + $0x46c] sm:$0xf]
        %v584 = vld [vmem:[%s254 + $0x470] sm:$0xf]
        %v585 = vld [vmem:[%s254 + $0x474] sm:$0xf]
        %v586 = vld [vmem:[%s254 + $0x478] sm:$0xf]
        %v587 = vld [vmem:[%s254 + $0x47c] sm:$0xf]
        %v588 = vld [vmem:[#allocation5] sm:$0xf]
        %v589 = vld [vmem:[#allocation5 + $0x4] sm:$0xf]
        %v590 = vld [vmem:[#allocation5 + $0x8] sm:$0xf]
        %v591 = vld [vmem:[#allocation5 + $0xc] sm:$0xf]
        %v592 = vld [vmem:[#allocation5 + $0x10] sm:$0xf]
        %v593 = vld [vmem:[#allocation5 + $0x14] sm:$0xf]
        %v594 = vld [vmem:[#allocation5 + $0x18] sm:$0xf]
        %v595 = vld [vmem:[#allocation5 + $0x1c] sm:$0xf]
        %v596 = vld [vmem:[#allocation5 + $0x20] sm:$0xf]
        %v597 = vld [vmem:[#allocation5 + $0x24] sm:$0xf]
        %v598 = vld [vmem:[#allocation5 + $0x28] sm:$0xf]
        %v599 = vld [vmem:[#allocation5 + $0x2c] sm:$0xf]
        %v600 = vld [vmem:[#allocation5 + $0x30] sm:$0xf]
        %v601 = vld [vmem:[#allocation5 + $0x34] sm:$0xf]
        %v602 = vld [vmem:[#allocation5 + $0x38] sm:$0xf]
        %v603 = vld [vmem:[#allocation5 + $0x3c] sm:$0xf]
        %v604 = vld [vmem:[#allocation7] sm:$0x1]
        %v606 = vlaneseq
        %v607 = vshrl.u32 %v606, 7
        %v608 = vsub.s32 0, %v607
        %v609 = vrot.slane %v604, %v608
        %v899 = vunpack.c.l.b16 %v300
        %v900 = vunpack.c.l.b16 %v301
        %v901 = vunpack.c.l.b16 %v302
        %v902 = vunpack.c.l.b16 %v303
        %v903 = vunpack.c.l.b16 %v304
        %v904 = vunpack.c.l.b16 %v305
        %v905 = vunpack.c.l.b16 %v306
        %v906 = vunpack.c.l.b16 %v307
        %v907 = vunpack.c.l.b16 %v308
        %v908 = vunpack.c.l.b16 %v309
        %v909 = vunpack.c.l.b16 %v310
        %v910 = vunpack.c.l.b16 %v311
        %v911 = vunpack.c.l.b16 %v312
        %v912 = vunpack.c.l.b16 %v313
        %v913 = vunpack.c.l.b16 %v314
        %v914 = vunpack.c.l.b16 %v315
        %v915 = vunpack.c.l.b16 %v316
        %v916 = vunpack.c.l.b16 %v317
        %v917 = vunpack.c.l.b16 %v318
        %v918 = vunpack.c.l.b16 %v319
        %v919 = vunpack.c.l.b16 %v320
        %v920 = vunpack.c.l.b16 %v321
        %v921 = vunpack.c.l.b16 %v322
        %v922 = vunpack.c.l.b16 %v323
        %v923 = vunpack.c.l.b16 %v324
        %v924 = vunpack.c.l.b16 %v325
        %v925 = vunpack.c.l.b16 %v326
        %v926 = vunpack.c.l.b16 %v327
        %v927 = vunpack.c.l.b16 %v328
        %v928 = vunpack.c.l.b16 %v329
        %v929 = vunpack.c.l.b16 %v330
        %v930 = vunpack.c.l.b16 %v331
        %v931 = vunpack.c.l.b16 %v332
        %v932 = vunpack.c.l.b16 %v333
        %v933 = vunpack.c.l.b16 %v334
        %v934 = vunpack.c.l.b16 %v335
        %v935 = vunpack.c.l.b16 %v336
        %v936 = vunpack.c.l.b16 %v337
        %v937 = vunpack.c.l.b16 %v338
        %v938 = vunpack.c.l.b16 %v339
        %v939 = vunpack.c.l.b16 %v340
        %v940 = vunpack.c.l.b16 %v341
        %v941 = vunpack.c.l.b16 %v342
        %v942 = vunpack.c.l.b16 %v343
        %v943 = vunpack.c.l.b16 %v344
        %v944 = vunpack.c.l.b16 %v345
        %v945 = vunpack.c.l.b16 %v346
        %v946 = vunpack.c.l.b16 %v347
        %v947 = vunpack.c.l.b16 %v348
        %v948 = vunpack.c.l.b16 %v349
        %v949 = vunpack.c.l.b16 %v350
        %v950 = vunpack.c.l.b16 %v351
        %v951 = vunpack.c.l.b16 %v352
        %v952 = vunpack.c.l.b16 %v353
        %v953 = vunpack.c.l.b16 %v354
        %v954 = vunpack.c.l.b16 %v355
        %v955 = vunpack.c.l.b16 %v356
        %v956 = vunpack.c.l.b16 %v357
        %v957 = vunpack.c.l.b16 %v358
        %v958 = vunpack.c.l.b16 %v359
        %v959 = vunpack.c.l.b16 %v360
        %v960 = vunpack.c.l.b16 %v361
        %v961 = vunpack.c.l.b16 %v362
        %v962 = vunpack.c.l.b16 %v363
        %v963 = vunpack.c.l.b16 %v364
        %v964 = vunpack.c.l.b16 %v365
        %v965 = vunpack.c.l.b16 %v366
        %v966 = vunpack.c.l.b16 %v367
        %v967 = vunpack.c.l.b16 %v368
        %v968 = vunpack.c.l.b16 %v369
        %v969 = vunpack.c.l.b16 %v370
        %v970 = vunpack.c.l.b16 %v371
        %v971 = vunpack.c.l.b16 %v372
        %v972 = vunpack.c.l.b16 %v373
        %v973 = vunpack.c.l.b16 %v374
        %v974 = vunpack.c.l.b16 %v375
        %v975 = vunpack.c.l.b16 %v376
        %v976 = vunpack.c.l.b16 %v377
        %v977 = vunpack.c.l.b16 %v378
        %v978 = vunpack.c.l.b16 %v379
        %v979 = vunpack.c.l.b16 %v380
        %v980 = vunpack.c.l.b16 %v381
        %v981 = vunpack.c.l.b16 %v382
        %v982 = vunpack.c.l.b16 %v383
        %v983 = vunpack.c.l.b16 %v384
        %v984 = vunpack.c.l.b16 %v385
        %v985 = vunpack.c.l.b16 %v386
        %v986 = vunpack.c.l.b16 %v387
        %v987 = vunpack.c.l.b16 %v388
        %v988 = vunpack.c.l.b16 %v389
        %v989 = vunpack.c.l.b16 %v390
        %v990 = vunpack.c.l.b16 %v391
        %v991 = vunpack.c.l.b16 %v392
        %v992 = vunpack.c.l.b16 %v393
        %v993 = vunpack.c.l.b16 %v394
        %v994 = vunpack.c.l.b16 %v395
        %v995 = vunpack.c.l.b16 %v396
        %v996 = vunpack.c.l.b16 %v397
        %v997 = vunpack.c.l.b16 %v398
        %v998 = vunpack.c.l.b16 %v399
        %v999 = vunpack.c.l.b16 %v400
        %v1000 = vunpack.c.l.b16 %v401
        %v1001 = vunpack.c.l.b16 %v402
        %v1002 = vunpack.c.l.b16 %v403
        %v1003 = vunpack.c.l.b16 %v404
        %v1004 = vunpack.c.l.b16 %v405
        %v1005 = vunpack.c.l.b16 %v406
        %v1006 = vunpack.c.l.b16 %v407
        %v1007 = vunpack.c.l.b16 %v408
        %v1008 = vunpack.c.l.b16 %v409
        %v1009 = vunpack.c.l.b16 %v410
        %v1010 = vunpack.c.l.b16 %v411
        %v1011 = vunpack.c.l.b16 %v412
        %v1012 = vunpack.c.l.b16 %v413
        %v1013 = vunpack.c.l.b16 %v414
        %v1014 = vunpack.c.l.b16 %v415
        %v1015 = vunpack.c.l.b16 %v416
        %v1016 = vunpack.c.l.b16 %v417
        %v1017 = vunpack.c.l.b16 %v418
        %v1018 = vunpack.c.l.b16 %v419
        %v1019 = vunpack.c.l.b16 %v420
        %v1020 = vunpack.c.l.b16 %v421
        %v1021 = vunpack.c.l.b16 %v422
        %v1022 = vunpack.c.l.b16 %v423
        %v1023 = vunpack.c.l.b16 %v424
        %v1024 = vunpack.c.l.b16 %v425
        %v1025 = vunpack.c.l.b16 %v426
        %v1026 = vunpack.c.l.b16 %v427
        %v1027 = vunpack.c.l.b16 %v428
        %v1028 = vunpack.c.l.b16 %v429
        %v1029 = vunpack.c.l.b16 %v430
        %v1030 = vunpack.c.l.b16 %v431
        %v1031 = vunpack.c.l.b16 %v432
        %v1032 = vunpack.c.l.b16 %v433
        %v1033 = vunpack.c.l.b16 %v434
        %v1034 = vunpack.c.l.b16 %v435
        %v1035 = vunpack.c.l.b16 %v436
        %v1036 = vunpack.c.l.b16 %v437
        %v1037 = vunpack.c.l.b16 %v438
        %v1038 = vunpack.c.l.b16 %v439
        %v1039 = vunpack.c.l.b16 %v440
        %v1040 = vunpack.c.l.b16 %v441
        %v1041 = vunpack.c.l.b16 %v442
        %v1042 = vunpack.c.l.b16 %v443
        %v1043 = vunpack.c.l.b16 %v444
        %v1044 = vunpack.c.l.b16 %v445
        %v1045 = vunpack.c.l.b16 %v446
        %v1046 = vunpack.c.l.b16 %v447
        %v1047 = vunpack.c.l.b16 %v448
        %v1048 = vunpack.c.l.b16 %v449
        %v1049 = vunpack.c.l.b16 %v450
        %v1050 = vunpack.c.l.b16 %v451
        %v1051 = vunpack.c.l.b16 %v452
        %v1052 = vunpack.c.l.b16 %v453
        %v1053 = vunpack.c.l.b16 %v454
        %v1054 = vunpack.c.l.b16 %v455
        %v1055 = vunpack.c.l.b16 %v456
        %v1056 = vunpack.c.l.b16 %v457
        %v1057 = vunpack.c.l.b16 %v458
        %v1058 = vunpack.c.l.b16 %v459
        %v1059 = vunpack.c.l.b16 %v460
        %v1060 = vunpack.c.l.b16 %v461
        %v1061 = vunpack.c.l.b16 %v462
        %v1062 = vunpack.c.l.b16 %v463
        %v1063 = vunpack.c.l.b16 %v464
        %v1064 = vunpack.c.l.b16 %v465
        %v1065 = vunpack.c.l.b16 %v466
        %v1066 = vunpack.c.l.b16 %v467
        %v1067 = vunpack.c.l.b16 %v468
        %v1068 = vunpack.c.l.b16 %v469
        %v1069 = vunpack.c.l.b16 %v470
        %v1070 = vunpack.c.l.b16 %v471
        %v1071 = vunpack.c.l.b16 %v472
        %v1072 = vunpack.c.l.b16 %v473
        %v1073 = vunpack.c.l.b16 %v474
        %v1074 = vunpack.c.l.b16 %v475
        %v1075 = vunpack.c.l.b16 %v476
        %v1076 = vunpack.c.l.b16 %v477
        %v1077 = vunpack.c.l.b16 %v478
        %v1078 = vunpack.c.l.b16 %v479
        %v1079 = vunpack.c.l.b16 %v480
        %v1080 = vunpack.c.l.b16 %v481
        %v1081 = vunpack.c.l.b16 %v482
        %v1082 = vunpack.c.l.b16 %v483
        %v1083 = vunpack.c.l.b16 %v484
        %v1084 = vunpack.c.l.b16 %v485
        %v1085 = vunpack.c.l.b16 %v486
        %v1086 = vunpack.c.l.b16 %v487
        %v1087 = vunpack.c.l.b16 %v488
        %v1088 = vunpack.c.l.b16 %v489
        %v1089 = vunpack.c.l.b16 %v490
        %v1090 = vunpack.c.l.b16 %v491
        %v1091 = vunpack.c.l.b16 %v492
        %v1092 = vunpack.c.l.b16 %v493
        %v1093 = vunpack.c.l.b16 %v494
        %v1094 = vunpack.c.l.b16 %v495
        %v1095 = vunpack.c.l.b16 %v496
        %v1096 = vunpack.c.l.b16 %v497
        %v1097 = vunpack.c.l.b16 %v498
        %v1098 = vunpack.c.l.b16 %v499
        %v1099 = vunpack.c.l.b16 %v500
        %v1100 = vunpack.c.l.b16 %v501
        %v1101 = vunpack.c.l.b16 %v502
        %v1102 = vunpack.c.l.b16 %v503
        %v1103 = vunpack.c.l.b16 %v504
        %v1104 = vunpack.c.l.b16 %v505
        %v1105 = vunpack.c.l.b16 %v506
        %v1106 = vunpack.c.l.b16 %v507
        %v1107 = vunpack.c.l.b16 %v508
        %v1108 = vunpack.c.l.b16 %v509
        %v1109 = vunpack.c.l.b16 %v510
        %v1110 = vunpack.c.l.b16 %v511
        %v1111 = vunpack.c.l.b16 %v512
        %v1112 = vunpack.c.l.b16 %v513
        %v1113 = vunpack.c.l.b16 %v514
        %v1114 = vunpack.c.l.b16 %v515
        %v1115 = vunpack.c.l.b16 %v516
        %v1116 = vunpack.c.l.b16 %v517
        %v1117 = vunpack.c.l.b16 %v518
        %v1118 = vunpack.c.l.b16 %v519
        %v1119 = vunpack.c.l.b16 %v520
        %v1120 = vunpack.c.l.b16 %v521
        %v1121 = vunpack.c.l.b16 %v522
        %v1122 = vunpack.c.l.b16 %v523
        %v1123 = vunpack.c.l.b16 %v524
        %v1124 = vunpack.c.l.b16 %v525
        %v1125 = vunpack.c.l.b16 %v526
        %v1126 = vunpack.c.l.b16 %v527
        %v1127 = vunpack.c.l.b16 %v528
        %v1128 = vunpack.c.l.b16 %v529
        %v1129 = vunpack.c.l.b16 %v530
        %v1130 = vunpack.c.l.b16 %v531
        %v1131 = vunpack.c.l.b16 %v532
        %v1132 = vunpack.c.l.b16 %v533
        %v1133 = vunpack.c.l.b16 %v534
        %v1134 = vunpack.c.l.b16 %v535
        %v1135 = vunpack.c.l.b16 %v536
        %v1136 = vunpack.c.l.b16 %v537
        %v1137 = vunpack.c.l.b16 %v538
        %v1138 = vunpack.c.l.b16 %v539
        %v1139 = vunpack.c.l.b16 %v540
        %v1140 = vunpack.c.l.b16 %v541
        %v1141 = vunpack.c.l.b16 %v542
        %v1142 = vunpack.c.l.b16 %v543
        %v1143 = vunpack.c.l.b16 %v544
        %v1144 = vunpack.c.l.b16 %v545
        %v1145 = vunpack.c.l.b16 %v546
        %v1146 = vunpack.c.l.b16 %v547
        %v1147 = vunpack.c.l.b16 %v548
        %v1148 = vunpack.c.l.b16 %v549
        %v1149 = vunpack.c.l.b16 %v550
        %v1150 = vunpack.c.l.b16 %v551
        %v1151 = vunpack.c.l.b16 %v552
        %v1152 = vunpack.c.l.b16 %v553
        %v1153 = vunpack.c.l.b16 %v554
        %v1154 = vunpack.c.l.b16 %v555
        %v1155 = vunpack.c.l.b16 %v556
        %v1156 = vunpack.c.l.b16 %v557
        %v1157 = vunpack.c.l.b16 %v558
        %v1158 = vunpack.c.l.b16 %v559
        %v1159 = vunpack.c.l.b16 %v560
        %v1160 = vunpack.c.l.b16 %v561
        %v1161 = vunpack.c.l.b16 %v562
        %v1162 = vunpack.c.l.b16 %v563
        %v1163 = vunpack.c.l.b16 %v564
        %v1164 = vunpack.c.l.b16 %v565
        %v1165 = vunpack.c.l.b16 %v566
        %v1166 = vunpack.c.l.b16 %v567
        %v1167 = vunpack.c.l.b16 %v568
        %v1168 = vunpack.c.l.b16 %v569
        %v1169 = vunpack.c.l.b16 %v570
        %v1170 = vunpack.c.l.b16 %v571
        %v1171 = vunpack.c.l.b16 %v572
        %v1172 = vunpack.c.l.b16 %v573
        %v1173 = vunpack.c.l.b16 %v574
        %v1174 = vunpack.c.l.b16 %v575
        %v1175 = vunpack.c.l.b16 %v576
        %v1176 = vunpack.c.l.b16 %v577
        %v1177 = vunpack.c.l.b16 %v578
        %v1178 = vunpack.c.l.b16 %v579
        %v1179 = vunpack.c.l.b16 %v580
        %v1180 = vunpack.c.l.b16 %v581
        %v1181 = vunpack.c.l.b16 %v582
        %v1182 = vunpack.c.l.b16 %v583
        %v1183 = vunpack.c.l.b16 %v584
        %v1184 = vunpack.c.l.b16 %v585
        %v1185 = vunpack.c.l.b16 %v586
        %v1186 = vunpack.c.l.b16 %v587
        %v1187 = vpack.c.b16 %v900, %v899
        %v1188 = vpack.c.b16 %v902, %v901
        %v1189 = vpack.c.b16 %v904, %v903
        %v1190 = vpack.c.b16 %v906, %v905
        %v1191 = vpack.c.b16 %v908, %v907
        %v1192 = vpack.c.b16 %v910, %v909
        %v1193 = vpack.c.b16 %v912, %v911
        %v1194 = vpack.c.b16 %v914, %v913
        %v1195 = vpack.c.b16 %v916, %v915
        %v1196 = vpack.c.b16 %v918, %v917
        %v1197 = vpack.c.b16 %v920, %v919
        %v1198 = vpack.c.b16 %v922, %v921
        %v1199 = vpack.c.b16 %v924, %v923
        %v1200 = vpack.c.b16 %v926, %v925
        %v1201 = vpack.c.b16 %v928, %v927
        %v1202 = vpack.c.b16 %v930, %v929
        %v1203 = vpack.c.b16 %v932, %v931
        %v1204 = vpack.c.b16 %v934, %v933
        %v1205 = vpack.c.b16 %v936, %v935
        %v1206 = vpack.c.b16 %v938, %v937
        %v1207 = vpack.c.b16 %v940, %v939
        %v1208 = vpack.c.b16 %v942, %v941
        %v1209 = vpack.c.b16 %v944, %v943
        %v1210 = vpack.c.b16 %v946, %v945
        %v1211 = vpack.c.b16 %v948, %v947
        %v1212 = vpack.c.b16 %v950, %v949
        %v1213 = vpack.c.b16 %v952, %v951
        %v1214 = vpack.c.b16 %v954, %v953
        %v1215 = vpack.c.b16 %v956, %v955
        %v1216 = vpack.c.b16 %v958, %v957
        %v1217 = vpack.c.b16 %v960, %v959
        %v1218 = vpack.c.b16 %v962, %v961
        %v1219 = vpack.c.b16 %v964, %v963
        %v1220 = vpack.c.b16 %v966, %v965
        %v1221 = vpack.c.b16 %v968, %v967
        %v1222 = vpack.c.b16 %v970, %v969
        %v1223 = vpack.c.b16 %v972, %v971
        %v1224 = vpack.c.b16 %v974, %v973
        %v1225 = vpack.c.b16 %v976, %v975
        %v1226 = vpack.c.b16 %v978, %v977
        %v1227 = vpack.c.b16 %v980, %v979
        %v1228 = vpack.c.b16 %v982, %v981
        %v1229 = vpack.c.b16 %v984, %v983
        %v1230 = vpack.c.b16 %v986, %v985
        %v1231 = vpack.c.b16 %v988, %v987
        %v1232 = vpack.c.b16 %v990, %v989
        %v1233 = vpack.c.b16 %v992, %v991
        %v1234 = vpack.c.b16 %v994, %v993
        %v1235 = vpack.c.b16 %v996, %v995
        %v1236 = vpack.c.b16 %v998, %v997
        %v1237 = vpack.c.b16 %v1000, %v999
        %v1238 = vpack.c.b16 %v1002, %v1001
        %v1239 = vpack.c.b16 %v1004, %v1003
        %v1240 = vpack.c.b16 %v1006, %v1005
        %v1241 = vpack.c.b16 %v1008, %v1007
        %v1242 = vpack.c.b16 %v1010, %v1009
        %v1243 = vpack.c.b16 %v1012, %v1011
        %v1244 = vpack.c.b16 %v1014, %v1013
        %v1245 = vpack.c.b16 %v1016, %v1015
        %v1246 = vpack.c.b16 %v1018, %v1017
        %v1247 = vpack.c.b16 %v1020, %v1019
        %v1248 = vpack.c.b16 %v1022, %v1021
        %v1249 = vpack.c.b16 %v1024, %v1023
        %v1250 = vpack.c.b16 %v1026, %v1025
        %v1251 = vpack.c.b16 %v1028, %v1027
        %v1252 = vpack.c.b16 %v1030, %v1029
        %v1253 = vpack.c.b16 %v1032, %v1031
        %v1254 = vpack.c.b16 %v1034, %v1033
        %v1255 = vpack.c.b16 %v1036, %v1035
        %v1256 = vpack.c.b16 %v1038, %v1037
        %v1257 = vpack.c.b16 %v1040, %v1039
        %v1258 = vpack.c.b16 %v1042, %v1041
        %v1259 = vpack.c.b16 %v1044, %v1043
        %v1260 = vpack.c.b16 %v1046, %v1045
        %v1261 = vpack.c.b16 %v1048, %v1047
        %v1262 = vpack.c.b16 %v1050, %v1049
        %v1263 = vpack.c.b16 %v1052, %v1051
        %v1264 = vpack.c.b16 %v1054, %v1053
        %v1265 = vpack.c.b16 %v1056, %v1055
        %v1266 = vpack.c.b16 %v1058, %v1057
        %v1267 = vpack.c.b16 %v1060, %v1059
        %v1268 = vpack.c.b16 %v1062, %v1061
        %v1269 = vpack.c.b16 %v1064, %v1063
        %v1270 = vpack.c.b16 %v1066, %v1065
        %v1271 = vpack.c.b16 %v1068, %v1067
        %v1272 = vpack.c.b16 %v1070, %v1069
        %v1273 = vpack.c.b16 %v1072, %v1071
        %v1274 = vpack.c.b16 %v1074, %v1073
        %v1275 = vpack.c.b16 %v1076, %v1075
        %v1276 = vpack.c.b16 %v1078, %v1077
        %v1277 = vpack.c.b16 %v1080, %v1079
        %v1278 = vpack.c.b16 %v1082, %v1081
        %v1279 = vpack.c.b16 %v1084, %v1083
        %v1280 = vpack.c.b16 %v1086, %v1085
        %v1281 = vpack.c.b16 %v1088, %v1087
        %v1282 = vpack.c.b16 %v1090, %v1089
        %v1283 = vpack.c.b16 %v1092, %v1091
        %v1284 = vpack.c.b16 %v1094, %v1093
        %v1285 = vpack.c.b16 %v1096, %v1095
        %v1286 = vpack.c.b16 %v1098, %v1097
        %v1287 = vpack.c.b16 %v1100, %v1099
        %v1288 = vpack.c.b16 %v1102, %v1101
        %v1289 = vpack.c.b16 %v1104, %v1103
        %v1290 = vpack.c.b16 %v1106, %v1105
        %v1291 = vpack.c.b16 %v1108, %v1107
        %v1292 = vpack.c.b16 %v1110, %v1109
        %v1293 = vpack.c.b16 %v1112, %v1111
        %v1294 = vpack.c.b16 %v1114, %v1113
        %v1295 = vpack.c.b16 %v1116, %v1115
        %v1296 = vpack.c.b16 %v1118, %v1117
        %v1297 = vpack.c.b16 %v1120, %v1119
        %v1298 = vpack.c.b16 %v1122, %v1121
        %v1299 = vpack.c.b16 %v1124, %v1123
        %v1300 = vpack.c.b16 %v1126, %v1125
        %v1301 = vpack.c.b16 %v1128, %v1127
        %v1302 = vpack.c.b16 %v1130, %v1129
        %v1303 = vpack.c.b16 %v1132, %v1131
        %v1304 = vpack.c.b16 %v1134, %v1133
        %v1305 = vpack.c.b16 %v1136, %v1135
        %v1306 = vpack.c.b16 %v1138, %v1137
        %v1307 = vpack.c.b16 %v1140, %v1139
        %v1308 = vpack.c.b16 %v1142, %v1141
        %v1309 = vpack.c.b16 %v1144, %v1143
        %v1310 = vpack.c.b16 %v1146, %v1145
        %v1311 = vpack.c.b16 %v1148, %v1147
        %v1312 = vpack.c.b16 %v1150, %v1149
        %v1313 = vpack.c.b16 %v1152, %v1151
        %v1314 = vpack.c.b16 %v1154, %v1153
        %v1315 = vpack.c.b16 %v1156, %v1155
        %v1316 = vpack.c.b16 %v1158, %v1157
        %v1317 = vpack.c.b16 %v1160, %v1159
        %v1318 = vpack.c.b16 %v1162, %v1161
        %v1319 = vpack.c.b16 %v1164, %v1163
        %v1320 = vpack.c.b16 %v1166, %v1165
        %v1321 = vpack.c.b16 %v1168, %v1167
        %v1322 = vpack.c.b16 %v1170, %v1169
        %v1323 = vpack.c.b16 %v1172, %v1171
        %v1324 = vpack.c.b16 %v1174, %v1173
        %v1325 = vpack.c.b16 %v1176, %v1175
        %v1326 = vpack.c.b16 %v1178, %v1177
        %v1327 = vpack.c.b16 %v1180, %v1179
        %v1328 = vpack.c.b16 %v1182, %v1181
        %v1329 = vpack.c.b16 %v1184, %v1183
        %v1330 = vpack.c.b16 %v1186, %v1185
        %v1491 = vunpack.c.l.b16 %v588
        %v1492 = vunpack.c.l.b16 %v589
        %v1493 = vunpack.c.l.b16 %v590
        %v1494 = vunpack.c.l.b16 %v591
        %v1495 = vunpack.c.l.b16 %v592
        %v1496 = vunpack.c.l.b16 %v593
        %v1497 = vunpack.c.l.b16 %v594
        %v1498 = vunpack.c.l.b16 %v595
        %v1499 = vunpack.c.l.b16 %v596
        %v1500 = vunpack.c.l.b16 %v597
        %v1501 = vunpack.c.l.b16 %v598
        %v1502 = vunpack.c.l.b16 %v599
        %v1503 = vunpack.c.l.b16 %v600
        %v1504 = vunpack.c.l.b16 %v601
        %v1505 = vunpack.c.l.b16 %v602
        %v1506 = vunpack.c.l.b16 %v603
        %v1507 = vpack.c.b16 %v1492, %v1491
        %v1508 = vpack.c.b16 %v1494, %v1493
        %v1509 = vpack.c.b16 %v1496, %v1495
        %v1510 = vpack.c.b16 %v1498, %v1497
        %v1511 = vpack.c.b16 %v1500, %v1499
        %v1512 = vpack.c.b16 %v1502, %v1501
        %v1513 = vpack.c.b16 %v1504, %v1503
        %v1514 = vpack.c.b16 %v1506, %v1505
        %1523 = vmatprep.subr.bf16.mxu0 0
        %1524 = vmatpush1.bf16.msra.mxu0 %v1507
        %1525 = vmatprep.subr.bf16.mxu0 0
        %1526 = vmatpush1.bf16.msra.mxu0 %v1508
        %1527 = vmatprep.subr.bf16.mxu0 0
        %1528 = vmatpush1.bf16.msra.mxu0 %v1509
        %1529 = vmatprep.subr.bf16.mxu0 0
        %1530 = vmatpush1.bf16.msra.mxu0 %v1510
        %1531 = vmatprep.subr.bf16.mxu0 0
        %1532 = vmatpush1.bf16.msra.mxu0 %v1511
        %1533 = vmatprep.subr.bf16.mxu0 0
        %1534 = vmatpush1.bf16.msra.mxu0 %v1512
        %1535 = vmatprep.subr.bf16.mxu0 0
        %1536 = vmatpush1.bf16.msra.mxu0 %v1513
        %1537 = vmatprep.subr.bf16.mxu0 0
        %1538 = vmatpush1.bf16.msra.mxu0 %v1514
        %1539 = vmatprep.subr.bf16.mxu0 0
        %1540 = vmatpush1.bf16.msra.mxu0 0
        %1541 = vmatprep.subr.bf16.mxu0 0
        %1542 = vmatpush1.bf16.msra.mxu0 0
        %1543 = vmatprep.subr.bf16.mxu0 0
        %1544 = vmatpush1.bf16.msra.mxu0 0
        %1545 = vmatprep.subr.bf16.mxu0 0
        %1546 = vmatpush1.bf16.msra.mxu0 0
        %1547 = vmatprep.subr.bf16.mxu0 0
        %1548 = vmatpush1.bf16.msra.mxu0 0
        %1549 = vmatprep.subr.bf16.mxu0 0
        %1550 = vmatpush1.bf16.msra.mxu0 0
        %1551 = vmatprep.subr.bf16.mxu0 0
        %1552 = vmatpush1.bf16.msra.mxu0 0
        %1553 = vmatprep.subr.bf16.mxu0 0
        %1554 = vmatpush1.bf16.msra.mxu0 0
        %1555 = vmatprep.mubr.bf16.mxu0 0
        %1556 = vmatmul.mubr.bf16.gmra.mrb[0].mxu0 %v1187
        %v1557 = vpop.f32.mrb[0].mxu0
        %v1558 = vadd.f32 %v609, %v1557
        %v1559 = vpop.f32.mrb[0].mxu0
        %v1560 = vpop.f32.mrb[0].mxu0
        %v1561 = vadd.f32 %v609, %v1560
        %v1562 = vpop.f32.mrb[0].mxu0
        %1563 = vmatprep.mubr.bf16.mxu0 0
        %1564 = vmatmul.mubr.bf16.gmra.mrb[0].mxu0 %v1188
        %v1565 = vpop.f32.mrb[0].mxu0
        %v1566 = vadd.f32 %v609, %v1565
        %v1567 = vpop.f32.mrb[0].mxu0
        %v1568 = vpop.f32.mrb[0].mxu0
        %v1569 = vadd.f32 %v609, %v1568
        %v1570 = vpop.f32.mrb[0].mxu0
        %1571 = vmatprep.mubr.bf16.mxu0 0
        %1572 = vmatmul.mubr.bf16.gmra.mrb[0].mxu0 %v1189
        %v1573 = vpop.f32.mrb[0].mxu0
        %v1574 = vadd.f32 %v609, %v1573
        %v1575 = vpop.f32.mrb[0].mxu0
        %v1576 = vpop.f32.mrb[0].mxu0
        %v1577 = vadd.f32 %v609, %v1576
        %v1578 = vpop.f32.mrb[0].mxu0
        %1579 = vmatprep.mubr.bf16.mxu0 0
        %1580 = vmatmul.mubr.bf16.gmra.mrb[0].mxu0 %v1190
        %v1581 = vpop.f32.mrb[0].mxu0
        %v1582 = vadd.f32 %v609, %v1581
        %v1583 = vpop.f32.mrb[0].mxu0
        %v1584 = vpop.f32.mrb[0].mxu0
        %v1585 = vadd.f32 %v609, %v1584
        %v1586 = vpop.f32.mrb[0].mxu0
        %1587 = vmatprep.mubr.bf16.mxu0 0
        %1588 = vmatmul.mubr.bf16.gmra.mrb[0].mxu0 %v1191
        %v1589 = vpop.f32.mrb[0].mxu0
        %v1590 = vadd.f32 %v609, %v1589
        %v1591 = vpop.f32.mrb[0].mxu0
        %v1592 = vpop.f32.mrb[0].mxu0
        %v1593 = vadd.f32 %v609, %v1592
        %v1594 = vpop.f32.mrb[0].mxu0
        %1595 = vmatprep.mubr.bf16.mxu0 0
        %1596 = vmatmul.mubr.bf16.gmra.mrb[0].mxu0 %v1192
        %v1597 = vpop.f32.mrb[0].mxu0
        %v1598 = vadd.f32 %v609, %v1597
        %v1599 = vpop.f32.mrb[0].mxu0
        %v1600 = vpop.f32.mrb[0].mxu0
        %v1601 = vadd.f32 %v609, %v1600
        %v1602 = vpop.f32.mrb[0].mxu0
        %1603 = vmatprep.mubr.bf16.mxu0 0
        %1604 = vmatmul.mubr.bf16.gmra.mrb[0].mxu0 %v1193
        %v1605 = vpop.f32.mrb[0].mxu0
        %v1606 = vadd.f32 %v609, %v1605
        %v1607 = vpop.f32.mrb[0].mxu0
        %v1608 = vpop.f32.mrb[0].mxu0
        %v1609 = vadd.f32 %v609, %v1608
        %v1610 = vpop.f32.mrb[0].mxu0
        %1611 = vmatprep.mubr.bf16.mxu0 0
        %1612 = vmatmul.mubr.bf16.gmra.mrb[0].mxu0 %v1194
        %v1613 = vpop.f32.mrb[0].mxu0
        %v1614 = vadd.f32 %v609, %v1613
        %v1615 = vpop.f32.mrb[0].mxu0
        %v1616 = vpop.f32.mrb[0].mxu0
        %v1617 = vadd.f32 %v609, %v1616
        %v1618 = vpop.f32.mrb[0].mxu0
        %1619 = vmatprep.mubr.bf16.mxu0 0
        %1620 = vmatmul.mubr.bf16.gmra.mrb[0].mxu0 %v1195
        %v1621 = vpop.f32.mrb[0].mxu0
        %v1622 = vadd.f32 %v609, %v1621
        %v1623 = vpop.f32.mrb[0].mxu0
        %v1624 = vpop.f32.mrb[0].mxu0
        %v1625 = vadd.f32 %v609, %v1624
        %v1626 = vpop.f32.mrb[0].mxu0
        %1627 = vmatprep.mubr.bf16.mxu0 0
        %1628 = vmatmul.mubr.bf16.gmra.mrb[0].mxu0 %v1196
        %v1629 = vpop.f32.mrb[0].mxu0
        %v1630 = vadd.f32 %v609, %v1629
        %v1631 = vpop.f32.mrb[0].mxu0
        %v1632 = vpop.f32.mrb[0].mxu0
        %v1633 = vadd.f32 %v609, %v1632
        %v1634 = vpop.f32.mrb[0].mxu0
        %1635 = vmatprep.mubr.bf16.mxu0 0
        %1636 = vmatmul.mubr.bf16.gmra.mrb[0].mxu0 %v1197
        %v1637 = vpop.f32.mrb[0].mxu0
        %v1638 = vadd.f32 %v609, %v1637
        %v1639 = vpop.f32.mrb[0].mxu0
        %v1640 = vpop.f32.mrb[0].mxu0
        %v1641 = vadd.f32 %v609, %v1640
        %v1642 = vpop.f32.mrb[0].mxu0
        %1643 = vmatprep.mubr.bf16.mxu0 0
        %1644 = vmatmul.mubr.bf16.gmra.mrb[0].mxu0 %v1198
        %v1645 = vpop.f32.mrb[0].mxu0
        %v1646 = vadd.f32 %v609, %v1645
        %v1647 = vpop.f32.mrb[0].mxu0
        %v1648 = vpop.f32.mrb[0].mxu0
        %v1649 = vadd.f32 %v609, %v1648
        %v1650 = vpop.f32.mrb[0].mxu0
        %1651 = vmatprep.mubr.bf16.mxu0 0
        %1652 = vmatmul.mubr.bf16.gmra.mrb[0].mxu0 %v1199
        %v1653 = vpop.f32.mrb[0].mxu0
        %v1654 = vadd.f32 %v609, %v1653
        %v1655 = vpop.f32.mrb[0].mxu0
        %v1656 = vpop.f32.mrb[0].mxu0
        %v1657 = vadd.f32 %v609, %v1656
        %v1658 = vpop.f32.mrb[0].mxu0
        %1659 = vmatprep.mubr.bf16.mxu0 0
        %1660 = vmatmul.mubr.bf16.gmra.mrb[0].mxu0 %v1200
        %v1661 = vpop.f32.mrb[0].mxu0
        %v1662 = vadd.f32 %v609, %v1661
        %v1663 = vpop.f32.mrb[0].mxu0
        %v1664 = vpop.f32.mrb[0].mxu0
        %v1665 = vadd.f32 %v609, %v1664
        %v1666 = vpop.f32.mrb[0].mxu0
        %1667 = vmatprep.mubr.bf16.mxu0 0
        %1668 = vmatmul.mubr.bf16.gmra.mrb[0].mxu0 %v1201
        %v1669 = vpop.f32.mrb[0].mxu0
        %v1670 = vadd.f32 %v609, %v1669
        %v1671 = vpop.f32.mrb[0].mxu0
        %v1672 = vpop.f32.mrb[0].mxu0
        %v1673 = vadd.f32 %v609, %v1672
        %v1674 = vpop.f32.mrb[0].mxu0
        %1675 = vmatprep.mubr.bf16.mxu0 0
        %1676 = vmatmul.mubr.bf16.gmra.mrb[0].mxu0 %v1202
        %v1677 = vpop.f32.mrb[0].mxu0
        %v1678 = vadd.f32 %v609, %v1677
        %v1679 = vpop.f32.mrb[0].mxu0
        %v1680 = vpop.f32.mrb[0].mxu0
        %v1681 = vadd.f32 %v609, %v1680
        %v1682 = vpop.f32.mrb[0].mxu0
        %1683 = vmatprep.mubr.bf16.mxu0 0
        %1684 = vmatmul.mubr.bf16.gmra.mrb[0].mxu0 %v1203
        %v1685 = vpop.f32.mrb[0].mxu0
        %v1686 = vadd.f32 %v609, %v1685
        %v1687 = vpop.f32.mrb[0].mxu0
        %v1688 = vpop.f32.mrb[0].mxu0
        %v1689 = vadd.f32 %v609, %v1688
        %v1690 = vpop.f32.mrb[0].mxu0
        %1691 = vmatprep.mubr.bf16.mxu0 0
        %1692 = vmatmul.mubr.bf16.gmra.mrb[0].mxu0 %v1204
        %v1693 = vpop.f32.mrb[0].mxu0
        %v1694 = vadd.f32 %v609, %v1693
        %v1695 = vpop.f32.mrb[0].mxu0
        %v1696 = vpop.f32.mrb[0].mxu0
        %v1697 = vadd.f32 %v609, %v1696
        %v1698 = vpop.f32.mrb[0].mxu0
        %1699 = vmatprep.mubr.bf16.mxu0 0
        %1700 = vmatmul.mubr.bf16.gmra.mrb[0].mxu0 %v1205
        %v1701 = vpop.f32.mrb[0].mxu0
        %v1702 = vadd.f32 %v609, %v1701
        %v1703 = vpop.f32.mrb[0].mxu0
        %v1704 = vpop.f32.mrb[0].mxu0
        %v1705 = vadd.f32 %v609, %v1704
        %v1706 = vpop.f32.mrb[0].mxu0
        %1707 = vmatprep.mubr.bf16.mxu0 0
        %1708 = vmatmul.mubr.bf16.gmra.mrb[0].mxu0 %v1206
        %v1709 = vpop.f32.mrb[0].mxu0
        %v1710 = vadd.f32 %v609, %v1709
        %v1711 = vpop.f32.mrb[0].mxu0
        %v1712 = vpop.f32.mrb[0].mxu0
        %v1713 = vadd.f32 %v609, %v1712
        %v1714 = vpop.f32.mrb[0].mxu0
        %1715 = vmatprep.mubr.bf16.mxu0 0
        %1716 = vmatmul.mubr.bf16.gmra.mrb[0].mxu0 %v1207
        %v1717 = vpop.f32.mrb[0].mxu0
        %v1718 = vadd.f32 %v609, %v1717
        %v1719 = vpop.f32.mrb[0].mxu0
        %v1720 = vpop.f32.mrb[0].mxu0
        %v1721 = vadd.f32 %v609, %v1720
        %v1722 = vpop.f32.mrb[0].mxu0
        %1723 = vmatprep.mubr.bf16.mxu0 0
        %1724 = vmatmul.mubr.bf16.gmra.mrb[0].mxu0 %v1208
        %v1725 = vpop.f32.mrb[0].mxu0
        %v1726 = vadd.f32 %v609, %v1725
        %v1727 = vpop.f32.mrb[0].mxu0
        %v1728 = vpop.f32.mrb[0].mxu0
        %v1729 = vadd.f32 %v609, %v1728
        %v1730 = vpop.f32.mrb[0].mxu0
        %1731 = vmatprep.mubr.bf16.mxu0 0
        %1732 = vmatmul.mubr.bf16.gmra.mrb[0].mxu0 %v1209
        %v1733 = vpop.f32.mrb[0].mxu0
        %v1734 = vadd.f32 %v609, %v1733
        %v1735 = vpop.f32.mrb[0].mxu0
        %v1736 = vpop.f32.mrb[0].mxu0
        %v1737 = vadd.f32 %v609, %v1736
        %v1738 = vpop.f32.mrb[0].mxu0
        %1739 = vmatprep.mubr.bf16.mxu0 0
        %1740 = vmatmul.mubr.bf16.gmra.mrb[0].mxu0 %v1210
        %v1741 = vpop.f32.mrb[0].mxu0
        %v1742 = vadd.f32 %v609, %v1741
        %v1743 = vpop.f32.mrb[0].mxu0
        %v1744 = vpop.f32.mrb[0].mxu0
        %v1745 = vadd.f32 %v609, %v1744
        %v1746 = vpop.f32.mrb[0].mxu0
        %1747 = vmatprep.mubr.bf16.mxu0 0
        %1748 = vmatmul.mubr.bf16.gmra.mrb[0].mxu0 %v1211
        %v1749 = vpop.f32.mrb[0].mxu0
        %v1750 = vadd.f32 %v609, %v1749
        %v1751 = vpop.f32.mrb[0].mxu0
        %v1752 = vpop.f32.mrb[0].mxu0
        %v1753 = vadd.f32 %v609, %v1752
        %v1754 = vpop.f32.mrb[0].mxu0
        %1755 = vmatprep.mubr.bf16.mxu0 0
        %1756 = vmatmul.mubr.bf16.gmra.mrb[0].mxu0 %v1212
        %v1757 = vpop.f32.mrb[0].mxu0
        %v1758 = vadd.f32 %v609, %v1757
        %v1759 = vpop.f32.mrb[0].mxu0
        %v1760 = vpop.f32.mrb[0].mxu0
        %v1761 = vadd.f32 %v609, %v1760
        %v1762 = vpop.f32.mrb[0].mxu0
        %1763 = vmatprep.mubr.bf16.mxu0 0
        %1764 = vmatmul.mubr.bf16.gmra.mrb[0].mxu0 %v1213
        %v1765 = vpop.f32.mrb[0].mxu0
        %v1766 = vadd.f32 %v609, %v1765
        %v1767 = vpop.f32.mrb[0].mxu0
        %v1768 = vpop.f32.mrb[0].mxu0
        %v1769 = vadd.f32 %v609, %v1768
        %v1770 = vpop.f32.mrb[0].mxu0
        %1771 = vmatprep.mubr.bf16.mxu0 0
        %1772 = vmatmul.mubr.bf16.gmra.mrb[0].mxu0 %v1214
        %v1773 = vpop.f32.mrb[0].mxu0
        %v1774 = vadd.f32 %v609, %v1773
        %v1775 = vpop.f32.mrb[0].mxu0
        %v1776 = vpop.f32.mrb[0].mxu0
        %v1777 = vadd.f32 %v609, %v1776
        %v1778 = vpop.f32.mrb[0].mxu0
        %1779 = vmatprep.mubr.bf16.mxu0 0
        %1780 = vmatmul.mubr.bf16.gmra.mrb[0].mxu0 %v1215
        %v1781 = vpop.f32.mrb[0].mxu0
        %v1782 = vadd.f32 %v609, %v1781
        %v1783 = vpop.f32.mrb[0].mxu0
        %v1784 = vpop.f32.mrb[0].mxu0
        %v1785 = vadd.f32 %v609, %v1784
        %v1786 = vpop.f32.mrb[0].mxu0
        %1787 = vmatprep.mubr.bf16.mxu0 0
        %1788 = vmatmul.mubr.bf16.gmra.mrb[0].mxu0 %v1216
        %v1789 = vpop.f32.mrb[0].mxu0
        %v1790 = vadd.f32 %v609, %v1789
        %v1791 = vpop.f32.mrb[0].mxu0
        %v1792 = vpop.f32.mrb[0].mxu0
        %v1793 = vadd.f32 %v609, %v1792
        %v1794 = vpop.f32.mrb[0].mxu0
        %1795 = vmatprep.mubr.bf16.mxu0 0
        %1796 = vmatmul.mubr.bf16.gmra.mrb[0].mxu0 %v1217
        %v1797 = vpop.f32.mrb[0].mxu0
        %v1798 = vadd.f32 %v609, %v1797
        %v1799 = vpop.f32.mrb[0].mxu0
        %v1800 = vpop.f32.mrb[0].mxu0
        %v1801 = vadd.f32 %v609, %v1800
        %v1802 = vpop.f32.mrb[0].mxu0
        %1803 = vmatprep.mubr.bf16.mxu0 0
        %1804 = vmatmul.mubr.bf16.gmra.mrb[0].mxu0 %v1218
        %v1805 = vpop.f32.mrb[0].mxu0
        %v1806 = vadd.f32 %v609, %v1805
        %v1807 = vpop.f32.mrb[0].mxu0
        %v1808 = vpop.f32.mrb[0].mxu0
        %v1809 = vadd.f32 %v609, %v1808
        %v1810 = vpop.f32.mrb[0].mxu0
        %1811 = vmatprep.mubr.bf16.mxu0 0
        %1812 = vmatmul.mubr.bf16.gmra.mrb[0].mxu0 %v1219
        %v1813 = vpop.f32.mrb[0].mxu0
        %v1814 = vadd.f32 %v609, %v1813
        %v1815 = vpop.f32.mrb[0].mxu0
        %v1816 = vpop.f32.mrb[0].mxu0
        %v1817 = vadd.f32 %v609, %v1816
        %v1818 = vpop.f32.mrb[0].mxu0
        %1819 = vmatprep.mubr.bf16.mxu0 0
        %1820 = vmatmul.mubr.bf16.gmra.mrb[0].mxu0 %v1220
        %v1821 = vpop.f32.mrb[0].mxu0
        %v1822 = vadd.f32 %v609, %v1821
        %v1823 = vpop.f32.mrb[0].mxu0
        %v1824 = vpop.f32.mrb[0].mxu0
        %v1825 = vadd.f32 %v609, %v1824
        %v1826 = vpop.f32.mrb[0].mxu0
        %1827 = vmatprep.mubr.bf16.mxu0 0
        %1828 = vmatmul.mubr.bf16.gmra.mrb[0].mxu0 %v1221
        %v1829 = vpop.f32.mrb[0].mxu0
        %v1830 = vadd.f32 %v609, %v1829
        %v1831 = vpop.f32.mrb[0].mxu0
        %v1832 = vpop.f32.mrb[0].mxu0
        %v1833 = vadd.f32 %v609, %v1832
        %v1834 = vpop.f32.mrb[0].mxu0
        %1835 = vmatprep.mubr.bf16.mxu0 0
        %1836 = vmatmul.mubr.bf16.gmra.mrb[0].mxu0 %v1222
        %v1837 = vpop.f32.mrb[0].mxu0
        %v1838 = vadd.f32 %v609, %v1837
        %v1839 = vpop.f32.mrb[0].mxu0
        %v1840 = vpop.f32.mrb[0].mxu0
        %v1841 = vadd.f32 %v609, %v1840
        %v1842 = vpop.f32.mrb[0].mxu0
        %1843 = vmatprep.mubr.bf16.mxu0 0
        %1844 = vmatmul.mubr.bf16.gmra.mrb[0].mxu0 %v1223
        %v1845 = vpop.f32.mrb[0].mxu0
        %v1846 = vadd.f32 %v609, %v1845
        %v1847 = vpop.f32.mrb[0].mxu0
        %v1848 = vpop.f32.mrb[0].mxu0
        %v1849 = vadd.f32 %v609, %v1848
        %v1850 = vpop.f32.mrb[0].mxu0
        %1851 = vmatprep.mubr.bf16.mxu0 0
        %1852 = vmatmul.mubr.bf16.gmra.mrb[0].mxu0 %v1224
        %v1853 = vpop.f32.mrb[0].mxu0
        %v1854 = vadd.f32 %v609, %v1853
        %v1855 = vpop.f32.mrb[0].mxu0
        %v1856 = vpop.f32.mrb[0].mxu0
        %v1857 = vadd.f32 %v609, %v1856
        %v1858 = vpop.f32.mrb[0].mxu0
        %1859 = vmatprep.mubr.bf16.mxu0 0
        %1860 = vmatmul.mubr.bf16.gmra.mrb[0].mxu0 %v1225
        %v1861 = vpop.f32.mrb[0].mxu0
        %v1862 = vadd.f32 %v609, %v1861
        %v1863 = vpop.f32.mrb[0].mxu0
        %v1864 = vpop.f32.mrb[0].mxu0
        %v1865 = vadd.f32 %v609, %v1864
        %v1866 = vpop.f32.mrb[0].mxu0
        %1867 = vmatprep.mubr.bf16.mxu0 0
        %1868 = vmatmul.mubr.bf16.gmra.mrb[0].mxu0 %v1226
        %v1869 = vpop.f32.mrb[0].mxu0
        %v1870 = vadd.f32 %v609, %v1869
        %v1871 = vpop.f32.mrb[0].mxu0
        %v1872 = vpop.f32.mrb[0].mxu0
        %v1873 = vadd.f32 %v609, %v1872
        %v1874 = vpop.f32.mrb[0].mxu0
        %1875 = vmatprep.mubr.bf16.mxu0 0
        %1876 = vmatmul.mubr.bf16.gmra.mrb[0].mxu0 %v1227
        %v1877 = vpop.f32.mrb[0].mxu0
        %v1878 = vadd.f32 %v609, %v1877
        %v1879 = vpop.f32.mrb[0].mxu0
        %v1880 = vpop.f32.mrb[0].mxu0
        %v1881 = vadd.f32 %v609, %v1880
        %v1882 = vpop.f32.mrb[0].mxu0
        %1883 = vmatprep.mubr.bf16.mxu0 0
        %1884 = vmatmul.mubr.bf16.gmra.mrb[0].mxu0 %v1228
        %v1885 = vpop.f32.mrb[0].mxu0
        %v1886 = vadd.f32 %v609, %v1885
        %v1887 = vpop.f32.mrb[0].mxu0
        %v1888 = vpop.f32.mrb[0].mxu0
        %v1889 = vadd.f32 %v609, %v1888
        %v1890 = vpop.f32.mrb[0].mxu0
        %1891 = vmatprep.mubr.bf16.mxu0 0
        %1892 = vmatmul.mubr.bf16.gmra.mrb[0].mxu0 %v1229
        %v1893 = vpop.f32.mrb[0].mxu0
        %v1894 = vadd.f32 %v609, %v1893
        %v1895 = vpop.f32.mrb[0].mxu0
        %v1896 = vpop.f32.mrb[0].mxu0
        %v1897 = vadd.f32 %v609, %v1896
        %v1898 = vpop.f32.mrb[0].mxu0
        %1899 = vmatprep.mubr.bf16.mxu0 0
        %1900 = vmatmul.mubr.bf16.gmra.mrb[0].mxu0 %v1230
        %v1901 = vpop.f32.mrb[0].mxu0
        %v1902 = vadd.f32 %v609, %v1901
        %v1903 = vpop.f32.mrb[0].mxu0
        %v1904 = vpop.f32.mrb[0].mxu0
        %v1905 = vadd.f32 %v609, %v1904
        %v1906 = vpop.f32.mrb[0].mxu0
        %1907 = vmatprep.mubr.bf16.mxu0 0
        %1908 = vmatmul.mubr.bf16.gmra.mrb[0].mxu0 %v1231
        %v1909 = vpop.f32.mrb[0].mxu0
        %v1910 = vadd.f32 %v609, %v1909
        %v1911 = vpop.f32.mrb[0].mxu0
        %v1912 = vpop.f32.mrb[0].mxu0
        %v1913 = vadd.f32 %v609, %v1912
        %v1914 = vpop.f32.mrb[0].mxu0
        %1915 = vmatprep.mubr.bf16.mxu0 0
        %1916 = vmatmul.mubr.bf16.gmra.mrb[0].mxu0 %v1232
        %v1917 = vpop.f32.mrb[0].mxu0
        %v1918 = vadd.f32 %v609, %v1917
        %v1919 = vpop.f32.mrb[0].mxu0
        %v1920 = vpop.f32.mrb[0].mxu0
        %v1921 = vadd.f32 %v609, %v1920
        %v1922 = vpop.f32.mrb[0].mxu0
        %1923 = vmatprep.mubr.bf16.mxu0 0
        %1924 = vmatmul.mubr.bf16.gmra.mrb[0].mxu0 %v1233
        %v1925 = vpop.f32.mrb[0].mxu0
        %v1926 = vadd.f32 %v609, %v1925
        %v1927 = vpop.f32.mrb[0].mxu0
        %v1928 = vpop.f32.mrb[0].mxu0
        %v1929 = vadd.f32 %v609, %v1928
        %v1930 = vpop.f32.mrb[0].mxu0
        %1931 = vmatprep.mubr.bf16.mxu0 0
        %1932 = vmatmul.mubr.bf16.gmra.mrb[0].mxu0 %v1234
        %v1933 = vpop.f32.mrb[0].mxu0
        %v1934 = vadd.f32 %v609, %v1933
        %v1935 = vpop.f32.mrb[0].mxu0
        %v1936 = vpop.f32.mrb[0].mxu0
        %v1937 = vadd.f32 %v609, %v1936
        %v1938 = vpop.f32.mrb[0].mxu0
        %1939 = vmatprep.mubr.bf16.mxu0 0
        %1940 = vmatmul.mubr.bf16.gmra.mrb[0].mxu0 %v1235
        %v1941 = vpop.f32.mrb[0].mxu0
        %v1942 = vadd.f32 %v609, %v1941
        %v1943 = vpop.f32.mrb[0].mxu0
        %v1944 = vpop.f32.mrb[0].mxu0
        %v1945 = vadd.f32 %v609, %v1944
        %v1946 = vpop.f32.mrb[0].mxu0
        %1947 = vmatprep.mubr.bf16.mxu0 0
        %1948 = vmatmul.mubr.bf16.gmra.mrb[0].mxu0 %v1236
        %v1949 = vpop.f32.mrb[0].mxu0
        %v1950 = vadd.f32 %v609, %v1949
        %v1951 = vpop.f32.mrb[0].mxu0
        %v1952 = vpop.f32.mrb[0].mxu0
        %v1953 = vadd.f32 %v609, %v1952
        %v1954 = vpop.f32.mrb[0].mxu0
        %1955 = vmatprep.mubr.bf16.mxu0 0
        %1956 = vmatmul.mubr.bf16.gmra.mrb[0].mxu0 %v1237
        %v1957 = vpop.f32.mrb[0].mxu0
        %v1958 = vadd.f32 %v609, %v1957
        %v1959 = vpop.f32.mrb[0].mxu0
        %v1960 = vpop.f32.mrb[0].mxu0
        %v1961 = vadd.f32 %v609, %v1960
        %v1962 = vpop.f32.mrb[0].mxu0
        %1963 = vmatprep.mubr.bf16.mxu0 0
        %1964 = vmatmul.mubr.bf16.gmra.mrb[0].mxu0 %v1238
        %v1965 = vpop.f32.mrb[0].mxu0
        %v1966 = vadd.f32 %v609, %v1965
        %v1967 = vpop.f32.mrb[0].mxu0
        %v1968 = vpop.f32.mrb[0].mxu0
        %v1969 = vadd.f32 %v609, %v1968
        %v1970 = vpop.f32.mrb[0].mxu0
        %1971 = vmatprep.mubr.bf16.mxu0 0
        %1972 = vmatmul.mubr.bf16.gmra.mrb[0].mxu0 %v1239
        %v1973 = vpop.f32.mrb[0].mxu0
        %v1974 = vadd.f32 %v609, %v1973
        %v1975 = vpop.f32.mrb[0].mxu0
        %v1976 = vpop.f32.mrb[0].mxu0
        %v1977 = vadd.f32 %v609, %v1976
        %v1978 = vpop.f32.mrb[0].mxu0
        %1979 = vmatprep.mubr.bf16.mxu0 0
        %1980 = vmatmul.mubr.bf16.gmra.mrb[0].mxu0 %v1240
        %v1981 = vpop.f32.mrb[0].mxu0
        %v1982 = vadd.f32 %v609, %v1981
        %v1983 = vpop.f32.mrb[0].mxu0
        %v1984 = vpop.f32.mrb[0].mxu0
        %v1985 = vadd.f32 %v609, %v1984
        %v1986 = vpop.f32.mrb[0].mxu0
        %1987 = vmatprep.mubr.bf16.mxu0 0
        %1988 = vmatmul.mubr.bf16.gmra.mrb[0].mxu0 %v1241
        %v1989 = vpop.f32.mrb[0].mxu0
        %v1990 = vadd.f32 %v609, %v1989
        %v1991 = vpop.f32.mrb[0].mxu0
        %v1992 = vpop.f32.mrb[0].mxu0
        %v1993 = vadd.f32 %v609, %v1992
        %v1994 = vpop.f32.mrb[0].mxu0
        %1995 = vmatprep.mubr.bf16.mxu0 0
        %1996 = vmatmul.mubr.bf16.gmra.mrb[0].mxu0 %v1242
        %v1997 = vpop.f32.mrb[0].mxu0
        %v1998 = vadd.f32 %v609, %v1997
        %v1999 = vpop.f32.mrb[0].mxu0
        %v2000 = vpop.f32.mrb[0].mxu0
        %v2001 = vadd.f32 %v609, %v2000
        %v2002 = vpop.f32.mrb[0].mxu0
        %2003 = vmatprep.mubr.bf16.mxu0 0
        %2004 = vmatmul.mubr.bf16.gmra.mrb[0].mxu0 %v1243
        %v2005 = vpop.f32.mrb[0].mxu0
        %v2006 = vadd.f32 %v609, %v2005
        %v2007 = vpop.f32.mrb[0].mxu0
        %v2008 = vpop.f32.mrb[0].mxu0
        %v2009 = vadd.f32 %v609, %v2008
        %v2010 = vpop.f32.mrb[0].mxu0
        %2011 = vmatprep.mubr.bf16.mxu0 0
        %2012 = vmatmul.mubr.bf16.gmra.mrb[0].mxu0 %v1244
        %v2013 = vpop.f32.mrb[0].mxu0
        %v2014 = vadd.f32 %v609, %v2013
        %v2015 = vpop.f32.mrb[0].mxu0
        %v2016 = vpop.f32.mrb[0].mxu0
        %v2017 = vadd.f32 %v609, %v2016
        %v2018 = vpop.f32.mrb[0].mxu0
        %2019 = vmatprep.mubr.bf16.mxu0 0
        %2020 = vmatmul.mubr.bf16.gmra.mrb[0].mxu0 %v1245
        %v2021 = vpop.f32.mrb[0].mxu0
        %v2022 = vadd.f32 %v609, %v2021
        %v2023 = vpop.f32.mrb[0].mxu0
        %v2024 = vpop.f32.mrb[0].mxu0
        %v2025 = vadd.f32 %v609, %v2024
        %v2026 = vpop.f32.mrb[0].mxu0
        %2027 = vmatprep.mubr.bf16.mxu0 0
        %2028 = vmatmul.mubr.bf16.gmra.mrb[0].mxu0 %v1246
        %v2029 = vpop.f32.mrb[0].mxu0
        %v2030 = vadd.f32 %v609, %v2029
        %v2031 = vpop.f32.mrb[0].mxu0
        %v2032 = vpop.f32.mrb[0].mxu0
        %v2033 = vadd.f32 %v609, %v2032
        %v2034 = vpop.f32.mrb[0].mxu0
        %2035 = vmatprep.mubr.bf16.mxu0 0
        %2036 = vmatmul.mubr.bf16.gmra.mrb[0].mxu0 %v1247
        %v2037 = vpop.f32.mrb[0].mxu0
        %v2038 = vadd.f32 %v609, %v2037
        %v2039 = vpop.f32.mrb[0].mxu0
        %v2040 = vpop.f32.mrb[0].mxu0
        %v2041 = vadd.f32 %v609, %v2040
        %v2042 = vpop.f32.mrb[0].mxu0
        %2043 = vmatprep.mubr.bf16.mxu0 0
        %2044 = vmatmul.mubr.bf16.gmra.mrb[0].mxu0 %v1248
        %v2045 = vpop.f32.mrb[0].mxu0
        %v2046 = vadd.f32 %v609, %v2045
        %v2047 = vpop.f32.mrb[0].mxu0
        %v2048 = vpop.f32.mrb[0].mxu0
        %v2049 = vadd.f32 %v609, %v2048
        %v2050 = vpop.f32.mrb[0].mxu0
        %2051 = vmatprep.mubr.bf16.mxu0 0
        %2052 = vmatmul.mubr.bf16.gmra.mrb[0].mxu0 %v1249
        %v2053 = vpop.f32.mrb[0].mxu0
        %v2054 = vadd.f32 %v609, %v2053
        %v2055 = vpop.f32.mrb[0].mxu0
        %v2056 = vpop.f32.mrb[0].mxu0
        %v2057 = vadd.f32 %v609, %v2056
        %v2058 = vpop.f32.mrb[0].mxu0
        %2059 = vmatprep.mubr.bf16.mxu0 0
        %2060 = vmatmul.mubr.bf16.gmra.mrb[0].mxu0 %v1250
        %v2061 = vpop.f32.mrb[0].mxu0
        %v2062 = vadd.f32 %v609, %v2061
        %v2063 = vpop.f32.mrb[0].mxu0
        %v2064 = vpop.f32.mrb[0].mxu0
        %v2065 = vadd.f32 %v609, %v2064
        %v2066 = vpop.f32.mrb[0].mxu0
        %2067 = vmatprep.mubr.bf16.mxu0 0
        %2068 = vmatmul.mubr.bf16.gmra.mrb[0].mxu0 %v1251
        %v2069 = vpop.f32.mrb[0].mxu0
        %v2070 = vadd.f32 %v609, %v2069
        %v2071 = vpop.f32.mrb[0].mxu0
        %v2072 = vpop.f32.mrb[0].mxu0
        %v2073 = vadd.f32 %v609, %v2072
        %v2074 = vpop.f32.mrb[0].mxu0
        %2075 = vmatprep.mubr.bf16.mxu0 0
        %2076 = vmatmul.mubr.bf16.gmra.mrb[0].mxu0 %v1252
        %v2077 = vpop.f32.mrb[0].mxu0
        %v2078 = vadd.f32 %v609, %v2077
        %v2079 = vpop.f32.mrb[0].mxu0
        %v2080 = vpop.f32.mrb[0].mxu0
        %v2081 = vadd.f32 %v609, %v2080
        %v2082 = vpop.f32.mrb[0].mxu0
        %2083 = vmatprep.mubr.bf16.mxu0 0
        %2084 = vmatmul.mubr.bf16.gmra.mrb[0].mxu0 %v1253
        %v2085 = vpop.f32.mrb[0].mxu0
        %v2086 = vadd.f32 %v609, %v2085
        %v2087 = vpop.f32.mrb[0].mxu0
        %v2088 = vpop.f32.mrb[0].mxu0
        %v2089 = vadd.f32 %v609, %v2088
        %v2090 = vpop.f32.mrb[0].mxu0
        %2091 = vmatprep.mubr.bf16.mxu0 0
        %2092 = vmatmul.mubr.bf16.gmra.mrb[0].mxu0 %v1254
        %v2093 = vpop.f32.mrb[0].mxu0
        %v2094 = vadd.f32 %v609, %v2093
        %v2095 = vpop.f32.mrb[0].mxu0
        %v2096 = vpop.f32.mrb[0].mxu0
        %v2097 = vadd.f32 %v609, %v2096
        %v2098 = vpop.f32.mrb[0].mxu0
        %2099 = vmatprep.mubr.bf16.mxu0 0
        %2100 = vmatmul.mubr.bf16.gmra.mrb[0].mxu0 %v1255
        %v2101 = vpop.f32.mrb[0].mxu0
        %v2102 = vadd.f32 %v609, %v2101
        %v2103 = vpop.f32.mrb[0].mxu0
        %v2104 = vpop.f32.mrb[0].mxu0
        %v2105 = vadd.f32 %v609, %v2104
        %v2106 = vpop.f32.mrb[0].mxu0
        %2107 = vmatprep.mubr.bf16.mxu0 0
        %2108 = vmatmul.mubr.bf16.gmra.mrb[0].mxu0 %v1256
        %v2109 = vpop.f32.mrb[0].mxu0
        %v2110 = vadd.f32 %v609, %v2109
        %v2111 = vpop.f32.mrb[0].mxu0
        %v2112 = vpop.f32.mrb[0].mxu0
        %v2113 = vadd.f32 %v609, %v2112
        %v2114 = vpop.f32.mrb[0].mxu0
        %2115 = vmatprep.mubr.bf16.mxu0 0
        %2116 = vmatmul.mubr.bf16.gmra.mrb[0].mxu0 %v1257
        %v2117 = vpop.f32.mrb[0].mxu0
        %v2118 = vadd.f32 %v609, %v2117
        %v2119 = vpop.f32.mrb[0].mxu0
        %v2120 = vpop.f32.mrb[0].mxu0
        %v2121 = vadd.f32 %v609, %v2120
        %v2122 = vpop.f32.mrb[0].mxu0
        %2123 = vmatprep.mubr.bf16.mxu0 0
        %2124 = vmatmul.mubr.bf16.gmra.mrb[0].mxu0 %v1258
        %v2125 = vpop.f32.mrb[0].mxu0
        %v2126 = vadd.f32 %v609, %v2125
        %v2127 = vpop.f32.mrb[0].mxu0
        %v2128 = vpop.f32.mrb[0].mxu0
        %v2129 = vadd.f32 %v609, %v2128
        %v2130 = vpop.f32.mrb[0].mxu0
        %2131 = vmatprep.mubr.bf16.mxu0 0
        %2132 = vmatmul.mubr.bf16.gmra.mrb[0].mxu0 %v1259
        %v2133 = vpop.f32.mrb[0].mxu0
        %v2134 = vadd.f32 %v609, %v2133
        %v2135 = vpop.f32.mrb[0].mxu0
        %v2136 = vpop.f32.mrb[0].mxu0
        %v2137 = vadd.f32 %v609, %v2136
        %v2138 = vpop.f32.mrb[0].mxu0
        %2139 = vmatprep.mubr.bf16.mxu0 0
        %2140 = vmatmul.mubr.bf16.gmra.mrb[0].mxu0 %v1260
        %v2141 = vpop.f32.mrb[0].mxu0
        %v2142 = vadd.f32 %v609, %v2141
        %v2143 = vpop.f32.mrb[0].mxu0
        %v2144 = vpop.f32.mrb[0].mxu0
        %v2145 = vadd.f32 %v609, %v2144
        %v2146 = vpop.f32.mrb[0].mxu0
        %2147 = vmatprep.mubr.bf16.mxu0 0
        %2148 = vmatmul.mubr.bf16.gmra.mrb[0].mxu0 %v1261
        %v2149 = vpop.f32.mrb[0].mxu0
        %v2150 = vadd.f32 %v609, %v2149
        %v2151 = vpop.f32.mrb[0].mxu0
        %v2152 = vpop.f32.mrb[0].mxu0
        %v2153 = vadd.f32 %v609, %v2152
        %v2154 = vpop.f32.mrb[0].mxu0
        %2155 = vmatprep.mubr.bf16.mxu0 0
        %2156 = vmatmul.mubr.bf16.gmra.mrb[0].mxu0 %v1262
        %v2157 = vpop.f32.mrb[0].mxu0
        %v2158 = vadd.f32 %v609, %v2157
        %v2159 = vpop.f32.mrb[0].mxu0
        %v2160 = vpop.f32.mrb[0].mxu0
        %v2161 = vadd.f32 %v609, %v2160
        %v2162 = vpop.f32.mrb[0].mxu0
        %2163 = vmatprep.mubr.bf16.mxu0 0
        %2164 = vmatmul.mubr.bf16.gmra.mrb[0].mxu0 %v1263
        %v2165 = vpop.f32.mrb[0].mxu0
        %v2166 = vadd.f32 %v609, %v2165
        %v2167 = vpop.f32.mrb[0].mxu0
        %v2168 = vpop.f32.mrb[0].mxu0
        %v2169 = vadd.f32 %v609, %v2168
        %v2170 = vpop.f32.mrb[0].mxu0
        %2171 = vmatprep.mubr.bf16.mxu0 0
        %2172 = vmatmul.mubr.bf16.gmra.mrb[0].mxu0 %v1264
        %v2173 = vpop.f32.mrb[0].mxu0
        %v2174 = vadd.f32 %v609, %v2173
        %v2175 = vpop.f32.mrb[0].mxu0
        %v2176 = vpop.f32.mrb[0].mxu0
        %v2177 = vadd.f32 %v609, %v2176
        %v2178 = vpop.f32.mrb[0].mxu0
        %2179 = vmatprep.mubr.bf16.mxu0 0
        %2180 = vmatmul.mubr.bf16.gmra.mrb[0].mxu0 %v1265
        %v2181 = vpop.f32.mrb[0].mxu0
        %v2182 = vadd.f32 %v609, %v2181
        %v2183 = vpop.f32.mrb[0].mxu0
        %v2184 = vpop.f32.mrb[0].mxu0
        %v2185 = vadd.f32 %v609, %v2184
        %v2186 = vpop.f32.mrb[0].mxu0
        %2187 = vmatprep.mubr.bf16.mxu0 0
        %2188 = vmatmul.mubr.bf16.gmra.mrb[0].mxu0 %v1266
        %v2189 = vpop.f32.mrb[0].mxu0
        %v2190 = vadd.f32 %v609, %v2189
        %v2191 = vpop.f32.mrb[0].mxu0
        %v2192 = vpop.f32.mrb[0].mxu0
        %v2193 = vadd.f32 %v609, %v2192
        %v2194 = vpop.f32.mrb[0].mxu0
        %2195 = vmatprep.mubr.bf16.mxu0 0
        %2196 = vmatmul.mubr.bf16.gmra.mrb[0].mxu0 %v1267
        %v2197 = vpop.f32.mrb[0].mxu0
        %v2198 = vadd.f32 %v609, %v2197
        %v2199 = vpop.f32.mrb[0].mxu0
        %v2200 = vpop.f32.mrb[0].mxu0
        %v2201 = vadd.f32 %v609, %v2200
        %v2202 = vpop.f32.mrb[0].mxu0
        %2203 = vmatprep.mubr.bf16.mxu0 0
        %2204 = vmatmul.mubr.bf16.gmra.mrb[0].mxu0 %v1268
        %v2205 = vpop.f32.mrb[0].mxu0
        %v2206 = vadd.f32 %v609, %v2205
        %v2207 = vpop.f32.mrb[0].mxu0
        %v2208 = vpop.f32.mrb[0].mxu0
        %v2209 = vadd.f32 %v609, %v2208
        %v2210 = vpop.f32.mrb[0].mxu0
        %2211 = vmatprep.mubr.bf16.mxu0 0
        %2212 = vmatmul.mubr.bf16.gmra.mrb[0].mxu0 %v1269
        %v2213 = vpop.f32.mrb[0].mxu0
        %v2214 = vadd.f32 %v609, %v2213
        %v2215 = vpop.f32.mrb[0].mxu0
        %v2216 = vpop.f32.mrb[0].mxu0
        %v2217 = vadd.f32 %v609, %v2216
        %v2218 = vpop.f32.mrb[0].mxu0
        %2219 = vmatprep.mubr.bf16.mxu0 0
        %2220 = vmatmul.mubr.bf16.gmra.mrb[0].mxu0 %v1270
        %v2221 = vpop.f32.mrb[0].mxu0
        %v2222 = vadd.f32 %v609, %v2221
        %v2223 = vpop.f32.mrb[0].mxu0
        %v2224 = vpop.f32.mrb[0].mxu0
        %v2225 = vadd.f32 %v609, %v2224
        %v2226 = vpop.f32.mrb[0].mxu0
        %2227 = vmatprep.mubr.bf16.mxu0 0
        %2228 = vmatmul.mubr.bf16.gmra.mrb[0].mxu0 %v1271
        %v2229 = vpop.f32.mrb[0].mxu0
        %v2230 = vadd.f32 %v609, %v2229
        %v2231 = vpop.f32.mrb[0].mxu0
        %v2232 = vpop.f32.mrb[0].mxu0
        %v2233 = vadd.f32 %v609, %v2232
        %v2234 = vpop.f32.mrb[0].mxu0
        %2235 = vmatprep.mubr.bf16.mxu0 0
        %2236 = vmatmul.mubr.bf16.gmra.mrb[0].mxu0 %v1272
        %v2237 = vpop.f32.mrb[0].mxu0
        %v2238 = vadd.f32 %v609, %v2237
        %v2239 = vpop.f32.mrb[0].mxu0
        %v2240 = vpop.f32.mrb[0].mxu0
        %v2241 = vadd.f32 %v609, %v2240
        %v2242 = vpop.f32.mrb[0].mxu0
        %2243 = vmatprep.mubr.bf16.mxu0 0
        %2244 = vmatmul.mubr.bf16.gmra.mrb[0].mxu0 %v1273
        %v2245 = vpop.f32.mrb[0].mxu0
        %v2246 = vadd.f32 %v609, %v2245
        %v2247 = vpop.f32.mrb[0].mxu0
        %v2248 = vpop.f32.mrb[0].mxu0
        %v2249 = vadd.f32 %v609, %v2248
        %v2250 = vpop.f32.mrb[0].mxu0
        %2251 = vmatprep.mubr.bf16.mxu0 0
        %2252 = vmatmul.mubr.bf16.gmra.mrb[0].mxu0 %v1274
        %v2253 = vpop.f32.mrb[0].mxu0
        %v2254 = vadd.f32 %v609, %v2253
        %v2255 = vpop.f32.mrb[0].mxu0
        %v2256 = vpop.f32.mrb[0].mxu0
        %v2257 = vadd.f32 %v609, %v2256
        %v2258 = vpop.f32.mrb[0].mxu0
        %2259 = vmatprep.mubr.bf16.mxu0 0
        %2260 = vmatmul.mubr.bf16.gmra.mrb[0].mxu0 %v1275
        %v2261 = vpop.f32.mrb[0].mxu0
        %v2262 = vadd.f32 %v609, %v2261
        %v2263 = vpop.f32.mrb[0].mxu0
        %v2264 = vpop.f32.mrb[0].mxu0
        %v2265 = vadd.f32 %v609, %v2264
        %v2266 = vpop.f32.mrb[0].mxu0
        %2267 = vmatprep.mubr.bf16.mxu0 0
        %2268 = vmatmul.mubr.bf16.gmra.mrb[0].mxu0 %v1276
        %v2269 = vpop.f32.mrb[0].mxu0
        %v2270 = vadd.f32 %v609, %v2269
        %v2271 = vpop.f32.mrb[0].mxu0
        %v2272 = vpop.f32.mrb[0].mxu0
        %v2273 = vadd.f32 %v609, %v2272
        %v2274 = vpop.f32.mrb[0].mxu0
        %2275 = vmatprep.mubr.bf16.mxu0 0
        %2276 = vmatmul.mubr.bf16.gmra.mrb[0].mxu0 %v1277
        %v2277 = vpop.f32.mrb[0].mxu0
        %v2278 = vadd.f32 %v609, %v2277
        %v2279 = vpop.f32.mrb[0].mxu0
        %v2280 = vpop.f32.mrb[0].mxu0
        %v2281 = vadd.f32 %v609, %v2280
        %v2282 = vpop.f32.mrb[0].mxu0
        %2283 = vmatprep.mubr.bf16.mxu0 0
        %2284 = vmatmul.mubr.bf16.gmra.mrb[0].mxu0 %v1278
        %v2285 = vpop.f32.mrb[0].mxu0
        %v2286 = vadd.f32 %v609, %v2285
        %v2287 = vpop.f32.mrb[0].mxu0
        %v2288 = vpop.f32.mrb[0].mxu0
        %v2289 = vadd.f32 %v609, %v2288
        %v2290 = vpop.f32.mrb[0].mxu0
        %2291 = vmatprep.mubr.bf16.mxu0 0
        %2292 = vmatmul.mubr.bf16.gmra.mrb[0].mxu0 %v1279
        %v2293 = vpop.f32.mrb[0].mxu0
        %v2294 = vadd.f32 %v609, %v2293
        %v2295 = vpop.f32.mrb[0].mxu0
        %v2296 = vpop.f32.mrb[0].mxu0
        %v2297 = vadd.f32 %v609, %v2296
        %v2298 = vpop.f32.mrb[0].mxu0
        %2299 = vmatprep.mubr.bf16.mxu0 0
        %2300 = vmatmul.mubr.bf16.gmra.mrb[0].mxu0 %v1280
        %v2301 = vpop.f32.mrb[0].mxu0
        %v2302 = vadd.f32 %v609, %v2301
        %v2303 = vpop.f32.mrb[0].mxu0
        %v2304 = vpop.f32.mrb[0].mxu0
        %v2305 = vadd.f32 %v609, %v2304
        %v2306 = vpop.f32.mrb[0].mxu0
        %2307 = vmatprep.mubr.bf16.mxu0 0
        %2308 = vmatmul.mubr.bf16.gmra.mrb[0].mxu0 %v1281
        %v2309 = vpop.f32.mrb[0].mxu0
        %v2310 = vadd.f32 %v609, %v2309
        %v2311 = vpop.f32.mrb[0].mxu0
        %v2312 = vpop.f32.mrb[0].mxu0
        %v2313 = vadd.f32 %v609, %v2312
        %v2314 = vpop.f32.mrb[0].mxu0
        %2315 = vmatprep.mubr.bf16.mxu0 0
        %2316 = vmatmul.mubr.bf16.gmra.mrb[0].mxu0 %v1282
        %v2317 = vpop.f32.mrb[0].mxu0
        %v2318 = vadd.f32 %v609, %v2317
        %v2319 = vpop.f32.mrb[0].mxu0
        %v2320 = vpop.f32.mrb[0].mxu0
        %v2321 = vadd.f32 %v609, %v2320
        %v2322 = vpop.f32.mrb[0].mxu0
        %2323 = vmatprep.mubr.bf16.mxu0 0
        %2324 = vmatmul.mubr.bf16.gmra.mrb[0].mxu0 %v1283
        %v2325 = vpop.f32.mrb[0].mxu0
        %v2326 = vadd.f32 %v609, %v2325
        %v2327 = vpop.f32.mrb[0].mxu0
        %v2328 = vpop.f32.mrb[0].mxu0
        %v2329 = vadd.f32 %v609, %v2328
        %v2330 = vpop.f32.mrb[0].mxu0
        %2331 = vmatprep.mubr.bf16.mxu0 0
        %2332 = vmatmul.mubr.bf16.gmra.mrb[0].mxu0 %v1284
        %v2333 = vpop.f32.mrb[0].mxu0
        %v2334 = vadd.f32 %v609, %v2333
        %v2335 = vpop.f32.mrb[0].mxu0
        %v2336 = vpop.f32.mrb[0].mxu0
        %v2337 = vadd.f32 %v609, %v2336
        %v2338 = vpop.f32.mrb[0].mxu0
        %2339 = vmatprep.mubr.bf16.mxu0 0
        %2340 = vmatmul.mubr.bf16.gmra.mrb[0].mxu0 %v1285
        %v2341 = vpop.f32.mrb[0].mxu0
        %v2342 = vadd.f32 %v609, %v2341
        %v2343 = vpop.f32.mrb[0].mxu0
        %v2344 = vpop.f32.mrb[0].mxu0
        %v2345 = vadd.f32 %v609, %v2344
        %v2346 = vpop.f32.mrb[0].mxu0
        %2347 = vmatprep.mubr.bf16.mxu0 0
        %2348 = vmatmul.mubr.bf16.gmra.mrb[0].mxu0 %v1286
        %v2349 = vpop.f32.mrb[0].mxu0
        %v2350 = vadd.f32 %v609, %v2349
        %v2351 = vpop.f32.mrb[0].mxu0
        %v2352 = vpop.f32.mrb[0].mxu0
        %v2353 = vadd.f32 %v609, %v2352
        %v2354 = vpop.f32.mrb[0].mxu0
        %2355 = vmatprep.mubr.bf16.mxu0 0
        %2356 = vmatmul.mubr.bf16.gmra.mrb[0].mxu0 %v1287
        %v2357 = vpop.f32.mrb[0].mxu0
        %v2358 = vadd.f32 %v609, %v2357
        %v2359 = vpop.f32.mrb[0].mxu0
        %v2360 = vpop.f32.mrb[0].mxu0
        %v2361 = vadd.f32 %v609, %v2360
        %v2362 = vpop.f32.mrb[0].mxu0
        %2363 = vmatprep.mubr.bf16.mxu0 0
        %2364 = vmatmul.mubr.bf16.gmra.mrb[0].mxu0 %v1288
        %v2365 = vpop.f32.mrb[0].mxu0
        %v2366 = vadd.f32 %v609, %v2365
        %v2367 = vpop.f32.mrb[0].mxu0
        %v2368 = vpop.f32.mrb[0].mxu0
        %v2369 = vadd.f32 %v609, %v2368
        %v2370 = vpop.f32.mrb[0].mxu0
        %2371 = vmatprep.mubr.bf16.mxu0 0
        %2372 = vmatmul.mubr.bf16.gmra.mrb[0].mxu0 %v1289
        %v2373 = vpop.f32.mrb[0].mxu0
        %v2374 = vadd.f32 %v609, %v2373
        %v2375 = vpop.f32.mrb[0].mxu0
        %v2376 = vpop.f32.mrb[0].mxu0
        %v2377 = vadd.f32 %v609, %v2376
        %v2378 = vpop.f32.mrb[0].mxu0
        %2379 = vmatprep.mubr.bf16.mxu0 0
        %2380 = vmatmul.mubr.bf16.gmra.mrb[0].mxu0 %v1290
        %v2381 = vpop.f32.mrb[0].mxu0
        %v2382 = vadd.f32 %v609, %v2381
        %v2383 = vpop.f32.mrb[0].mxu0
        %v2384 = vpop.f32.mrb[0].mxu0
        %v2385 = vadd.f32 %v609, %v2384
        %v2386 = vpop.f32.mrb[0].mxu0
        %2387 = vmatprep.mubr.bf16.mxu0 0
        %2388 = vmatmul.mubr.bf16.gmra.mrb[0].mxu0 %v1291
        %v2389 = vpop.f32.mrb[0].mxu0
        %v2390 = vadd.f32 %v609, %v2389
        %v2391 = vpop.f32.mrb[0].mxu0
        %v2392 = vpop.f32.mrb[0].mxu0
        %v2393 = vadd.f32 %v609, %v2392
        %v2394 = vpop.f32.mrb[0].mxu0
        %2395 = vmatprep.mubr.bf16.mxu0 0
        %2396 = vmatmul.mubr.bf16.gmra.mrb[0].mxu0 %v1292
        %v2397 = vpop.f32.mrb[0].mxu0
        %v2398 = vadd.f32 %v609, %v2397
        %v2399 = vpop.f32.mrb[0].mxu0
        %v2400 = vpop.f32.mrb[0].mxu0
        %v2401 = vadd.f32 %v609, %v2400
        %v2402 = vpop.f32.mrb[0].mxu0
        %2403 = vmatprep.mubr.bf16.mxu0 0
        %2404 = vmatmul.mubr.bf16.gmra.mrb[0].mxu0 %v1293
        %v2405 = vpop.f32.mrb[0].mxu0
        %v2406 = vadd.f32 %v609, %v2405
        %v2407 = vpop.f32.mrb[0].mxu0
        %v2408 = vpop.f32.mrb[0].mxu0
        %v2409 = vadd.f32 %v609, %v2408
        %v2410 = vpop.f32.mrb[0].mxu0
        %2411 = vmatprep.mubr.bf16.mxu0 0
        %2412 = vmatmul.mubr.bf16.gmra.mrb[0].mxu0 %v1294
        %v2413 = vpop.f32.mrb[0].mxu0
        %v2414 = vadd.f32 %v609, %v2413
        %v2415 = vpop.f32.mrb[0].mxu0
        %v2416 = vpop.f32.mrb[0].mxu0
        %v2417 = vadd.f32 %v609, %v2416
        %v2418 = vpop.f32.mrb[0].mxu0
        %2419 = vmatprep.mubr.bf16.mxu0 0
        %2420 = vmatmul.mubr.bf16.gmra.mrb[0].mxu0 %v1295
        %v2421 = vpop.f32.mrb[0].mxu0
        %v2422 = vadd.f32 %v609, %v2421
        %v2423 = vpop.f32.mrb[0].mxu0
        %v2424 = vpop.f32.mrb[0].mxu0
        %v2425 = vadd.f32 %v609, %v2424
        %v2426 = vpop.f32.mrb[0].mxu0
        %2427 = vmatprep.mubr.bf16.mxu0 0
        %2428 = vmatmul.mubr.bf16.gmra.mrb[0].mxu0 %v1296
        %v2429 = vpop.f32.mrb[0].mxu0
        %v2430 = vadd.f32 %v609, %v2429
        %v2431 = vpop.f32.mrb[0].mxu0
        %v2432 = vpop.f32.mrb[0].mxu0
        %v2433 = vadd.f32 %v609, %v2432
        %v2434 = vpop.f32.mrb[0].mxu0
        %2435 = vmatprep.mubr.bf16.mxu0 0
        %2436 = vmatmul.mubr.bf16.gmra.mrb[0].mxu0 %v1297
        %v2437 = vpop.f32.mrb[0].mxu0
        %v2438 = vadd.f32 %v609, %v2437
        %v2439 = vpop.f32.mrb[0].mxu0
        %v2440 = vpop.f32.mrb[0].mxu0
        %v2441 = vadd.f32 %v609, %v2440
        %v2442 = vpop.f32.mrb[0].mxu0
        %2443 = vmatprep.mubr.bf16.mxu0 0
        %2444 = vmatmul.mubr.bf16.gmra.mrb[0].mxu0 %v1298
        %v2445 = vpop.f32.mrb[0].mxu0
        %v2446 = vadd.f32 %v609, %v2445
        %v2447 = vpop.f32.mrb[0].mxu0
        %v2448 = vpop.f32.mrb[0].mxu0
        %v2449 = vadd.f32 %v609, %v2448
        %v2450 = vpop.f32.mrb[0].mxu0
        %2451 = vmatprep.mubr.bf16.mxu0 0
        %2452 = vmatmul.mubr.bf16.gmra.mrb[0].mxu0 %v1299
        %v2453 = vpop.f32.mrb[0].mxu0
        %v2454 = vadd.f32 %v609, %v2453
        %v2455 = vpop.f32.mrb[0].mxu0
        %v2456 = vpop.f32.mrb[0].mxu0
        %v2457 = vadd.f32 %v609, %v2456
        %v2458 = vpop.f32.mrb[0].mxu0
        %2459 = vmatprep.mubr.bf16.mxu0 0
        %2460 = vmatmul.mubr.bf16.gmra.mrb[0].mxu0 %v1300
        %v2461 = vpop.f32.mrb[0].mxu0
        %v2462 = vadd.f32 %v609, %v2461
        %v2463 = vpop.f32.mrb[0].mxu0
        %v2464 = vpop.f32.mrb[0].mxu0
        %v2465 = vadd.f32 %v609, %v2464
        %v2466 = vpop.f32.mrb[0].mxu0
        %2467 = vmatprep.mubr.bf16.mxu0 0
        %2468 = vmatmul.mubr.bf16.gmra.mrb[0].mxu0 %v1301
        %v2469 = vpop.f32.mrb[0].mxu0
        %v2470 = vadd.f32 %v609, %v2469
        %v2471 = vpop.f32.mrb[0].mxu0
        %v2472 = vpop.f32.mrb[0].mxu0
        %v2473 = vadd.f32 %v609, %v2472
        %v2474 = vpop.f32.mrb[0].mxu0
        %2475 = vmatprep.mubr.bf16.mxu0 0
        %2476 = vmatmul.mubr.bf16.gmra.mrb[0].mxu0 %v1302
        %v2477 = vpop.f32.mrb[0].mxu0
        %v2478 = vadd.f32 %v609, %v2477
        %v2479 = vpop.f32.mrb[0].mxu0
        %v2480 = vpop.f32.mrb[0].mxu0
        %v2481 = vadd.f32 %v609, %v2480
        %v2482 = vpop.f32.mrb[0].mxu0
        %2483 = vmatprep.mubr.bf16.mxu0 0
        %2484 = vmatmul.mubr.bf16.gmra.mrb[0].mxu0 %v1303
        %v2485 = vpop.f32.mrb[0].mxu0
        %v2486 = vadd.f32 %v609, %v2485
        %v2487 = vpop.f32.mrb[0].mxu0
        %v2488 = vpop.f32.mrb[0].mxu0
        %v2489 = vadd.f32 %v609, %v2488
        %v2490 = vpop.f32.mrb[0].mxu0
        %2491 = vmatprep.mubr.bf16.mxu0 0
        %2492 = vmatmul.mubr.bf16.gmra.mrb[0].mxu0 %v1304
        %v2493 = vpop.f32.mrb[0].mxu0
        %v2494 = vadd.f32 %v609, %v2493
        %v2495 = vpop.f32.mrb[0].mxu0
        %v2496 = vpop.f32.mrb[0].mxu0
        %v2497 = vadd.f32 %v609, %v2496
        %v2498 = vpop.f32.mrb[0].mxu0
        %2499 = vmatprep.mubr.bf16.mxu0 0
        %2500 = vmatmul.mubr.bf16.gmra.mrb[0].mxu0 %v1305
        %v2501 = vpop.f32.mrb[0].mxu0
        %v2502 = vadd.f32 %v609, %v2501
        %v2503 = vpop.f32.mrb[0].mxu0
        %v2504 = vpop.f32.mrb[0].mxu0
        %v2505 = vadd.f32 %v609, %v2504
        %v2506 = vpop.f32.mrb[0].mxu0
        %2507 = vmatprep.mubr.bf16.mxu0 0
        %2508 = vmatmul.mubr.bf16.gmra.mrb[0].mxu0 %v1306
        %v2509 = vpop.f32.mrb[0].mxu0
        %v2510 = vadd.f32 %v609, %v2509
        %v2511 = vpop.f32.mrb[0].mxu0
        %v2512 = vpop.f32.mrb[0].mxu0
        %v2513 = vadd.f32 %v609, %v2512
        %v2514 = vpop.f32.mrb[0].mxu0
        %2515 = vmatprep.mubr.bf16.mxu0 0
        %2516 = vmatmul.mubr.bf16.gmra.mrb[0].mxu0 %v1307
        %v2517 = vpop.f32.mrb[0].mxu0
        %v2518 = vadd.f32 %v609, %v2517
        %v2519 = vpop.f32.mrb[0].mxu0
        %v2520 = vpop.f32.mrb[0].mxu0
        %v2521 = vadd.f32 %v609, %v2520
        %v2522 = vpop.f32.mrb[0].mxu0
        %2523 = vmatprep.mubr.bf16.mxu0 0
        %2524 = vmatmul.mubr.bf16.gmra.mrb[0].mxu0 %v1308
        %v2525 = vpop.f32.mrb[0].mxu0
        %v2526 = vadd.f32 %v609, %v2525
        %v2527 = vpop.f32.mrb[0].mxu0
        %v2528 = vpop.f32.mrb[0].mxu0
        %v2529 = vadd.f32 %v609, %v2528
        %v2530 = vpop.f32.mrb[0].mxu0
        %2531 = vmatprep.mubr.bf16.mxu0 0
        %2532 = vmatmul.mubr.bf16.gmra.mrb[0].mxu0 %v1309
        %v2533 = vpop.f32.mrb[0].mxu0
        %v2534 = vadd.f32 %v609, %v2533
        %v2535 = vpop.f32.mrb[0].mxu0
        %v2536 = vpop.f32.mrb[0].mxu0
        %v2537 = vadd.f32 %v609, %v2536
        %v2538 = vpop.f32.mrb[0].mxu0
        %2539 = vmatprep.mubr.bf16.mxu0 0
        %2540 = vmatmul.mubr.bf16.gmra.mrb[0].mxu0 %v1310
        %v2541 = vpop.f32.mrb[0].mxu0
        %v2542 = vadd.f32 %v609, %v2541
        %v2543 = vpop.f32.mrb[0].mxu0
        %v2544 = vpop.f32.mrb[0].mxu0
        %v2545 = vadd.f32 %v609, %v2544
        %v2546 = vpop.f32.mrb[0].mxu0
        %2547 = vmatprep.mubr.bf16.mxu0 0
        %2548 = vmatmul.mubr.bf16.gmra.mrb[0].mxu0 %v1311
        %v2549 = vpop.f32.mrb[0].mxu0
        %v2550 = vadd.f32 %v609, %v2549
        %v2551 = vpop.f32.mrb[0].mxu0
        %v2552 = vpop.f32.mrb[0].mxu0
        %v2553 = vadd.f32 %v609, %v2552
        %v2554 = vpop.f32.mrb[0].mxu0
        %2555 = vmatprep.mubr.bf16.mxu0 0
        %2556 = vmatmul.mubr.bf16.gmra.mrb[0].mxu0 %v1312
        %v2557 = vpop.f32.mrb[0].mxu0
        %v2558 = vadd.f32 %v609, %v2557
        %v2559 = vpop.f32.mrb[0].mxu0
        %v2560 = vpop.f32.mrb[0].mxu0
        %v2561 = vadd.f32 %v609, %v2560
        %v2562 = vpop.f32.mrb[0].mxu0
        %2563 = vmatprep.mubr.bf16.mxu0 0
        %2564 = vmatmul.mubr.bf16.gmra.mrb[0].mxu0 %v1313
        %v2565 = vpop.f32.mrb[0].mxu0
        %v2566 = vadd.f32 %v609, %v2565
        %v2567 = vpop.f32.mrb[0].mxu0
        %v2568 = vpop.f32.mrb[0].mxu0
        %v2569 = vadd.f32 %v609, %v2568
        %v2570 = vpop.f32.mrb[0].mxu0
        %2571 = vmatprep.mubr.bf16.mxu0 0
        %2572 = vmatmul.mubr.bf16.gmra.mrb[0].mxu0 %v1314
        %v2573 = vpop.f32.mrb[0].mxu0
        %v2574 = vadd.f32 %v609, %v2573
        %v2575 = vpop.f32.mrb[0].mxu0
        %v2576 = vpop.f32.mrb[0].mxu0
        %v2577 = vadd.f32 %v609, %v2576
        %v2578 = vpop.f32.mrb[0].mxu0
        %2579 = vmatprep.mubr.bf16.mxu0 0
        %2580 = vmatmul.mubr.bf16.gmra.mrb[0].mxu0 %v1315
        %v2581 = vpop.f32.mrb[0].mxu0
        %v2582 = vadd.f32 %v609, %v2581
        %v2583 = vpop.f32.mrb[0].mxu0
        %v2584 = vpop.f32.mrb[0].mxu0
        %v2585 = vadd.f32 %v609, %v2584
        %v2586 = vpop.f32.mrb[0].mxu0
        %2587 = vmatprep.mubr.bf16.mxu0 0
        %2588 = vmatmul.mubr.bf16.gmra.mrb[0].mxu0 %v1316
        %v2589 = vpop.f32.mrb[0].mxu0
        %v2590 = vadd.f32 %v609, %v2589
        %v2591 = vpop.f32.mrb[0].mxu0
        %v2592 = vpop.f32.mrb[0].mxu0
        %v2593 = vadd.f32 %v609, %v2592
        %v2594 = vpop.f32.mrb[0].mxu0
        %2595 = vmatprep.mubr.bf16.mxu0 0
        %2596 = vmatmul.mubr.bf16.gmra.mrb[0].mxu0 %v1317
        %v2597 = vpop.f32.mrb[0].mxu0
        %v2598 = vadd.f32 %v609, %v2597
        %v2599 = vpop.f32.mrb[0].mxu0
        %v2600 = vpop.f32.mrb[0].mxu0
        %v2601 = vadd.f32 %v609, %v2600
        %v2602 = vpop.f32.mrb[0].mxu0
        %2603 = vmatprep.mubr.bf16.mxu0 0
        %2604 = vmatmul.mubr.bf16.gmra.mrb[0].mxu0 %v1318
        %v2605 = vpop.f32.mrb[0].mxu0
        %v2606 = vadd.f32 %v609, %v2605
        %v2607 = vpop.f32.mrb[0].mxu0
        %v2608 = vpop.f32.mrb[0].mxu0
        %v2609 = vadd.f32 %v609, %v2608
        %v2610 = vpop.f32.mrb[0].mxu0
        %2611 = vmatprep.mubr.bf16.mxu0 0
        %2612 = vmatmul.mubr.bf16.gmra.mrb[0].mxu0 %v1319
        %v2613 = vpop.f32.mrb[0].mxu0
        %v2614 = vadd.f32 %v609, %v2613
        %v2615 = vpop.f32.mrb[0].mxu0
        %v2616 = vpop.f32.mrb[0].mxu0
        %v2617 = vadd.f32 %v609, %v2616
        %v2618 = vpop.f32.mrb[0].mxu0
        %2619 = vmatprep.mubr.bf16.mxu0 0
        %2620 = vmatmul.mubr.bf16.gmra.mrb[0].mxu0 %v1320
        %v2621 = vpop.f32.mrb[0].mxu0
        %v2622 = vadd.f32 %v609, %v2621
        %v2623 = vpop.f32.mrb[0].mxu0
        %v2624 = vpop.f32.mrb[0].mxu0
        %v2625 = vadd.f32 %v609, %v2624
        %v2626 = vpop.f32.mrb[0].mxu0
        %2627 = vmatprep.mubr.bf16.mxu0 0
        %2628 = vmatmul.mubr.bf16.gmra.mrb[0].mxu0 %v1321
        %v2629 = vpop.f32.mrb[0].mxu0
        %v2630 = vadd.f32 %v609, %v2629
        %v2631 = vpop.f32.mrb[0].mxu0
        %v2632 = vpop.f32.mrb[0].mxu0
        %v2633 = vadd.f32 %v609, %v2632
        %v2634 = vpop.f32.mrb[0].mxu0
        %2635 = vmatprep.mubr.bf16.mxu0 0
        %2636 = vmatmul.mubr.bf16.gmra.mrb[0].mxu0 %v1322
        %v2637 = vpop.f32.mrb[0].mxu0
        %v2638 = vadd.f32 %v609, %v2637
        %v2639 = vpop.f32.mrb[0].mxu0
        %v2640 = vpop.f32.mrb[0].mxu0
        %v2641 = vadd.f32 %v609, %v2640
        %v2642 = vpop.f32.mrb[0].mxu0
        %2643 = vmatprep.mubr.bf16.mxu0 0
        %2644 = vmatmul.mubr.bf16.gmra.mrb[0].mxu0 %v1323
        %v2645 = vpop.f32.mrb[0].mxu0
        %v2646 = vadd.f32 %v609, %v2645
        %v2647 = vpop.f32.mrb[0].mxu0
        %v2648 = vpop.f32.mrb[0].mxu0
        %v2649 = vadd.f32 %v609, %v2648
        %v2650 = vpop.f32.mrb[0].mxu0
        %2651 = vmatprep.mubr.bf16.mxu0 0
        %2652 = vmatmul.mubr.bf16.gmra.mrb[0].mxu0 %v1324
        %v2653 = vpop.f32.mrb[0].mxu0
        %v2654 = vadd.f32 %v609, %v2653
        %v2655 = vpop.f32.mrb[0].mxu0
        %v2656 = vpop.f32.mrb[0].mxu0
        %v2657 = vadd.f32 %v609, %v2656
        %v2658 = vpop.f32.mrb[0].mxu0
        %2659 = vmatprep.mubr.bf16.mxu0 0
        %2660 = vmatmul.mubr.bf16.gmra.mrb[0].mxu0 %v1325
        %v2661 = vpop.f32.mrb[0].mxu0
        %v2662 = vadd.f32 %v609, %v2661
        %v2663 = vpop.f32.mrb[0].mxu0
        %v2664 = vpop.f32.mrb[0].mxu0
        %v2665 = vadd.f32 %v609, %v2664
        %v2666 = vpop.f32.mrb[0].mxu0
        %2667 = vmatprep.mubr.bf16.mxu0 0
        %2668 = vmatmul.mubr.bf16.gmra.mrb[0].mxu0 %v1326
        %v2669 = vpop.f32.mrb[0].mxu0
        %v2670 = vadd.f32 %v609, %v2669
        %v2671 = vpop.f32.mrb[0].mxu0
        %v2672 = vpop.f32.mrb[0].mxu0
        %v2673 = vadd.f32 %v609, %v2672
        %v2674 = vpop.f32.mrb[0].mxu0
        %2675 = vmatprep.mubr.bf16.mxu0 0
        %2676 = vmatmul.mubr.bf16.gmra.mrb[0].mxu0 %v1327
        %v2677 = vpop.f32.mrb[0].mxu0
        %v2678 = vadd.f32 %v609, %v2677
        %v2679 = vpop.f32.mrb[0].mxu0
        %v2680 = vpop.f32.mrb[0].mxu0
        %v2681 = vadd.f32 %v609, %v2680
        %v2682 = vpop.f32.mrb[0].mxu0
        %2683 = vmatprep.mubr.bf16.mxu0 0
        %2684 = vmatmul.mubr.bf16.gmra.mrb[0].mxu0 %v1328
        %v2685 = vpop.f32.mrb[0].mxu0
        %v2686 = vadd.f32 %v609, %v2685
        %v2687 = vpop.f32.mrb[0].mxu0
        %v2688 = vpop.f32.mrb[0].mxu0
        %v2689 = vadd.f32 %v609, %v2688
        %v2690 = vpop.f32.mrb[0].mxu0
        %2691 = vmatprep.mubr.bf16.mxu0 0
        %2692 = vmatmul.mubr.bf16.gmra.mrb[0].mxu0 %v1329
        %v2693 = vpop.f32.mrb[0].mxu0
        %v2694 = vadd.f32 %v609, %v2693
        %v2695 = vpop.f32.mrb[0].mxu0
        %v2696 = vpop.f32.mrb[0].mxu0
        %v2697 = vadd.f32 %v609, %v2696
        %v2698 = vpop.f32.mrb[0].mxu0
        %2699 = vmatprep.mubr.bf16.mxu0 0
        %2700 = vmatmul.mubr.bf16.gmra.mrb[0].mxu0 %v1330
        %v2701 = vpop.f32.mrb[0].mxu0
        %v2702 = vadd.f32 %v609, %v2701
        %v2703 = vpop.f32.mrb[0].mxu0
        %v2704 = vpop.f32.mrb[0].mxu0
        %v2705 = vadd.f32 %v609, %v2704
        %v2706 = vpop.f32.mrb[0].mxu0
        %2707 = vdwg.mxu0
        %v2708 = vmax.f32 %v1558, 0.0
        %v2709 = vmax.f32 %v1561, 0.0
        %v2710 = vmax.f32 %v1566, 0.0
        %v2711 = vmax.f32 %v1569, 0.0
        %v2712 = vmax.f32 %v1574, 0.0
        %v2713 = vmax.f32 %v1577, 0.0
        %v2714 = vmax.f32 %v1582, 0.0
        %v2715 = vmax.f32 %v1585, 0.0
        %v2716 = vmax.f32 %v1590, 0.0
        %v2717 = vmax.f32 %v1593, 0.0
        %v2718 = vmax.f32 %v1598, 0.0
        %v2719 = vmax.f32 %v1601, 0.0
        %v2720 = vmax.f32 %v1606, 0.0
        %v2721 = vmax.f32 %v1609, 0.0
        %v2722 = vmax.f32 %v1614, 0.0
        %v2723 = vmax.f32 %v1617, 0.0
        %v2724 = vmax.f32 %v1622, 0.0
        %v2725 = vmax.f32 %v1625, 0.0
        %v2726 = vmax.f32 %v1630, 0.0
        %v2727 = vmax.f32 %v1633, 0.0
        %v2728 = vmax.f32 %v1638, 0.0
        %v2729 = vmax.f32 %v1641, 0.0
        %v2730 = vmax.f32 %v1646, 0.0
        %v2731 = vmax.f32 %v1649, 0.0
        %v2732 = vmax.f32 %v1654, 0.0
        %v2733 = vmax.f32 %v1657, 0.0
        %v2734 = vmax.f32 %v1662, 0.0
        %v2735 = vmax.f32 %v1665, 0.0
        %v2736 = vmax.f32 %v1670, 0.0
        %v2737 = vmax.f32 %v1673, 0.0
        %v2738 = vmax.f32 %v1678, 0.0
        %v2739 = vmax.f32 %v1681, 0.0
        %v2740 = vmax.f32 %v1686, 0.0
        %v2741 = vmax.f32 %v1689, 0.0
        %v2742 = vmax.f32 %v1694, 0.0
        %v2743 = vmax.f32 %v1697, 0.0
        %v2744 = vmax.f32 %v1702, 0.0
        %v2745 = vmax.f32 %v1705, 0.0
        %v2746 = vmax.f32 %v1710, 0.0
        %v2747 = vmax.f32 %v1713, 0.0
        %v2748 = vmax.f32 %v1718, 0.0
        %v2749 = vmax.f32 %v1721, 0.0
        %v2750 = vmax.f32 %v1726, 0.0
        %v2751 = vmax.f32 %v1729, 0.0
        %v2752 = vmax.f32 %v1734, 0.0
        %v2753 = vmax.f32 %v1737, 0.0
        %v2754 = vmax.f32 %v1742, 0.0
        %v2755 = vmax.f32 %v1745, 0.0
        %v2756 = vmax.f32 %v1750, 0.0
        %v2757 = vmax.f32 %v1753, 0.0
        %v2758 = vmax.f32 %v1758, 0.0
        %v2759 = vmax.f32 %v1761, 0.0
        %v2760 = vmax.f32 %v1766, 0.0
        %v2761 = vmax.f32 %v1769, 0.0
        %v2762 = vmax.f32 %v1774, 0.0
        %v2763 = vmax.f32 %v1777, 0.0
        %v2764 = vmax.f32 %v1782, 0.0
        %v2765 = vmax.f32 %v1785, 0.0
        %v2766 = vmax.f32 %v1790, 0.0
        %v2767 = vmax.f32 %v1793, 0.0
        %v2768 = vmax.f32 %v1798, 0.0
        %v2769 = vmax.f32 %v1801, 0.0
        %v2770 = vmax.f32 %v1806, 0.0
        %v2771 = vmax.f32 %v1809, 0.0
        %v2772 = vmax.f32 %v1814, 0.0
        %v2773 = vmax.f32 %v1817, 0.0
        %v2774 = vmax.f32 %v1822, 0.0
        %v2775 = vmax.f32 %v1825, 0.0
        %v2776 = vmax.f32 %v1830, 0.0
        %v2777 = vmax.f32 %v1833, 0.0
        %v2778 = vmax.f32 %v1838, 0.0
        %v2779 = vmax.f32 %v1841, 0.0
        %v2780 = vmax.f32 %v1846, 0.0
        %v2781 = vmax.f32 %v1849, 0.0
        %v2782 = vmax.f32 %v1854, 0.0
        %v2783 = vmax.f32 %v1857, 0.0
        %v2784 = vmax.f32 %v1862, 0.0
        %v2785 = vmax.f32 %v1865, 0.0
        %v2786 = vmax.f32 %v1870, 0.0
        %v2787 = vmax.f32 %v1873, 0.0
        %v2788 = vmax.f32 %v1878, 0.0
        %v2789 = vmax.f32 %v1881, 0.0
        %v2790 = vmax.f32 %v1886, 0.0
        %v2791 = vmax.f32 %v1889, 0.0
        %v2792 = vmax.f32 %v1894, 0.0
        %v2793 = vmax.f32 %v1897, 0.0
        %v2794 = vmax.f32 %v1902, 0.0
        %v2795 = vmax.f32 %v1905, 0.0
        %v2796 = vmax.f32 %v1910, 0.0
        %v2797 = vmax.f32 %v1913, 0.0
        %v2798 = vmax.f32 %v1918, 0.0
        %v2799 = vmax.f32 %v1921, 0.0
        %v2800 = vmax.f32 %v1926, 0.0
        %v2801 = vmax.f32 %v1929, 0.0
        %v2802 = vmax.f32 %v1934, 0.0
        %v2803 = vmax.f32 %v1937, 0.0
        %v2804 = vmax.f32 %v1942, 0.0
        %v2805 = vmax.f32 %v1945, 0.0
        %v2806 = vmax.f32 %v1950, 0.0
        %v2807 = vmax.f32 %v1953, 0.0
        %v2808 = vmax.f32 %v1958, 0.0
        %v2809 = vmax.f32 %v1961, 0.0
        %v2810 = vmax.f32 %v1966, 0.0
        %v2811 = vmax.f32 %v1969, 0.0
        %v2812 = vmax.f32 %v1974, 0.0
        %v2813 = vmax.f32 %v1977, 0.0
        %v2814 = vmax.f32 %v1982, 0.0
        %v2815 = vmax.f32 %v1985, 0.0
        %v2816 = vmax.f32 %v1990, 0.0
        %v2817 = vmax.f32 %v1993, 0.0
        %v2818 = vmax.f32 %v1998, 0.0
        %v2819 = vmax.f32 %v2001, 0.0
        %v2820 = vmax.f32 %v2006, 0.0
        %v2821 = vmax.f32 %v2009, 0.0
        %v2822 = vmax.f32 %v2014, 0.0
        %v2823 = vmax.f32 %v2017, 0.0
        %v2824 = vmax.f32 %v2022, 0.0
        %v2825 = vmax.f32 %v2025, 0.0
        %v2826 = vmax.f32 %v2030, 0.0
        %v2827 = vmax.f32 %v2033, 0.0
        %v2828 = vmax.f32 %v2038, 0.0
        %v2829 = vmax.f32 %v2041, 0.0
        %v2830 = vmax.f32 %v2046, 0.0
        %v2831 = vmax.f32 %v2049, 0.0
        %v2832 = vmax.f32 %v2054, 0.0
        %v2833 = vmax.f32 %v2057, 0.0
        %v2834 = vmax.f32 %v2062, 0.0
        %v2835 = vmax.f32 %v2065, 0.0
        %v2836 = vmax.f32 %v2070, 0.0
        %v2837 = vmax.f32 %v2073, 0.0
        %v2838 = vmax.f32 %v2078, 0.0
        %v2839 = vmax.f32 %v2081, 0.0
        %v2840 = vmax.f32 %v2086, 0.0
        %v2841 = vmax.f32 %v2089, 0.0
        %v2842 = vmax.f32 %v2094, 0.0
        %v2843 = vmax.f32 %v2097, 0.0
        %v2844 = vmax.f32 %v2102, 0.0
        %v2845 = vmax.f32 %v2105, 0.0
        %v2846 = vmax.f32 %v2110, 0.0
        %v2847 = vmax.f32 %v2113, 0.0
        %v2848 = vmax.f32 %v2118, 0.0
        %v2849 = vmax.f32 %v2121, 0.0
        %v2850 = vmax.f32 %v2126, 0.0
        %v2851 = vmax.f32 %v2129, 0.0
        %v2852 = vmax.f32 %v2134, 0.0
        %v2853 = vmax.f32 %v2137, 0.0
        %v2854 = vmax.f32 %v2142, 0.0
        %v2855 = vmax.f32 %v2145, 0.0
        %v2856 = vmax.f32 %v2150, 0.0
        %v2857 = vmax.f32 %v2153, 0.0
        %v2858 = vmax.f32 %v2158, 0.0
        %v2859 = vmax.f32 %v2161, 0.0
        %v2860 = vmax.f32 %v2166, 0.0
        %v2861 = vmax.f32 %v2169, 0.0
        %v2862 = vmax.f32 %v2174, 0.0
        %v2863 = vmax.f32 %v2177, 0.0
        %v2864 = vmax.f32 %v2182, 0.0
        %v2865 = vmax.f32 %v2185, 0.0
        %v2866 = vmax.f32 %v2190, 0.0
        %v2867 = vmax.f32 %v2193, 0.0
        %v2868 = vmax.f32 %v2198, 0.0
        %v2869 = vmax.f32 %v2201, 0.0
        %v2870 = vmax.f32 %v2206, 0.0
        %v2871 = vmax.f32 %v2209, 0.0
        %v2872 = vmax.f32 %v2214, 0.0
        %v2873 = vmax.f32 %v2217, 0.0
        %v2874 = vmax.f32 %v2222, 0.0
        %v2875 = vmax.f32 %v2225, 0.0
        %v2876 = vmax.f32 %v2230, 0.0
        %v2877 = vmax.f32 %v2233, 0.0
        %v2878 = vmax.f32 %v2238, 0.0
        %v2879 = vmax.f32 %v2241, 0.0
        %v2880 = vmax.f32 %v2246, 0.0
        %v2881 = vmax.f32 %v2249, 0.0
        %v2882 = vmax.f32 %v2254, 0.0
        %v2883 = vmax.f32 %v2257, 0.0
        %v2884 = vmax.f32 %v2262, 0.0
        %v2885 = vmax.f32 %v2265, 0.0
        %v2886 = vmax.f32 %v2270, 0.0
        %v2887 = vmax.f32 %v2273, 0.0
        %v2888 = vmax.f32 %v2278, 0.0
        %v2889 = vmax.f32 %v2281, 0.0
        %v2890 = vmax.f32 %v2286, 0.0
        %v2891 = vmax.f32 %v2289, 0.0
        %v2892 = vmax.f32 %v2294, 0.0
        %v2893 = vmax.f32 %v2297, 0.0
        %v2894 = vmax.f32 %v2302, 0.0
        %v2895 = vmax.f32 %v2305, 0.0
        %v2896 = vmax.f32 %v2310, 0.0
        %v2897 = vmax.f32 %v2313, 0.0
        %v2898 = vmax.f32 %v2318, 0.0
        %v2899 = vmax.f32 %v2321, 0.0
        %v2900 = vmax.f32 %v2326, 0.0
        %v2901 = vmax.f32 %v2329, 0.0
        %v2902 = vmax.f32 %v2334, 0.0
        %v2903 = vmax.f32 %v2337, 0.0
        %v2904 = vmax.f32 %v2342, 0.0
        %v2905 = vmax.f32 %v2345, 0.0
        %v2906 = vmax.f32 %v2350, 0.0
        %v2907 = vmax.f32 %v2353, 0.0
        %v2908 = vmax.f32 %v2358, 0.0
        %v2909 = vmax.f32 %v2361, 0.0
        %v2910 = vmax.f32 %v2366, 0.0
        %v2911 = vmax.f32 %v2369, 0.0
        %v2912 = vmax.f32 %v2374, 0.0
        %v2913 = vmax.f32 %v2377, 0.0
        %v2914 = vmax.f32 %v2382, 0.0
        %v2915 = vmax.f32 %v2385, 0.0
        %v2916 = vmax.f32 %v2390, 0.0
        %v2917 = vmax.f32 %v2393, 0.0
        %v2918 = vmax.f32 %v2398, 0.0
        %v2919 = vmax.f32 %v2401, 0.0
        %v2920 = vmax.f32 %v2406, 0.0
        %v2921 = vmax.f32 %v2409, 0.0
        %v2922 = vmax.f32 %v2414, 0.0
        %v2923 = vmax.f32 %v2417, 0.0
        %v2924 = vmax.f32 %v2422, 0.0
        %v2925 = vmax.f32 %v2425, 0.0
        %v2926 = vmax.f32 %v2430, 0.0
        %v2927 = vmax.f32 %v2433, 0.0
        %v2928 = vmax.f32 %v2438, 0.0
        %v2929 = vmax.f32 %v2441, 0.0
        %v2930 = vmax.f32 %v2446, 0.0
        %v2931 = vmax.f32 %v2449, 0.0
        %v2932 = vmax.f32 %v2454, 0.0
        %v2933 = vmax.f32 %v2457, 0.0
        %v2934 = vmax.f32 %v2462, 0.0
        %v2935 = vmax.f32 %v2465, 0.0
        %v2936 = vmax.f32 %v2470, 0.0
        %v2937 = vmax.f32 %v2473, 0.0
        %v2938 = vmax.f32 %v2478, 0.0
        %v2939 = vmax.f32 %v2481, 0.0
        %v2940 = vmax.f32 %v2486, 0.0
        %v2941 = vmax.f32 %v2489, 0.0
        %v2942 = vmax.f32 %v2494, 0.0
        %v2943 = vmax.f32 %v2497, 0.0
        %v2944 = vmax.f32 %v2502, 0.0
        %v2945 = vmax.f32 %v2505, 0.0
        %v2946 = vmax.f32 %v2510, 0.0
        %v2947 = vmax.f32 %v2513, 0.0
        %v2948 = vmax.f32 %v2518, 0.0
        %v2949 = vmax.f32 %v2521, 0.0
        %v2950 = vmax.f32 %v2526, 0.0
        %v2951 = vmax.f32 %v2529, 0.0
        %v2952 = vmax.f32 %v2534, 0.0
        %v2953 = vmax.f32 %v2537, 0.0
        %v2954 = vmax.f32 %v2542, 0.0
        %v2955 = vmax.f32 %v2545, 0.0
        %v2956 = vmax.f32 %v2550, 0.0
        %v2957 = vmax.f32 %v2553, 0.0
        %v2958 = vmax.f32 %v2558, 0.0
        %v2959 = vmax.f32 %v2561, 0.0
        %v2960 = vmax.f32 %v2566, 0.0
        %v2961 = vmax.f32 %v2569, 0.0
        %v2962 = vmax.f32 %v2574, 0.0
        %v2963 = vmax.f32 %v2577, 0.0
        %v2964 = vmax.f32 %v2582, 0.0
        %v2965 = vmax.f32 %v2585, 0.0
        %v2966 = vmax.f32 %v2590, 0.0
        %v2967 = vmax.f32 %v2593, 0.0
        %v2968 = vmax.f32 %v2598, 0.0
        %v2969 = vmax.f32 %v2601, 0.0
        %v2970 = vmax.f32 %v2606, 0.0
        %v2971 = vmax.f32 %v2609, 0.0
        %v2972 = vmax.f32 %v2614, 0.0
        %v2973 = vmax.f32 %v2617, 0.0
        %v2974 = vmax.f32 %v2622, 0.0
        %v2975 = vmax.f32 %v2625, 0.0
        %v2976 = vmax.f32 %v2630, 0.0
        %v2977 = vmax.f32 %v2633, 0.0
        %v2978 = vmax.f32 %v2638, 0.0
        %v2979 = vmax.f32 %v2641, 0.0
        %v2980 = vmax.f32 %v2646, 0.0
        %v2981 = vmax.f32 %v2649, 0.0
        %v2982 = vmax.f32 %v2654, 0.0
        %v2983 = vmax.f32 %v2657, 0.0
        %v2984 = vmax.f32 %v2662, 0.0
        %v2985 = vmax.f32 %v2665, 0.0
        %v2986 = vmax.f32 %v2670, 0.0
        %v2987 = vmax.f32 %v2673, 0.0
        %v2988 = vmax.f32 %v2678, 0.0
        %v2989 = vmax.f32 %v2681, 0.0
        %v2990 = vmax.f32 %v2686, 0.0
        %v2991 = vmax.f32 %v2689, 0.0
        %v2992 = vmax.f32 %v2694, 0.0
        %v2993 = vmax.f32 %v2697, 0.0
        %v2994 = vmax.f32 %v2702, 0.0
        %v2995 = vmax.f32 %v2705, 0.0
        %v2996 = vadd.f32 %v2708, %v2709
        %v2997 = vadd.f32 %v2996, %v2710
        %v2998 = vadd.f32 %v2997, %v2711
        %v2999 = vadd.f32 %v2998, %v2712
        %v3000 = vadd.f32 %v2999, %v2713
        %v3001 = vadd.f32 %v3000, %v2714
        %v3002 = vadd.f32 %v3001, %v2715
        %v3003 = vadd.f32 %v3002, %v2716
        %v3004 = vadd.f32 %v3003, %v2717
        %v3005 = vadd.f32 %v3004, %v2718
        %v3006 = vadd.f32 %v3005, %v2719
        %v3007 = vrot.slane %v3006, 4
        %v3008 = vadd.f32 %v3006, %v3007
        %v3009 = vrot.slane %v3008, 2
        %v3010 = vadd.f32 %v3008, %v3009
        %v3011 = vrot.slane %v3010, 1
        %v3012 = vadd.f32 %v3010, %v3011
        %v3013 = vadd.f32 %v2720, %v2721
        %v3014 = vadd.f32 %v3013, %v2722
        %v3015 = vadd.f32 %v3014, %v2723
        %v3016 = vadd.f32 %v3015, %v2724
        %v3017 = vadd.f32 %v3016, %v2725
        %v3018 = vadd.f32 %v3017, %v2726
        %v3019 = vadd.f32 %v3018, %v2727
        %v3020 = vadd.f32 %v3019, %v2728
        %v3021 = vadd.f32 %v3020, %v2729
        %v3022 = vadd.f32 %v3021, %v2730
        %v3023 = vadd.f32 %v3022, %v2731
        %v3024 = vrot.slane %v3023, 4
        %v3025 = vadd.f32 %v3023, %v3024
        %v3026 = vrot.slane %v3025, 2
        %v3027 = vadd.f32 %v3025, %v3026
        %v3028 = vrot.slane %v3027, 1
        %v3029 = vadd.f32 %v3027, %v3028
        %v3030 = vadd.f32 %v2732, %v2733
        %v3031 = vadd.f32 %v3030, %v2734
        %v3032 = vadd.f32 %v3031, %v2735
        %v3033 = vadd.f32 %v3032, %v2736
        %v3034 = vadd.f32 %v3033, %v2737
        %v3035 = vadd.f32 %v3034, %v2738
        %v3036 = vadd.f32 %v3035, %v2739
        %v3037 = vadd.f32 %v3036, %v2740
        %v3038 = vadd.f32 %v3037, %v2741
        %v3039 = vadd.f32 %v3038, %v2742
        %v3040 = vadd.f32 %v3039, %v2743
        %v3041 = vrot.slane %v3040, 4
        %v3042 = vadd.f32 %v3040, %v3041
        %v3043 = vrot.slane %v3042, 2
        %v3044 = vadd.f32 %v3042, %v3043
        %v3045 = vrot.slane %v3044, 1
        %v3046 = vadd.f32 %v3044, %v3045
        %v3047 = vadd.f32 %v2744, %v2745
        %v3048 = vadd.f32 %v3047, %v2746
        %v3049 = vadd.f32 %v3048, %v2747
        %v3050 = vadd.f32 %v3049, %v2748
        %v3051 = vadd.f32 %v3050, %v2749
        %v3052 = vadd.f32 %v3051, %v2750
        %v3053 = vadd.f32 %v3052, %v2751
        %v3054 = vadd.f32 %v3053, %v2752
        %v3055 = vadd.f32 %v3054, %v2753
        %v3056 = vadd.f32 %v3055, %v2754
        %v3057 = vadd.f32 %v3056, %v2755
        %v3058 = vrot.slane %v3057, 4
        %v3059 = vadd.f32 %v3057, %v3058
        %v3060 = vrot.slane %v3059, 2
        %v3061 = vadd.f32 %v3059, %v3060
        %v3062 = vrot.slane %v3061, 1
        %v3063 = vadd.f32 %v3061, %v3062
        %v3064 = vadd.f32 %v2756, %v2757
        %v3065 = vadd.f32 %v3064, %v2758
        %v3066 = vadd.f32 %v3065, %v2759
        %v3067 = vadd.f32 %v3066, %v2760
        %v3068 = vadd.f32 %v3067, %v2761
        %v3069 = vadd.f32 %v3068, %v2762
        %v3070 = vadd.f32 %v3069, %v2763
        %v3071 = vadd.f32 %v3070, %v2764
        %v3072 = vadd.f32 %v3071, %v2765
        %v3073 = vadd.f32 %v3072, %v2766
        %v3074 = vadd.f32 %v3073, %v2767
        %v3075 = vrot.slane %v3074, 4
        %v3076 = vadd.f32 %v3074, %v3075
        %v3077 = vrot.slane %v3076, 2
        %v3078 = vadd.f32 %v3076, %v3077
        %v3079 = vrot.slane %v3078, 1
        %v3080 = vadd.f32 %v3078, %v3079
        %v3081 = vadd.f32 %v2768, %v2769
        %v3082 = vadd.f32 %v3081, %v2770
        %v3083 = vadd.f32 %v3082, %v2771
        %v3084 = vadd.f32 %v3083, %v2772
        %v3085 = vadd.f32 %v3084, %v2773
        %v3086 = vadd.f32 %v3085, %v2774
        %v3087 = vadd.f32 %v3086, %v2775
        %v3088 = vadd.f32 %v3087, %v2776
        %v3089 = vadd.f32 %v3088, %v2777
        %v3090 = vadd.f32 %v3089, %v2778
        %v3091 = vadd.f32 %v3090, %v2779
        %v3092 = vrot.slane %v3091, 4
        %v3093 = vadd.f32 %v3091, %v3092
        %v3094 = vrot.slane %v3093, 2
        %v3095 = vadd.f32 %v3093, %v3094
        %v3096 = vrot.slane %v3095, 1
        %v3097 = vadd.f32 %v3095, %v3096
        %v3098 = vadd.f32 %v2780, %v2781
        %v3099 = vadd.f32 %v3098, %v2782
        %v3100 = vadd.f32 %v3099, %v2783
        %v3101 = vadd.f32 %v3100, %v2784
        %v3102 = vadd.f32 %v3101, %v2785
        %v3103 = vadd.f32 %v3102, %v2786
        %v3104 = vadd.f32 %v3103, %v2787
        %v3105 = vadd.f32 %v3104, %v2788
        %v3106 = vadd.f32 %v3105, %v2789
        %v3107 = vadd.f32 %v3106, %v2790
        %v3108 = vadd.f32 %v3107, %v2791
        %v3109 = vrot.slane %v3108, 4
        %v3110 = vadd.f32 %v3108, %v3109
        %v3111 = vrot.slane %v3110, 2
        %v3112 = vadd.f32 %v3110, %v3111
        %v3113 = vrot.slane %v3112, 1
        %v3114 = vadd.f32 %v3112, %v3113
        %v3115 = vadd.f32 %v2792, %v2793
        %v3116 = vadd.f32 %v3115, %v2794
        %v3117 = vadd.f32 %v3116, %v2795
        %v3118 = vadd.f32 %v3117, %v2796
        %v3119 = vadd.f32 %v3118, %v2797
        %v3120 = vadd.f32 %v3119, %v2798
        %v3121 = vadd.f32 %v3120, %v2799
        %v3122 = vadd.f32 %v3121, %v2800
        %v3123 = vadd.f32 %v3122, %v2801
        %v3124 = vadd.f32 %v3123, %v2802
        %v3125 = vadd.f32 %v3124, %v2803
        %v3126 = vrot.slane %v3125, 4
        %v3127 = vadd.f32 %v3125, %v3126
        %v3128 = vrot.slane %v3127, 2
        %v3129 = vadd.f32 %v3127, %v3128
        %v3130 = vrot.slane %v3129, 1
        %v3131 = vadd.f32 %v3129, %v3130
        %v3132 = vadd.f32 %v2804, %v2805
        %v3133 = vadd.f32 %v3132, %v2806
        %v3134 = vadd.f32 %v3133, %v2807
        %v3135 = vadd.f32 %v3134, %v2808
        %v3136 = vadd.f32 %v3135, %v2809
        %v3137 = vadd.f32 %v3136, %v2810
        %v3138 = vadd.f32 %v3137, %v2811
        %v3139 = vadd.f32 %v3138, %v2812
        %v3140 = vadd.f32 %v3139, %v2813
        %v3141 = vadd.f32 %v3140, %v2814
        %v3142 = vadd.f32 %v3141, %v2815
        %v3143 = vrot.slane %v3142, 4
        %v3144 = vadd.f32 %v3142, %v3143
        %v3145 = vrot.slane %v3144, 2
        %v3146 = vadd.f32 %v3144, %v3145
        %v3147 = vrot.slane %v3146, 1
        %v3148 = vadd.f32 %v3146, %v3147
        %v3149 = vadd.f32 %v2816, %v2817
        %v3150 = vadd.f32 %v3149, %v2818
        %v3151 = vadd.f32 %v3150, %v2819
        %v3152 = vadd.f32 %v3151, %v2820
        %v3153 = vadd.f32 %v3152, %v2821
        %v3154 = vadd.f32 %v3153, %v2822
        %v3155 = vadd.f32 %v3154, %v2823
        %v3156 = vadd.f32 %v3155, %v2824
        %v3157 = vadd.f32 %v3156, %v2825
        %v3158 = vadd.f32 %v3157, %v2826
        %v3159 = vadd.f32 %v3158, %v2827
        %v3160 = vrot.slane %v3159, 4
        %v3161 = vadd.f32 %v3159, %v3160
        %v3162 = vrot.slane %v3161, 2
        %v3163 = vadd.f32 %v3161, %v3162
        %v3164 = vrot.slane %v3163, 1
        %v3165 = vadd.f32 %v3163, %v3164
        %v3166 = vadd.f32 %v2828, %v2829
        %v3167 = vadd.f32 %v3166, %v2830
        %v3168 = vadd.f32 %v3167, %v2831
        %v3169 = vadd.f32 %v3168, %v2832
        %v3170 = vadd.f32 %v3169, %v2833
        %v3171 = vadd.f32 %v3170, %v2834
        %v3172 = vadd.f32 %v3171, %v2835
        %v3173 = vadd.f32 %v3172, %v2836
        %v3174 = vadd.f32 %v3173, %v2837
        %v3175 = vadd.f32 %v3174, %v2838
        %v3176 = vadd.f32 %v3175, %v2839
        %v3177 = vrot.slane %v3176, 4
        %v3178 = vadd.f32 %v3176, %v3177
        %v3179 = vrot.slane %v3178, 2
        %v3180 = vadd.f32 %v3178, %v3179
        %v3181 = vrot.slane %v3180, 1
        %v3182 = vadd.f32 %v3180, %v3181
        %v3183 = vadd.f32 %v2840, %v2841
        %v3184 = vadd.f32 %v3183, %v2842
        %v3185 = vadd.f32 %v3184, %v2843
        %v3186 = vadd.f32 %v3185, %v2844
        %v3187 = vadd.f32 %v3186, %v2845
        %v3188 = vadd.f32 %v3187, %v2846
        %v3189 = vadd.f32 %v3188, %v2847
        %v3190 = vadd.f32 %v3189, %v2848
        %v3191 = vadd.f32 %v3190, %v2849
        %v3192 = vadd.f32 %v3191, %v2850
        %v3193 = vadd.f32 %v3192, %v2851
        %v3194 = vrot.slane %v3193, 4
        %v3195 = vadd.f32 %v3193, %v3194
        %v3196 = vrot.slane %v3195, 2
        %v3197 = vadd.f32 %v3195, %v3196
        %v3198 = vrot.slane %v3197, 1
        %v3199 = vadd.f32 %v3197, %v3198
        %v3200 = vadd.f32 %v2852, %v2853
        %v3201 = vadd.f32 %v3200, %v2854
        %v3202 = vadd.f32 %v3201, %v2855
        %v3203 = vadd.f32 %v3202, %v2856
        %v3204 = vadd.f32 %v3203, %v2857
        %v3205 = vadd.f32 %v3204, %v2858
        %v3206 = vadd.f32 %v3205, %v2859
        %v3207 = vadd.f32 %v3206, %v2860
        %v3208 = vadd.f32 %v3207, %v2861
        %v3209 = vadd.f32 %v3208, %v2862
        %v3210 = vadd.f32 %v3209, %v2863
        %v3211 = vrot.slane %v3210, 4
        %v3212 = vadd.f32 %v3210, %v3211
        %v3213 = vrot.slane %v3212, 2
        %v3214 = vadd.f32 %v3212, %v3213
        %v3215 = vrot.slane %v3214, 1
        %v3216 = vadd.f32 %v3214, %v3215
        %v3217 = vadd.f32 %v2864, %v2865
        %v3218 = vadd.f32 %v3217, %v2866
        %v3219 = vadd.f32 %v3218, %v2867
        %v3220 = vadd.f32 %v3219, %v2868
        %v3221 = vadd.f32 %v3220, %v2869
        %v3222 = vadd.f32 %v3221, %v2870
        %v3223 = vadd.f32 %v3222, %v2871
        %v3224 = vadd.f32 %v3223, %v2872
        %v3225 = vadd.f32 %v3224, %v2873
        %v3226 = vadd.f32 %v3225, %v2874
        %v3227 = vadd.f32 %v3226, %v2875
        %v3228 = vrot.slane %v3227, 4
        %v3229 = vadd.f32 %v3227, %v3228
        %v3230 = vrot.slane %v3229, 2
        %v3231 = vadd.f32 %v3229, %v3230
        %v3232 = vrot.slane %v3231, 1
        %v3233 = vadd.f32 %v3231, %v3232
        %v3234 = vadd.f32 %v2876, %v2877
        %v3235 = vadd.f32 %v3234, %v2878
        %v3236 = vadd.f32 %v3235, %v2879
        %v3237 = vadd.f32 %v3236, %v2880
        %v3238 = vadd.f32 %v3237, %v2881
        %v3239 = vadd.f32 %v3238, %v2882
        %v3240 = vadd.f32 %v3239, %v2883
        %v3241 = vadd.f32 %v3240, %v2884
        %v3242 = vadd.f32 %v3241, %v2885
        %v3243 = vadd.f32 %v3242, %v2886
        %v3244 = vadd.f32 %v3243, %v2887
        %v3245 = vrot.slane %v3244, 4
        %v3246 = vadd.f32 %v3244, %v3245
        %v3247 = vrot.slane %v3246, 2
        %v3248 = vadd.f32 %v3246, %v3247
        %v3249 = vrot.slane %v3248, 1
        %v3250 = vadd.f32 %v3248, %v3249
        %v3251 = vadd.f32 %v2888, %v2889
        %v3252 = vadd.f32 %v3251, %v2890
        %v3253 = vadd.f32 %v3252, %v2891
        %v3254 = vadd.f32 %v3253, %v2892
        %v3255 = vadd.f32 %v3254, %v2893
        %v3256 = vadd.f32 %v3255, %v2894
        %v3257 = vadd.f32 %v3256, %v2895
        %v3258 = vadd.f32 %v3257, %v2896
        %v3259 = vadd.f32 %v3258, %v2897
        %v3260 = vadd.f32 %v3259, %v2898
        %v3261 = vadd.f32 %v3260, %v2899
        %v3262 = vrot.slane %v3261, 4
        %v3263 = vadd.f32 %v3261, %v3262
        %v3264 = vrot.slane %v3263, 2
        %v3265 = vadd.f32 %v3263, %v3264
        %v3266 = vrot.slane %v3265, 1
        %v3267 = vadd.f32 %v3265, %v3266
        %v3268 = vadd.f32 %v2900, %v2901
        %v3269 = vadd.f32 %v3268, %v2902
        %v3270 = vadd.f32 %v3269, %v2903
        %v3271 = vadd.f32 %v3270, %v2904
        %v3272 = vadd.f32 %v3271, %v2905
        %v3273 = vadd.f32 %v3272, %v2906
        %v3274 = vadd.f32 %v3273, %v2907
        %v3275 = vadd.f32 %v3274, %v2908
        %v3276 = vadd.f32 %v3275, %v2909
        %v3277 = vadd.f32 %v3276, %v2910
        %v3278 = vadd.f32 %v3277, %v2911
        %v3279 = vrot.slane %v3278, 4
        %v3280 = vadd.f32 %v3278, %v3279
        %v3281 = vrot.slane %v3280, 2
        %v3282 = vadd.f32 %v3280, %v3281
        %v3283 = vrot.slane %v3282, 1
        %v3284 = vadd.f32 %v3282, %v3283
        %v3285 = vadd.f32 %v2912, %v2913
        %v3286 = vadd.f32 %v3285, %v2914
        %v3287 = vadd.f32 %v3286, %v2915
        %v3288 = vadd.f32 %v3287, %v2916
        %v3289 = vadd.f32 %v3288, %v2917
        %v3290 = vadd.f32 %v3289, %v2918
        %v3291 = vadd.f32 %v3290, %v2919
        %v3292 = vadd.f32 %v3291, %v2920
        %v3293 = vadd.f32 %v3292, %v2921
        %v3294 = vadd.f32 %v3293, %v2922
        %v3295 = vadd.f32 %v3294, %v2923
        %v3296 = vrot.slane %v3295, 4
        %v3297 = vadd.f32 %v3295, %v3296
        %v3298 = vrot.slane %v3297, 2
        %v3299 = vadd.f32 %v3297, %v3298
        %v3300 = vrot.slane %v3299, 1
        %v3301 = vadd.f32 %v3299, %v3300
        %v3302 = vadd.f32 %v2924, %v2925
        %v3303 = vadd.f32 %v3302, %v2926
        %v3304 = vadd.f32 %v3303, %v2927
        %v3305 = vadd.f32 %v3304, %v2928
        %v3306 = vadd.f32 %v3305, %v2929
        %v3307 = vadd.f32 %v3306, %v2930
        %v3308 = vadd.f32 %v3307, %v2931
        %v3309 = vadd.f32 %v3308, %v2932
        %v3310 = vadd.f32 %v3309, %v2933
        %v3311 = vadd.f32 %v3310, %v2934
        %v3312 = vadd.f32 %v3311, %v2935
        %v3313 = vrot.slane %v3312, 4
        %v3314 = vadd.f32 %v3312, %v3313
        %v3315 = vrot.slane %v3314, 2
        %v3316 = vadd.f32 %v3314, %v3315
        %v3317 = vrot.slane %v3316, 1
        %v3318 = vadd.f32 %v3316, %v3317
        %v3319 = vadd.f32 %v2936, %v2937
        %v3320 = vadd.f32 %v3319, %v2938
        %v3321 = vadd.f32 %v3320, %v2939
        %v3322 = vadd.f32 %v3321, %v2940
        %v3323 = vadd.f32 %v3322, %v2941
        %v3324 = vadd.f32 %v3323, %v2942
        %v3325 = vadd.f32 %v3324, %v2943
        %v3326 = vadd.f32 %v3325, %v2944
        %v3327 = vadd.f32 %v3326, %v2945
        %v3328 = vadd.f32 %v3327, %v2946
        %v3329 = vadd.f32 %v3328, %v2947
        %v3330 = vrot.slane %v3329, 4
        %v3331 = vadd.f32 %v3329, %v3330
        %v3332 = vrot.slane %v3331, 2
        %v3333 = vadd.f32 %v3331, %v3332
        %v3334 = vrot.slane %v3333, 1
        %v3335 = vadd.f32 %v3333, %v3334
        %v3336 = vadd.f32 %v2948, %v2949
        %v3337 = vadd.f32 %v3336, %v2950
        %v3338 = vadd.f32 %v3337, %v2951
        %v3339 = vadd.f32 %v3338, %v2952
        %v3340 = vadd.f32 %v3339, %v2953
        %v3341 = vadd.f32 %v3340, %v2954
        %v3342 = vadd.f32 %v3341, %v2955
        %v3343 = vadd.f32 %v3342, %v2956
        %v3344 = vadd.f32 %v3343, %v2957
        %v3345 = vadd.f32 %v3344, %v2958
        %v3346 = vadd.f32 %v3345, %v2959
        %v3347 = vrot.slane %v3346, 4
        %v3348 = vadd.f32 %v3346, %v3347
        %v3349 = vrot.slane %v3348, 2
        %v3350 = vadd.f32 %v3348, %v3349
        %v3351 = vrot.slane %v3350, 1
        %v3352 = vadd.f32 %v3350, %v3351
        %v3353 = vadd.f32 %v2960, %v2961
        %v3354 = vadd.f32 %v3353, %v2962
        %v3355 = vadd.f32 %v3354, %v2963
        %v3356 = vadd.f32 %v3355, %v2964
        %v3357 = vadd.f32 %v3356, %v2965
        %v3358 = vadd.f32 %v3357, %v2966
        %v3359 = vadd.f32 %v3358, %v2967
        %v3360 = vadd.f32 %v3359, %v2968
        %v3361 = vadd.f32 %v3360, %v2969
        %v3362 = vadd.f32 %v3361, %v2970
        %v3363 = vadd.f32 %v3362, %v2971
        %v3364 = vrot.slane %v3363, 4
        %v3365 = vadd.f32 %v3363, %v3364
        %v3366 = vrot.slane %v3365, 2
        %v3367 = vadd.f32 %v3365, %v3366
        %v3368 = vrot.slane %v3367, 1
        %v3369 = vadd.f32 %v3367, %v3368
        %v3370 = vadd.f32 %v2972, %v2973
        %v3371 = vadd.f32 %v3370, %v2974
        %v3372 = vadd.f32 %v3371, %v2975
        %v3373 = vadd.f32 %v3372, %v2976
        %v3374 = vadd.f32 %v3373, %v2977
        %v3375 = vadd.f32 %v3374, %v2978
        %v3376 = vadd.f32 %v3375, %v2979
        %v3377 = vadd.f32 %v3376, %v2980
        %v3378 = vadd.f32 %v3377, %v2981
        %v3379 = vadd.f32 %v3378, %v2982
        %v3380 = vadd.f32 %v3379, %v2983
        %v3381 = vrot.slane %v3380, 4
        %v3382 = vadd.f32 %v3380, %v3381
        %v3383 = vrot.slane %v3382, 2
        %v3384 = vadd.f32 %v3382, %v3383
        %v3385 = vrot.slane %v3384, 1
        %v3386 = vadd.f32 %v3384, %v3385
        %v3387 = vadd.f32 %v2984, %v2985
        %v3388 = vadd.f32 %v3387, %v2986
        %v3389 = vadd.f32 %v3388, %v2987
        %v3390 = vadd.f32 %v3389, %v2988
        %v3391 = vadd.f32 %v3390, %v2989
        %v3392 = vadd.f32 %v3391, %v2990
        %v3393 = vadd.f32 %v3392, %v2991
        %v3394 = vadd.f32 %v3393, %v2992
        %v3395 = vadd.f32 %v3394, %v2993
        %v3396 = vadd.f32 %v3395, %v2994
        %v3397 = vadd.f32 %v3396, %v2995
        %v3398 = vrot.slane %v3397, 4
        %v3399 = vadd.f32 %v3397, %v3398
        %v3400 = vrot.slane %v3399, 2
        %v3401 = vadd.f32 %v3399, %v3400
        %v3402 = vrot.slane %v3401, 1
        %v3403 = vadd.f32 %v3401, %v3402
        %v3404 = vrcp.pop 96.0
        %v3405 = vmul.f32 %v3012, %v3404
        %v3406 = vmul.f32 %v3029, %v3404
        %v3407 = vmul.f32 %v3046, %v3404
        %v3408 = vmul.f32 %v3063, %v3404
        %v3409 = vmul.f32 %v3080, %v3404
        %v3410 = vmul.f32 %v3097, %v3404
        %v3411 = vmul.f32 %v3114, %v3404
        %v3412 = vmul.f32 %v3131, %v3404
        %v3413 = vmul.f32 %v3148, %v3404
        %v3414 = vmul.f32 %v3165, %v3404
        %v3415 = vmul.f32 %v3182, %v3404
        %v3416 = vmul.f32 %v3199, %v3404
        %v3417 = vmul.f32 %v3216, %v3404
        %v3418 = vmul.f32 %v3233, %v3404
        %v3419 = vmul.f32 %v3250, %v3404
        %v3420 = vmul.f32 %v3267, %v3404
        %v3421 = vmul.f32 %v3284, %v3404
        %v3422 = vmul.f32 %v3301, %v3404
        %v3423 = vmul.f32 %v3318, %v3404
        %v3424 = vmul.f32 %v3335, %v3404
        %v3425 = vmul.f32 %v3352, %v3404
        %v3426 = vmul.f32 %v3369, %v3404
        %v3427 = vmul.f32 %v3386, %v3404
        %v3428 = vmul.f32 %v3403, %v3404
        %v3429 = vpack.c.bf16 %v3405, %v3405
        %v3430 = vpack.c.bf16 %v3406, %v3406
        %v3431 = vpack.c.bf16 %v3407, %v3407
        %v3432 = vpack.c.bf16 %v3408, %v3408
        %v3433 = vpack.c.bf16 %v3409, %v3409
        %v3434 = vpack.c.bf16 %v3410, %v3410
        %v3435 = vpack.c.bf16 %v3411, %v3411
        %v3436 = vpack.c.bf16 %v3412, %v3412
        %v3437 = vpack.c.bf16 %v3413, %v3413
        %v3438 = vpack.c.bf16 %v3414, %v3414
        %v3439 = vpack.c.bf16 %v3415, %v3415
        %v3440 = vpack.c.bf16 %v3416, %v3416
        %v3441 = vpack.c.bf16 %v3417, %v3417
        %v3442 = vpack.c.bf16 %v3418, %v3418
        %v3443 = vpack.c.bf16 %v3419, %v3419
        %v3444 = vpack.c.bf16 %v3420, %v3420
        %v3445 = vpack.c.bf16 %v3421, %v3421
        %v3446 = vpack.c.bf16 %v3422, %v3422
        %v3447 = vpack.c.bf16 %v3423, %v3423
        %v3448 = vpack.c.bf16 %v3424, %v3424
        %v3449 = vpack.c.bf16 %v3425, %v3425
        %v3450 = vpack.c.bf16 %v3426, %v3426
        %v3451 = vpack.c.bf16 %v3427, %v3427
        %v3452 = vpack.c.bf16 %v3428, %v3428
        %v3453 = vld [vmem:[#allocation8] sm:$0xff]
        %v3454 = vld [vmem:[#allocation8 + $0x8] sm:$0xff]
        %v3455 = vld [vmem:[#allocation8 + $0x10] sm:$0xff]
        %v3456 = vld [vmem:[#allocation8 + $0x18] sm:$0xff]
        %v3457 = vld [vmem:[#allocation8 + $0x20] sm:$0xff]
        %v3458 = vld [vmem:[#allocation8 + $0x28] sm:$0xff]
        %v3459 = vld [vmem:[#allocation8 + $0x30] sm:$0xff]
        %v3460 = vld [vmem:[#allocation8 + $0x38] sm:$0xff]
        %v3461 = vld [vmem:[#allocation8 + $0x40] sm:$0xff]
        %v3462 = vld [vmem:[#allocation8 + $0x48] sm:$0xff]
        %v3463 = vld [vmem:[#allocation8 + $0x50] sm:$0xff]
        %v3464 = vld [vmem:[#allocation8 + $0x58] sm:$0xff]
        %v3465 = vld [vmem:[#allocation8 + $0x60] sm:$0xff]
        %v3466 = vld [vmem:[#allocation8 + $0x68] sm:$0xff]
        %v3467 = vld [vmem:[#allocation8 + $0x70] sm:$0xff]
        %v3468 = vld [vmem:[#allocation8 + $0x78] sm:$0xff]
        %v3469 = vld [vmem:[#allocation10] sm:$0x3]
        %v3471 = vlaneseq
        %v3472 = vshrl.u32 %v3471, 7
        %v3473 = vsub.s32 0, %v3472
        %v3474 = vrot.slane %v3469, %v3473
        %v3475 = vlaneseq
        %v3476 = vshrl.u32 %v3475, 7
        %v3477 = vsub.s32 1, %v3476
        %v3478 = vrot.slane %v3469, %v3477
        %v3505 = vunpack.c.l.b16 %v3429
        %v3506 = vunpack.c.l.b16 %v3430
        %v3507 = vunpack.c.l.b16 %v3431
        %v3508 = vunpack.c.l.b16 %v3432
        %v3509 = vunpack.c.l.b16 %v3433
        %v3510 = vunpack.c.l.b16 %v3434
        %v3511 = vunpack.c.l.b16 %v3435
        %v3512 = vunpack.c.l.b16 %v3436
        %v3513 = vunpack.c.l.b16 %v3437
        %v3514 = vunpack.c.l.b16 %v3438
        %v3515 = vunpack.c.l.b16 %v3439
        %v3516 = vunpack.c.l.b16 %v3440
        %v3517 = vunpack.c.l.b16 %v3441
        %v3518 = vunpack.c.l.b16 %v3442
        %v3519 = vunpack.c.l.b16 %v3443
        %v3520 = vunpack.c.l.b16 %v3444
        %v3521 = vunpack.c.l.b16 %v3445
        %v3522 = vunpack.c.l.b16 %v3446
        %v3523 = vunpack.c.l.b16 %v3447
        %v3524 = vunpack.c.l.b16 %v3448
        %v3525 = vunpack.c.l.b16 %v3449
        %v3526 = vunpack.c.l.b16 %v3450
        %v3527 = vunpack.c.l.b16 %v3451
        %v3528 = vunpack.c.l.b16 %v3452
        %vm3529 = vcmask 1041409
        %v3530 = vsel %vm3529, %v3506, %v3505
        %vm3531 = vcmask 1042434
        %v3532 = vsel %vm3531, %v3507, %v3530
        %vm3533 = vcmask 1043459
        %v3534 = vsel %vm3533, %v3508, %v3532
        %vm3535 = vcmask 1044484
        %v3536 = vsel %vm3535, %v3509, %v3534
        %vm3537 = vcmask 1045509
        %v3538 = vsel %vm3537, %v3510, %v3536
        %vm3539 = vcmask 1046534
        %v3540 = vsel %vm3539, %v3511, %v3538
        %vm3541 = vcmask 1047559
        %v3542 = vsel %vm3541, %v3512, %v3540
        %v3543 = vsel %vm3529, %v3514, %v3513
        %v3544 = vsel %vm3531, %v3515, %v3543
        %v3545 = vsel %vm3533, %v3516, %v3544
        %v3546 = vsel %vm3535, %v3517, %v3545
        %v3547 = vsel %vm3537, %v3518, %v3546
        %v3548 = vsel %vm3539, %v3519, %v3547
        %v3549 = vsel %vm3541, %v3520, %v3548
        %v3550 = vsel %vm3529, %v3522, %v3521
        %v3551 = vsel %vm3531, %v3523, %v3550
        %v3552 = vsel %vm3533, %v3524, %v3551
        %v3553 = vsel %vm3535, %v3525, %v3552
        %v3554 = vsel %vm3537, %v3526, %v3553
        %v3555 = vsel %vm3539, %v3527, %v3554
        %v3556 = vsel %vm3541, %v3528, %v3555
        %v3557 = vpack.c.b16 %v3549, %v3542
        %v3558 = vpack.c.b16 %v3556, %v3556
        %v3577 = vunpack.c.l.b16 %v3453
        %v3578 = vunpack.c.h.b16 %v3453
        %v3579 = vunpack.c.l.b16 %v3454
        %v3580 = vunpack.c.h.b16 %v3454
        %v3581 = vunpack.c.l.b16 %v3455
        %v3582 = vunpack.c.h.b16 %v3455
        %v3583 = vunpack.c.l.b16 %v3456
        %v3584 = vunpack.c.h.b16 %v3456
        %v3585 = vunpack.c.l.b16 %v3457
        %v3586 = vunpack.c.h.b16 %v3457
        %v3587 = vunpack.c.l.b16 %v3458
        %v3588 = vunpack.c.h.b16 %v3458
        %v3589 = vunpack.c.l.b16 %v3459
        %v3590 = vunpack.c.h.b16 %v3459
        %v3591 = vunpack.c.l.b16 %v3460
        %v3592 = vunpack.c.h.b16 %v3460
        %v3593 = vunpack.c.l.b16 %v3461
        %v3594 = vunpack.c.h.b16 %v3461
        %v3595 = vunpack.c.l.b16 %v3462
        %v3596 = vunpack.c.h.b16 %v3462
        %v3597 = vunpack.c.l.b16 %v3463
        %v3598 = vunpack.c.h.b16 %v3463
        %v3599 = vunpack.c.l.b16 %v3464
        %v3600 = vunpack.c.h.b16 %v3464
        %v3601 = vunpack.c.l.b16 %v3465
        %v3602 = vunpack.c.h.b16 %v3465
        %v3603 = vunpack.c.l.b16 %v3466
        %v3604 = vunpack.c.h.b16 %v3466
        %v3605 = vunpack.c.l.b16 %v3467
        %v3606 = vunpack.c.h.b16 %v3467
        %v3607 = vunpack.c.l.b16 %v3468
        %v3608 = vunpack.c.h.b16 %v3468
        %v3609 = vpack.c.b16 %v3579, %v3577
        %v3610 = vpack.c.b16 %v3580, %v3578
        %v3611 = vpack.c.b16 %v3583, %v3581
        %v3612 = vpack.c.b16 %v3584, %v3582
        %v3613 = vpack.c.b16 %v3587, %v3585
        %v3614 = vpack.c.b16 %v3588, %v3586
        %v3615 = vpack.c.b16 %v3591, %v3589
        %v3616 = vpack.c.b16 %v3592, %v3590
        %v3617 = vpack.c.b16 %v3595, %v3593
        %v3618 = vpack.c.b16 %v3596, %v3594
        %v3619 = vpack.c.b16 %v3599, %v3597
        %v3620 = vpack.c.b16 %v3600, %v3598
        %v3621 = vpack.c.b16 %v3603, %v3601
        %v3622 = vpack.c.b16 %v3604, %v3602
        %v3623 = vpack.c.b16 %v3607, %v3605
        %v3624 = vpack.c.b16 %v3608, %v3606
        %3641 = vmatprep.subr.bf16.mxu0 %v3610
        %3642 = vmatpush1.bf16.msra.mxu0 %v3609
        %3643 = vmatprep.subr.bf16.mxu0 %v3612
        %3644 = vmatpush1.bf16.msra.mxu0 %v3611
        %3645 = vmatprep.subr.bf16.mxu0 %v3614
        %3646 = vmatpush1.bf16.msra.mxu0 %v3613
        %3647 = vmatprep.subr.bf16.mxu0 %v3616
        %3648 = vmatpush1.bf16.msra.mxu0 %v3615
        %3649 = vmatprep.subr.bf16.mxu0 %v3618
        %3650 = vmatpush1.bf16.msra.mxu0 %v3617
        %3651 = vmatprep.subr.bf16.mxu0 %v3620
        %3652 = vmatpush1.bf16.msra.mxu0 %v3619
        %3653 = vmatprep.subr.bf16.mxu0 %v3622
        %3654 = vmatpush1.bf16.msra.mxu0 %v3621
        %3655 = vmatprep.subr.bf16.mxu0 %v3624
        %3656 = vmatpush1.bf16.msra.mxu0 %v3623
        %3657 = vmatprep.subr.bf16.mxu0 0
        %3658 = vmatpush1.bf16.msra.mxu0 0
        %3659 = vmatprep.subr.bf16.mxu0 0
        %3660 = vmatpush1.bf16.msra.mxu0 0
        %3661 = vmatprep.subr.bf16.mxu0 0
        %3662 = vmatpush1.bf16.msra.mxu0 0
        %3663 = vmatprep.subr.bf16.mxu0 0
        %3664 = vmatpush1.bf16.msra.mxu0 0
        %3665 = vmatprep.subr.bf16.mxu0 0
        %3666 = vmatpush1.bf16.msra.mxu0 0
        %3667 = vmatprep.subr.bf16.mxu0 0
        %3668 = vmatpush1.bf16.msra.mxu0 0
        %3669 = vmatprep.subr.bf16.mxu0 0
        %3670 = vmatpush1.bf16.msra.mxu0 0
        %3671 = vmatprep.subr.bf16.mxu0 0
        %3672 = vmatpush1.bf16.msra.mxu0 0
        %3673 = vmatprep.mubr.bf16.mxu0 0
        %3674 = vmatmul.mubr.bf16.gmra.mrb[0].mxu0 %v3557
        %v3675 = vpop.f32.mrb[0].mxu0
        %v3676 = vadd.f32 %v3474, %v3675
        %v3677 = vpop.f32.mrb[0].mxu0
        %v3678 = vadd.f32 %v3478, %v3677
        %v3679 = vpop.f32.mrb[0].mxu0
        %v3680 = vadd.f32 %v3474, %v3679
        %v3681 = vpop.f32.mrb[0].mxu0
        %v3682 = vadd.f32 %v3478, %v3681
        %3683 = vmatprep.mubr.bf16.mxu0 0
        %3684 = vmatmul.mubr.bf16.gmra.mrb[0].mxu0 %v3558
        %v3685 = vpop.f32.mrb[0].mxu0
        %v3686 = vadd.f32 %v3474, %v3685
        %v3687 = vpop.f32.mrb[0].mxu0
        %v3688 = vadd.f32 %v3478, %v3687
        %v3689 = vpop.f32.mrb[0].mxu0
        %v3690 = vpop.f32.mrb[0].mxu0
        %3691 = vdwg.mxu0
        %v3692 = vmax.f32 %v3676, 0.0
        %v3693 = vmax.f32 %v3678, 0.0
        %v3694 = vmax.f32 %v3680, 0.0
        %v3695 = vmax.f32 %v3682, 0.0
        %v3696 = vmax.f32 %v3686, 0.0
        %v3697 = vmax.f32 %v3688, 0.0
        %3698 = vst [vmem:[%s296] sm:$0xff] %v3692
        %3699 = vst [vmem:[%s296 + $0x8] sm:$0xff] %v3693
        %3700 = vst [vmem:[%s296 + $0x10] sm:$0xff] %v3694
        %3701 = vst [vmem:[%s296 + $0x18] sm:$0xff] %v3695
        %3702 = vst [vmem:[%s296 + $0x20] sm:$0xff] %v3696
        %3703 = vst [vmem:[%s296 + $0x28] sm:$0xff] %v3697
        %s3704 = sand.u32 %s142, 1
        %s3705 = scalar_lea.sflag [#allocation4], %s3704
        %s3706 = sand.u32 %s142, 1
        %s3707 = smul.addr %s3706, 48
        %s3708 = scalar_lea.vmem [#allocation11], %s3707
        // Predicated region
        $region61: #{tpu_custom_call.1} parent=39 // pred_check
          %p3709 = pneg %p152
        $region62: #{tpu_custom_call.1} parent=39 // pred_check_branch
          %3711 = sbr.rel (%p3709) target = $region64
        $region63: #{tpu_custom_call.1} parent=39 // pred_region
          %s3712 = smul.u32 3, %s24
          %s3714 = ssub.s32 768, 768
          %3715 = vsyncadd %s3705, %s3714
          %s3716 = smul.addr %s3712, 2
          %s3717 = smul.addr %s3716, 128
          %s3718 = scalar_lea.hbm %s5, %s3717
          %s3719 = sshll.u32 %s3708, 4
          %s3720 = int_to_ptr.vmem [resolvable:$true] %s3719
          %3725 = dma.vmem_to_hbm [thread:$0]  %s3720, 768, %s3718, %s3705, 256, 256, 16
        $region64: #{tpu_custom_call.1} parent=39 // pred_fallthru
          _
      $region40: #{tpu_custom_call.1} parent=5 // pred_fallthru
        _
      %p3726 = scmp.le.s32.totalorder 2, %s19
      // Predicated region
      $region65: #{tpu_custom_call.1} parent=5 // pred_check
        %p3727 = pneg %p3726
      $region66: #{tpu_custom_call.1} parent=5 // pred_check_branch
        %3729 = sbr.rel (%p3727) target = $region68
      $region67: #{tpu_custom_call.1} parent=5 // pred_region
        %s3730 = ssub.s32 %s19, 2
        // Predicated region
        $region69: #{tpu_custom_call.1} parent=67 // pred_check
          %p3731 = pneg %p158
        $region70: #{tpu_custom_call.1} parent=67 // pred_check_branch
          %3733 = sbr.rel (%p3731) target = $region72
        $region71: #{tpu_custom_call.1} parent=67 // pred_region
          %s3734 = sand.u32 %s143, 1
          %s3735 = scalar_lea.sflag [#allocation4], %s3734
          %s3736 = sand.u32 %s143, 1
          %s3737 = smul.addr %s3736, 48
          %s3738 = scalar_lea.vmem [#allocation11], %s3737
          %3739 = dma.done %s3735, 768
        $region72: #{tpu_custom_call.1} parent=67 // pred_fallthru
          _
      $region68: #{tpu_custom_call.1} parent=5 // pred_fallthru
        _
    $region6: #{tpu_custom_call.1} parent=1 // loop_footer
      %s23 = sadd.s32 1, %s19
    $region7: #{tpu_custom_call.1} parent=1 // loop_footer_branch
      %18 = sbr.rel target = $region3
    $region8: #{tpu_custom_call.1} parent=1 // loop_exit
      _
    %3740 = vsyncpa [#allocation3], 1
    %s3741 = scalar_lea.sflag [#allocation3], 1
    %3742 = vsyncpa %s3741, 1
    %3743 = vsyncpa [#allocation6], 1
    %3744 = vsyncpa [#allocation9], 1
    %3745 = vsyncpa [#allocation4], 1
    %s3746 = scalar_lea.sflag [#allocation4], 1
    %3747 = vsyncpa %s3746, 1

</llo_original>
